<compile_context>
chip_gen: v5e
topology: v5e:2x2
jax: 0.10.0
libtpu: 0.0.40
codegen_flags: <defaults>
</compile_context>

<pallas_src>
import jax
import jax.numpy as jnp
from jax.experimental import pallas as pl
from jax.experimental.pallas import tpu as pltpu

FEATURE_DIM = 512                 # module default
HID1 = FEATURE_DIM // 2           # 256
HID2 = FEATURE_DIM // 4           # 128
NUM_HEADS = 3
FUSED1 = HID1 + NUM_HEADS * HID2  # 640 = 5 * 128  (fused layer-1 output width)
LN_EPS = 1e-5


def _round_up(x, m):
    return (x + m - 1) // m * m


def _layernorm(x, gamma, beta):
    mu = jnp.mean(x, axis=-1, keepdims=True)
    var = jnp.mean(jnp.square(x - mu), axis=-1, keepdims=True)
    return (x - mu) * jax.lax.rsqrt(var + LN_EPS) * gamma + beta


def _dot_t(a, b):
    """a [m,k] @ b.T for b [n,k] -> [m,n] (contraction on last dim of both, f32 accum)."""
    return jax.lax.dot_general(a, b, dimension_numbers=(((1,), (1,)), ((), ())),
                               preferred_element_type=jnp.float32)


def _anomaly_kernel(x_ref, wcat_ref, bcat_ref, ln1_ref, w2_ref, ln2b_ref,
                    w3_ref, we_ref, misc_ref, out_ref):
    # x streamed as f32; cast to bf16 on the VPU right before the MXU.
    x = x_ref[...].astype(jnp.bfloat16)                                   # [Bt, 512]

    # Fused layer 1: main Linear(512->256) and 3x ensemble Linear(512->128) as ONE bf16
    # MXU matmul (N = 640) with f32 accumulation; biases added in f32.
    h = jnp.dot(x, wcat_ref[...], preferred_element_type=jnp.float32) + bcat_ref[...]

    # ---- Ensemble heads FIRST so the [Bt,384] activation is dead before the main branch.
    # Block-diagonal packed [3,384] output weights; A @ B.T form gives lane-dense [3, Bt].
    e1 = jax.nn.relu(h[:, HID1:]).astype(jnp.bfloat16)                    # [Bt, 384]
    ens_logits = _dot_t(we_ref[...], e1) + misc_ref[1:4, :]               # [3, Bt] f32

    # ---- Main branch: LN -> ReLU -> (Dropout = identity in eval) -> Linear -> LN -> ReLU.
    h1 = jax.nn.relu(_layernorm(h[:, :HID1], ln1_ref[0:1, :], ln1_ref[1:2, :]))
    h2 = jnp.dot(h1.astype(jnp.bfloat16), w2_ref[...],
                 preferred_element_type=jnp.float32) + ln2b_ref[0:1, :]
    h2 = jax.nn.relu(_layernorm(h2, ln2b_ref[1:2, :], ln2b_ref[2:3, :]))  # [Bt, 128]
    main_logit = _dot_t(w3_ref[...], h2.astype(jnp.bfloat16)) + misc_ref[0:1, :]  # [1, Bt]

    # Lane-dense epilogue: sigmoids act on [*, Bt] rows; combine is a sublane reduction.
    # 0.7*main + 0.3*mean(ensemble) == 0.7*main + 0.1*sum(ensemble).
    final = (0.7 * jax.nn.sigmoid(main_logit)
             + (0.3 / NUM_HEADS) * jnp.sum(jax.nn.sigmoid(ens_logits),
                                           axis=0, keepdims=True))        # [1, Bt]
    out_ref[...] = final[None]                                             # [1, 1, Bt]


def pack_params(p):
    """Consolidate PyTorch-layout params into a few lane-aligned, MXU-friendly arrays."""
    f32 = jnp.float32
    # Fused layer-1 weight/bias:  [w1 | ew1_0 | ew1_1 | ew1_2]
    wcat = jnp.concatenate([p["w1"]] + [p["ew1"][h] for h in range(NUM_HEADS)], axis=1)
    bcat = jnp.concatenate([p["b1"]] + [p["eb1"][h:h + 1] for h in range(NUM_HEADS)], axis=1)
    # LayerNorm / layer-2 small params.
    ln1 = jnp.concatenate([p["g1"], p["be1"]], axis=0)               # [2, 256] (gamma; beta)
    ln2b = jnp.concatenate([p["b2"], p["g2"], p["be2"]], axis=0)     # [3, 128] (bias; gamma; beta)
    # Block-diagonal [3, 384] ensemble output weights: row j holds ew2_j at columns
    # [128j, 128(j+1)), zeros elsewhere -> one small matmul covers all 3 heads.
    we = jnp.zeros((NUM_HEADS, NUM_HEADS * HID2), f32)
    for j in range(NUM_HEADS):
        we = we.at[j, j * HID2:(j + 1) * HID2].set(p["ew2"][j])
    # Output biases packed as a column: [b3; eb2_0; eb2_1; eb2_2] -> [4, 1]
    misc = jnp.concatenate([p["b3"].reshape(1, 1), p["eb2"].reshape(NUM_HEADS, 1)], axis=0)
    return dict(
        wcat=wcat.astype(jnp.bfloat16),   # bf16 MXU operands, f32 accumulation in-kernel
        bcat=bcat.astype(f32),
        ln1=ln1.astype(f32),
        w2=p["w2"].astype(jnp.bfloat16),
        ln2b=ln2b.astype(f32),
        w3=p["w3"].astype(jnp.bfloat16),  # [1, 128]
        we=we.astype(jnp.bfloat16),       # [3, 384]
        misc=misc.astype(f32),            # [4, 1]
    )


def anomaly_score(features, packed, *, block_rows=1024):
    """features: [B, 512] f32  ->  [B] f32 anomaly scores."""
    B, D = features.shape
    assert D == FEATURE_DIM, D

    # Batch tile: multiple of 16 sublanes; large to amortize per-grid-step overhead.
    # ~1024 keeps the f32 intermediates comfortably inside v7x's 64 MiB VMEM
    # (v5e/v6e with 128 MiB could go to 2048).
    Bt = min(_round_up(block_rows, 16), _round_up(B, 16))
    num_tiles = pl.cdiv(B, Bt)

    resident = lambda i: (0, 0)   # constant block index -> DMA'd once, stays VMEM-resident

    in_specs = [
        pl.BlockSpec((Bt, FEATURE_DIM), lambda i: (i, 0)),   # x streamed f32 per batch tile
        pl.BlockSpec(packed["wcat"].shape, resident),
        pl.BlockSpec(packed["bcat"].shape, resident),
        pl.BlockSpec(packed["ln1"].shape, resident),
        pl.BlockSpec(packed["w2"].shape, resident),
        pl.BlockSpec(packed["ln2b"].shape, resident),
        pl.BlockSpec(packed["w3"].shape, resident),
        pl.BlockSpec(packed["we"].shape, resident),
        pl.BlockSpec(packed["misc"].shape, resident),
    ]

    flops = 2 * B * (FEATURE_DIM * FUSED1 + HID1 * HID2
                     + HID2 + NUM_HEADS * NUM_HEADS * HID2)
    transcendentals = B * (2 + 2 * (NUM_HEADS + 1))   # 2 LN rsqrts + 4 sigmoids (exp+recip)/row
    bytes_accessed = (B * FEATURE_DIM * 4
                      + sum(int(v.size) * v.dtype.itemsize for v in packed.values())
                      + num_tiles * Bt * 4)

    out = pl.pallas_call(
        _anomaly_kernel,
        out_shape=jax.ShapeDtypeStruct((num_tiles, 1, Bt), jnp.float32),   # lane-dense rows
        grid=(num_tiles,),
        in_specs=in_specs,
        out_specs=pl.BlockSpec((1, 1, Bt), lambda i: (i, 0, 0)),
        compiler_params=pltpu.CompilerParams(
            dimension_semantics=("parallel",),
            vmem_limit_bytes=48 * 1024 * 1024),
        cost_estimate=pl.CostEstimate(flops=int(flops),
                                      transcendentals=int(transcendentals),
                                      bytes_accessed=int(bytes_accessed)),
    )(features, packed["wcat"], packed["bcat"], packed["ln1"], packed["w2"],
      packed["ln2b"], packed["w3"], packed["we"], packed["misc"])
    return out.reshape(-1)[:B]                             # [B]


def init_params(key):
    ks = jax.random.split(key, 10)

    def lin(k, fan_in, shape):
        bound = 1.0 / (fan_in ** 0.5)
        return jax.random.uniform(k, shape, jnp.float32, -bound, bound)

    return dict(
        # Linear(512 -> 256) + LayerNorm(256)
        w1=lin(ks[0], FEATURE_DIM, (FEATURE_DIM, HID1)),
        b1=lin(ks[1], FEATURE_DIM, (1, HID1)),
        g1=jnp.ones((1, HID1), jnp.float32),
        be1=jnp.zeros((1, HID1), jnp.float32),
        # Linear(256 -> 128) + LayerNorm(128)
        w2=lin(ks[2], HID1, (HID1, HID2)),
        b2=lin(ks[3], HID1, (1, HID2)),
        g2=jnp.ones((1, HID2), jnp.float32),
        be2=jnp.zeros((1, HID2), jnp.float32),
        # Linear(128 -> 1), stored transposed as [1, 128]
        w3=lin(ks[4], HID2, (1, HID2)),
        b3=lin(ks[5], HID2, (1, 1)),
        # 3 ensemble heads: Linear(512 -> 128), Linear(128 -> 1)
        ew1=lin(ks[6], FEATURE_DIM, (NUM_HEADS, FEATURE_DIM, HID2)),
        eb1=lin(ks[7], FEATURE_DIM, (NUM_HEADS, HID2)),
        ew2=lin(ks[8], HID2, (NUM_HEADS, HID2)),
        eb2=lin(ks[9], HID2, (NUM_HEADS, 1)),
    )


def reference(features, p, matmul_dtype=jnp.bfloat16):
    """Pure-JAX mirror of the PyTorch forward (eval mode).
    matmul_dtype=bf16 reproduces the kernel's mixed-precision policy (f32 accumulation)."""
    def mm(a, b):
        return jnp.dot(a.astype(matmul_dtype), b.astype(matmul_dtype),
                       preferred_element_type=jnp.float32)

    h1 = jax.nn.relu(_layernorm(mm(features, p["w1"]) + p["b1"], p["g1"], p["be1"]))
    h2 = jax.nn.relu(_layernorm(mm(h1, p["w2"]) + p["b2"], p["g2"], p["be2"]))
    main = jax.nn.sigmoid(mm(h2, p["w3"].T) + p["b3"])[:, 0]
    head_scores = []
    for h in range(NUM_HEADS):
        e1 = jax.nn.relu(mm(features, p["ew1"][h]) + p["eb1"][h])
        head_scores.append(jax.nn.sigmoid(mm(e1, p["ew2"][h][:, None]) + p["eb2"][h])[:, 0])
    ens = jnp.stack(head_scores).mean(0)
    return 0.7 * main + 0.3 * ens


if __name__ == "__main__":
    key = jax.random.PRNGKey(0)
    k_feat, k_params = jax.random.split(key)

    B = 200                         # deliberately NOT a multiple of the tile -> ragged last block
    features = jax.random.normal(k_feat, (B, FEATURE_DIM), jnp.float32)
    params = init_params(k_params)
    packed = pack_params(params)

    # Small tile here to exercise the multi-tile + ragged-final-block path.
    out = jax.block_until_ready(anomaly_score(features, packed, block_rows=128))

    # Matched-precision reference (same bf16-operand / f32-accumulate matmul policy).
    ref_bf16 = jax.block_until_ready(reference(features, params, matmul_dtype=jnp.bfloat16))
    # Pure-f32 reference (exact PyTorch eval-mode semantics), loose tolerance for bf16 MXU path.
    ref_f32 = jax.block_until_ready(reference(features, params, matmul_dtype=jnp.float32))

    assert out.shape == (B,)
    assert bool(jnp.all(jnp.isfinite(out)))
    err_bf16 = float(jnp.max(jnp.abs(out - ref_bf16)))
    err_f32 = float(jnp.max(jnp.abs(out - ref_f32)))
    assert err_bf16 < 3e-3, err_bf16
    assert err_f32 < 3e-2, err_f32
    print("KERNEL_OK")
</pallas_src>

<mosaic_0001>
module attributes {stable_mosaic.version = 11 : i64} {
  func.func @_anomaly_kernel(%arg0: i32, %arg1: memref<128x512xf32, #tpu.memory_space<vmem>>, %arg2: memref<512x640xbf16, #tpu.memory_space<vmem>>, %arg3: memref<1x640xf32, #tpu.memory_space<vmem>>, %arg4: memref<2x256xf32, #tpu.memory_space<vmem>>, %arg5: memref<256x128xbf16, #tpu.memory_space<vmem>>, %arg6: memref<3x128xf32, #tpu.memory_space<vmem>>, %arg7: memref<1x128xbf16, #tpu.memory_space<vmem>>, %arg8: memref<3x384xbf16, #tpu.memory_space<vmem>>, %arg9: memref<4x1xf32, #tpu.memory_space<vmem>>, %arg10: memref<1x1x128xf32, #tpu.memory_space<vmem>>) attributes {dimension_semantics = [#tpu.dimension_semantics<parallel>], iteration_bounds = array<i64: 2>, scalar_prefetch = 0 : i64, scratch_operands = 0 : i64, tpu.core_type = #tpu.core_type<tc>, window_params = [{transform_indices = @transform_0, window_bounds = array<i64: 128, 512>}, {pipeline_mode = #tpu.pipeline_mode<synchronous>, transform_indices = @transform_1, window_bounds = array<i64: 512, 640>}, {pipeline_mode = #tpu.pipeline_mode<synchronous>, transform_indices = @transform_2, window_bounds = array<i64: 1, 640>}, {pipeline_mode = #tpu.pipeline_mode<synchronous>, transform_indices = @transform_3, window_bounds = array<i64: 2, 256>}, {pipeline_mode = #tpu.pipeline_mode<synchronous>, transform_indices = @transform_4, window_bounds = array<i64: 256, 128>}, {pipeline_mode = #tpu.pipeline_mode<synchronous>, transform_indices = @transform_5, window_bounds = array<i64: 3, 128>}, {pipeline_mode = #tpu.pipeline_mode<synchronous>, transform_indices = @transform_6, window_bounds = array<i64: 1, 128>}, {pipeline_mode = #tpu.pipeline_mode<synchronous>, transform_indices = @transform_7, window_bounds = array<i64: 3, 384>}, {pipeline_mode = #tpu.pipeline_mode<synchronous>, transform_indices = @transform_8, window_bounds = array<i64: 4, 1>}, {transform_indices = @transform_9, window_bounds = array<i64: 1, 1, 128>}]} {
    %c0 = arith.constant 0 : index
    %c0_0 = arith.constant 0 : index
    %0 = vector.load %arg1[%c0, %c0_0] : memref<128x512xf32, #tpu.memory_space<vmem>>, vector<128x512xf32>
    %1 = arith.truncf %0 : vector<128x512xf32> to vector<128x512xbf16>
    %c0_1 = arith.constant 0 : index
    %c0_2 = arith.constant 0 : index
    %2 = vector.load %arg2[%c0_1, %c0_2] : memref<512x640xbf16, #tpu.memory_space<vmem>>, vector<512x640xbf16>
    %cst = arith.constant dense<0.000000e+00> : vector<128x640xf32>
    %3 = tpu.matmul %1, %2, %cst {dimension_numbers = #tpu.dot_dimension_numbers<[1], [0], [0], [1], [0, 0, 1, 1], [], []>} : vector<128x512xbf16>, vector<512x640xbf16>, vector<128x640xf32> -> vector<128x640xf32>
    %c0_3 = arith.constant 0 : index
    %c0_4 = arith.constant 0 : index
    %4 = vector.load %arg3[%c0_3, %c0_4] : memref<1x640xf32, #tpu.memory_space<vmem>>, vector<1x640xf32>
    %5 = vector.broadcast %4 : vector<1x640xf32> to vector<128x640xf32>
    %6 = arith.addf %3, %5 : vector<128x640xf32>
    %7 = vector.extract_strided_slice %6 {offsets = [0, 256], sizes = [128, 384], strides = [1, 1]} : vector<128x640xf32> to vector<128x384xf32>
    %cst_5 = arith.constant 0.000000e+00 : f32
    %8 = vector.broadcast %cst_5 : f32 to vector<128x384xf32>
    %9 = arith.maximumf %7, %8 : vector<128x384xf32>
    %10 = arith.truncf %9 : vector<128x384xf32> to vector<128x384xbf16>
    %c0_6 = arith.constant 0 : index
    %c0_7 = arith.constant 0 : index
    %11 = vector.load %arg8[%c0_6, %c0_7] : memref<3x384xbf16, #tpu.memory_space<vmem>>, vector<3x384xbf16>
    %cst_8 = arith.constant dense<0.000000e+00> : vector<3x128xf32>
    %12 = tpu.matmul %11, %10, %cst_8 {dimension_numbers = #tpu.dot_dimension_numbers<[1], [1], [0], [0], [0, 0, 1, 0], [], []>} : vector<3x384xbf16>, vector<128x384xbf16>, vector<3x128xf32> -> vector<3x128xf32>
    %c1 = arith.constant 1 : index
    %c0_9 = arith.constant 0 : index
    %13 = vector.load %arg9[%c1, %c0_9] : memref<4x1xf32, #tpu.memory_space<vmem>>, vector<3x1xf32>
    %14 = vector.broadcast %13 : vector<3x1xf32> to vector<3x128xf32>
    %15 = arith.addf %12, %14 : vector<3x128xf32>
    %16 = vector.extract_strided_slice %6 {offsets = [0, 0], sizes = [128, 256], strides = [1, 1]} : vector<128x640xf32> to vector<128x256xf32>
    %c0_10 = arith.constant 0 : index
    %c0_11 = arith.constant 0 : index
    %17 = vector.load %arg4[%c0_10, %c0_11] : memref<2x256xf32, #tpu.memory_space<vmem>>, vector<1x256xf32>
    %c1_12 = arith.constant 1 : index
    %c0_13 = arith.constant 0 : index
    %18 = vector.load %arg4[%c1_12, %c0_13] : memref<2x256xf32, #tpu.memory_space<vmem>>, vector<1x256xf32>
    %cst_14 = arith.constant dense<0.000000e+00> : vector<128xf32>
    %19 = vector.multi_reduction <add>, %16, %cst_14 [1] : vector<128x256xf32> to vector<128xf32>
    %20 = vector.shape_cast %19 : vector<128xf32> to vector<128x1xf32>
    %cst_15 = arith.constant 2.560000e+02 : f32
    %21 = vector.broadcast %cst_15 : f32 to vector<128x1xf32>
    %22 = arith.divf %20, %21 : vector<128x1xf32>
    %23 = vector.broadcast %22 : vector<128x1xf32> to vector<128x256xf32>
    %24 = arith.subf %16, %23 : vector<128x256xf32>
    %25 = arith.mulf %24, %24 : vector<128x256xf32>
    %cst_16 = arith.constant dense<0.000000e+00> : vector<128xf32>
    %26 = vector.multi_reduction <add>, %25, %cst_16 [1] : vector<128x256xf32> to vector<128xf32>
    %27 = vector.shape_cast %26 : vector<128xf32> to vector<128x1xf32>
    %cst_17 = arith.constant 2.560000e+02 : f32
    %28 = vector.broadcast %cst_17 : f32 to vector<128x1xf32>
    %29 = arith.divf %27, %28 : vector<128x1xf32>
    %30 = vector.broadcast %22 : vector<128x1xf32> to vector<128x256xf32>
    %31 = arith.subf %16, %30 : vector<128x256xf32>
    %cst_18 = arith.constant 9.99999974E-6 : f32
    %32 = vector.broadcast %cst_18 : f32 to vector<128x1xf32>
    %33 = arith.addf %29, %32 : vector<128x1xf32>
    %34 = math.rsqrt %33 : vector<128x1xf32>
    %35 = vector.broadcast %34 : vector<128x1xf32> to vector<128x256xf32>
    %36 = arith.mulf %31, %35 : vector<128x256xf32>
    %37 = vector.broadcast %17 : vector<1x256xf32> to vector<128x256xf32>
    %38 = arith.mulf %36, %37 : vector<128x256xf32>
    %39 = vector.broadcast %18 : vector<1x256xf32> to vector<128x256xf32>
    %40 = arith.addf %38, %39 : vector<128x256xf32>
    %cst_19 = arith.constant 0.000000e+00 : f32
    %41 = vector.broadcast %cst_19 : f32 to vector<128x256xf32>
    %42 = arith.maximumf %40, %41 : vector<128x256xf32>
    %43 = arith.truncf %42 : vector<128x256xf32> to vector<128x256xbf16>
    %c0_20 = arith.constant 0 : index
    %c0_21 = arith.constant 0 : index
    %44 = vector.load %arg5[%c0_20, %c0_21] : memref<256x128xbf16, #tpu.memory_space<vmem>>, vector<256x128xbf16>
    %cst_22 = arith.constant dense<0.000000e+00> : vector<128x128xf32>
    %45 = tpu.matmul %43, %44, %cst_22 {dimension_numbers = #tpu.dot_dimension_numbers<[1], [0], [0], [1], [0, 0, 1, 1], [], []>} : vector<128x256xbf16>, vector<256x128xbf16>, vector<128x128xf32> -> vector<128x128xf32>
    %c0_23 = arith.constant 0 : index
    %c0_24 = arith.constant 0 : index
    %46 = vector.load %arg6[%c0_23, %c0_24] : memref<3x128xf32, #tpu.memory_space<vmem>>, vector<1x128xf32>
    %47 = vector.broadcast %46 : vector<1x128xf32> to vector<128x128xf32>
    %48 = arith.addf %45, %47 : vector<128x128xf32>
    %c1_25 = arith.constant 1 : index
    %c0_26 = arith.constant 0 : index
    %49 = vector.load %arg6[%c1_25, %c0_26] : memref<3x128xf32, #tpu.memory_space<vmem>>, vector<1x128xf32>
    %c2 = arith.constant 2 : index
    %c0_27 = arith.constant 0 : index
    %50 = vector.load %arg6[%c2, %c0_27] : memref<3x128xf32, #tpu.memory_space<vmem>>, vector<1x128xf32>
    %cst_28 = arith.constant dense<0.000000e+00> : vector<128xf32>
    %51 = vector.multi_reduction <add>, %48, %cst_28 [1] : vector<128x128xf32> to vector<128xf32>
    %52 = vector.shape_cast %51 : vector<128xf32> to vector<128x1xf32>
    %cst_29 = arith.constant 1.280000e+02 : f32
    %53 = vector.broadcast %cst_29 : f32 to vector<128x1xf32>
    %54 = arith.divf %52, %53 : vector<128x1xf32>
    %55 = vector.broadcast %54 : vector<128x1xf32> to vector<128x128xf32>
    %56 = arith.subf %48, %55 : vector<128x128xf32>
    %57 = arith.mulf %56, %56 : vector<128x128xf32>
    %cst_30 = arith.constant dense<0.000000e+00> : vector<128xf32>
    %58 = vector.multi_reduction <add>, %57, %cst_30 [1] : vector<128x128xf32> to vector<128xf32>
    %59 = vector.shape_cast %58 : vector<128xf32> to vector<128x1xf32>
    %cst_31 = arith.constant 1.280000e+02 : f32
    %60 = vector.broadcast %cst_31 : f32 to vector<128x1xf32>
    %61 = arith.divf %59, %60 : vector<128x1xf32>
    %62 = vector.broadcast %54 : vector<128x1xf32> to vector<128x128xf32>
    %63 = arith.subf %48, %62 : vector<128x128xf32>
    %cst_32 = arith.constant 9.99999974E-6 : f32
    %64 = vector.broadcast %cst_32 : f32 to vector<128x1xf32>
    %65 = arith.addf %61, %64 : vector<128x1xf32>
    %66 = math.rsqrt %65 : vector<128x1xf32>
    %67 = vector.broadcast %66 : vector<128x1xf32> to vector<128x128xf32>
    %68 = arith.mulf %63, %67 : vector<128x128xf32>
    %69 = vector.broadcast %49 : vector<1x128xf32> to vector<128x128xf32>
    %70 = arith.mulf %68, %69 : vector<128x128xf32>
    %71 = vector.broadcast %50 : vector<1x128xf32> to vector<128x128xf32>
    %72 = arith.addf %70, %71 : vector<128x128xf32>
    %cst_33 = arith.constant 0.000000e+00 : f32
    %73 = vector.broadcast %cst_33 : f32 to vector<128x128xf32>
    %74 = arith.maximumf %72, %73 : vector<128x128xf32>
    %c0_34 = arith.constant 0 : index
    %c0_35 = arith.constant 0 : index
    %75 = vector.load %arg7[%c0_34, %c0_35] : memref<1x128xbf16, #tpu.memory_space<vmem>>, vector<1x128xbf16>
    %76 = arith.truncf %74 : vector<128x128xf32> to vector<128x128xbf16>
    %cst_36 = arith.constant dense<0.000000e+00> : vector<1x128xf32>
    %77 = tpu.matmul %75, %76, %cst_36 {dimension_numbers = #tpu.dot_dimension_numbers<[1], [1], [0], [0], [0, 0, 1, 0], [], []>} : vector<1x128xbf16>, vector<128x128xbf16>, vector<1x128xf32> -> vector<1x128xf32>
    %c0_37 = arith.constant 0 : index
    %c0_38 = arith.constant 0 : index
    %78 = vector.load %arg9[%c0_37, %c0_38] : memref<4x1xf32, #tpu.memory_space<vmem>>, vector<1x1xf32>
    %79 = vector.broadcast %78 : vector<1x1xf32> to vector<1x128xf32>
    %80 = arith.addf %77, %79 : vector<1x128xf32>
    %81 = arith.negf %80 : vector<1x128xf32>
    %82 = math.exp %81 : vector<1x128xf32>
    %cst_39 = arith.constant 1.000000e+00 : f32
    %83 = vector.broadcast %cst_39 : f32 to vector<1x128xf32>
    %84 = arith.addf %83, %82 : vector<1x128xf32>
    %85 = arith.divf %83, %84 : vector<1x128xf32>
    %cst_40 = arith.constant 0.699999988 : f32
    %86 = vector.broadcast %cst_40 : f32 to vector<1x128xf32>
    %87 = arith.mulf %86, %85 : vector<1x128xf32>
    %88 = arith.negf %15 : vector<3x128xf32>
    %89 = math.exp %88 : vector<3x128xf32>
    %cst_41 = arith.constant 1.000000e+00 : f32
    %90 = vector.broadcast %cst_41 : f32 to vector<3x128xf32>
    %91 = arith.addf %90, %89 : vector<3x128xf32>
    %92 = arith.divf %90, %91 : vector<3x128xf32>
    %cst_42 = arith.constant dense<0.000000e+00> : vector<128xf32>
    %93 = vector.multi_reduction <add>, %92, %cst_42 [0] : vector<3x128xf32> to vector<128xf32>
    %94 = vector.shape_cast %93 : vector<128xf32> to vector<1x128xf32>
    %cst_43 = arith.constant 1.000000e-01 : f32
    %95 = vector.broadcast %cst_43 : f32 to vector<1x128xf32>
    %96 = arith.mulf %95, %94 : vector<1x128xf32>
    %97 = arith.addf %87, %96 : vector<1x128xf32>
    %98 = vector.shape_cast %97 : vector<1x128xf32> to vector<1x1x128xf32>
    %c0_44 = arith.constant 0 : index
    %c0_45 = arith.constant 0 : index
    %c0_46 = arith.constant 0 : index
    %99 = vector.load %arg10[%c0_44, %c0_45, %c0_46] : memref<1x1x128xf32, #tpu.memory_space<vmem>>, vector<1x1x128xf32>
    tpu.vector_store %arg10[%c0_44, %c0_45, %c0_46], %98 {strides = array<i32>} : memref<1x1x128xf32, #tpu.memory_space<vmem>>, vector<1x1x128xf32>,
    return
  }
  func.func @transform_0(%arg0: i32) -> (i32, i32) {
    %c0_i32 = arith.constant 0 : i32
    %c0_i32_0 = arith.constant 0 : i32
    return %arg0, %c0_i32 : i32, i32
  }
  func.func @transform_1(%arg0: i32) -> (i32, i32) {
    %c0_i32 = arith.constant 0 : i32
    %c0_i32_0 = arith.constant 0 : i32
    %c0_i32_1 = arith.constant 0 : i32
    return %c0_i32, %c0_i32_0 : i32, i32
  }
  func.func @transform_2(%arg0: i32) -> (i32, i32) {
    %c0_i32 = arith.constant 0 : i32
    %c0_i32_0 = arith.constant 0 : i32
    %c0_i32_1 = arith.constant 0 : i32
    return %c0_i32, %c0_i32_0 : i32, i32
  }
  func.func @transform_3(%arg0: i32) -> (i32, i32) {
    %c0_i32 = arith.constant 0 : i32
    %c0_i32_0 = arith.constant 0 : i32
    %c0_i32_1 = arith.constant 0 : i32
    return %c0_i32, %c0_i32_0 : i32, i32
  }
  func.func @transform_4(%arg0: i32) -> (i32, i32) {
    %c0_i32 = arith.constant 0 : i32
    %c0_i32_0 = arith.constant 0 : i32
    %c0_i32_1 = arith.constant 0 : i32
    return %c0_i32, %c0_i32_0 : i32, i32
  }
  func.func @transform_5(%arg0: i32) -> (i32, i32) {
    %c0_i32 = arith.constant 0 : i32
    %c0_i32_0 = arith.constant 0 : i32
    %c0_i32_1 = arith.constant 0 : i32
    return %c0_i32, %c0_i32_0 : i32, i32
  }
  func.func @transform_6(%arg0: i32) -> (i32, i32) {
    %c0_i32 = arith.constant 0 : i32
    %c0_i32_0 = arith.constant 0 : i32
    %c0_i32_1 = arith.constant 0 : i32
    return %c0_i32, %c0_i32_0 : i32, i32
  }
  func.func @transform_7(%arg0: i32) -> (i32, i32) {
    %c0_i32 = arith.constant 0 : i32
    %c0_i32_0 = arith.constant 0 : i32
    %c0_i32_1 = arith.constant 0 : i32
    return %c0_i32, %c0_i32_0 : i32, i32
  }
  func.func @transform_8(%arg0: i32) -> (i32, i32) {
    %c0_i32 = arith.constant 0 : i32
    %c0_i32_0 = arith.constant 0 : i32
    %c0_i32_1 = arith.constant 0 : i32
    return %c0_i32, %c0_i32_0 : i32, i32
  }
  func.func @transform_9(%arg0: i32) -> (i32, i32, i32) {
    %c0_i32 = arith.constant 0 : i32
    %c0_i32_0 = arith.constant 0 : i32
    %c0_i32_1 = arith.constant 0 : i32
    return %arg0, %c0_i32, %c0_i32_0 : i32, i32, i32
  }
}

</mosaic_0001>

<llo_original>
// kernel: tpu_custom_call.1
$region0: #{tpu_custom_call.1}
  #allocation0 [shape = 'u32[]', space=smem, size = 0x4, offset = 0x4, fixed_abs, tag = 'smem constant byte address 0x4 - core index']
  #allocation1 [shape = 'u32[72,128]{1,0:T(1,128)}', space=vmem, size = 0x9000, scoped, tag = 'internal scratch']
  %s0 = inlined_call_operand.hbm [shape: f32[200,512], index: 0, kind: input, shape index: {}]
  %s1 = inlined_call_operand.hbm [shape: bf16[512,640], index: 1, kind: input, shape index: {}]
  %s2 = inlined_call_operand.vmem [shape: f32[1,640], index: 2, kind: input, shape index: {}]
  %s3 = inlined_call_operand.hbm [shape: f32[2,256], index: 3, kind: input, shape index: {}]
  %s4 = inlined_call_operand.hbm [shape: bf16[256,128], index: 4, kind: input, shape index: {}]
  %s5 = inlined_call_operand.hbm [shape: f32[3,128], index: 5, kind: input, shape index: {}]
  %s6 = inlined_call_operand.hbm [shape: bf16[1,128], index: 6, kind: input, shape index: {}]
  %s7 = inlined_call_operand.vmem [shape: bf16[3,384], index: 7, kind: input, shape index: {}]
  %s8 = inlined_call_operand.vmem [shape: f32[4,1], index: 8, kind: input, shape index: {}]
  %s9 = inlined_call_operand.hbm [shape: f32[2,1,128], index: 9, kind: output, shape index: {}]
  %s10 = sld [smem:[#allocation0]]
  $region93: #{tpu_custom_call.1} parent=0
    _
  %s12 = ssub.s32 1, %s10
  %s13 = scalar_select 0, %s12, %s10
  $region1: #{tpu_custom_call.1} parent=0
    #allocation2 [shape = 'u8[524288]{0}', space=vmem, size = 0x80000, scoped, tag = 'input window, operand 0']
    #allocation3 [shape = 's32[2]{0}', space=sflag, size = 0x8, scoped, tag = 'scoped memory for tpu_custom_call.1']
    #allocation4 [shape = 's32[2]{0}', space=sflag, size = 0x8, scoped, tag = 'scoped memory for tpu_custom_call.1']
    #allocation5 [shape = 'u8[655360]{0}', space=vmem, size = 0xa0000, scoped, tag = 'input window, operand 1, single buffered']
    #allocation6 [shape = 's32[1]{0}', space=sflag, size = 0x4, scoped, tag = 'scoped memory for tpu_custom_call.1']
    #allocation7 [shape = 'u8[2048]{0}', space=vmem, size = 0x800, scoped, tag = 'input window, operand 3, single buffered']
    #allocation8 [shape = 'u8[65536]{0}', space=vmem, size = 0x10000, scoped, tag = 'input window, operand 4, single buffered']
    #allocation9 [shape = 's32[1]{0}', space=sflag, size = 0x4, scoped, tag = 'scoped memory for tpu_custom_call.1']
    #allocation10 [shape = 'u8[2048]{0}', space=vmem, size = 0x800, scoped, tag = 'input window, operand 5, single buffered']
    #allocation11 [shape = 'u8[512]{0}', space=vmem, size = 0x400, scoped, tag = 'input window, operand 6, single buffered']
    #allocation12 [shape = 's32[1]{0}', space=sflag, size = 0x4, scoped, tag = 'scoped memory for tpu_custom_call.1']
    #allocation13 [shape = 'u8[1024]{0}', space=vmem, size = 0x400, scoped, tag = 'output window, operand 0']
    %14 = vsyncpa [#allocation3], 0
    %s15 = scalar_lea.sflag [#allocation3], 1
    %16 = vsyncpa %s15, 0
    %17 = vsyncpa [#allocation6], 0
    %18 = vsyncpa [#allocation9], 0
    %19 = vsyncpa [#allocation12], 0
    %20 = vsyncpa [#allocation4], 0
    %s21 = scalar_lea.sflag [#allocation4], 1
    %22 = vsyncpa %s21, 0
    loop: start=0, step=1, limit=4
    $region2: #{tpu_custom_call.1} parent=1 // loop_pre_header
      _
    $region3: #{tpu_custom_call.1} parent=1 // loop_header
      %s24 = sphi 0, %s28
      %p25 = scmp.ge.s32.totalorder %s24, 4
      %s34 = sphi 0, %s36
      %s37 = sphi 0, %s34
      %s38 = sphi 0, %s37
      %s54 = sphi 0, %s38
      %s58 = sphi 0, %s58
      %s60 = sphi 0, %s58
      %s61 = sphi 0, %s60
      %s75 = sphi 0, %s61
      %s79 = sphi 0, %s79
      %s81 = sphi 0, %s79
      %s82 = sphi 0, %s81
      %s96 = sphi 0, %s82
      %s100 = sphi 0, %s100
      %s102 = sphi 0, %s100
      %s103 = sphi 0, %s102
      %s117 = sphi 0, %s103
      %s121 = sphi 0, %s121
      %s123 = sphi 0, %s121
      %s124 = sphi 0, %s123
      %s138 = sphi 0, %s124
      %s142 = sphi 0, %s142
      %s144 = sphi 0, %s142
      %s145 = sphi 0, %s144
      %s159 = sphi 0, %s145
      %s163 = sphi 0, %s163
      %s165 = sphi 0, %s163
      %s166 = sphi 0, %s165
      %s180 = sphi 0, %s166
      %s184 = sphi 0, %s184
      %s186 = sphi 0, %s184
      %s187 = sphi 0, %s186
      %s201 = sphi 0, %s187
      %s205 = sphi 0, %s205
      %s207 = sphi 0, %s205
      %s208 = sphi 0, %s207
      %s222 = sphi 0, %s208
      %s228 = sphi 0, %s230
      %s231 = sphi 0, %s228
      %s232 = sphi 0, %s231
      %s248 = sphi 0, %s232
    $region4: #{tpu_custom_call.1} parent=1 // loop_header_branch
      %27 = sbr.rel (%p25) target = $region8
    $region5: #{tpu_custom_call.1} parent=1 // loop_body
      %s29 = ssub.s32 %s24, 1
      %s30 = ssub.s32 %s24, 2
      %s31 = sadd.s32 %s24, 1
      %s32 = ssub.s32 %s24, %s31
      %p33 = scmp.eq.s32.totalorder %s32, 0
      %s35 = sadd.s32 %s34, 1
      %s36 = scalar_select %p33, %s34, %s35
      %p39 = pneg %p33
      %p40 = scmp.eq.s32.totalorder %s24, 1
      %p41 = por %p39, %p40
      %p42 = scmp.ne.s32.totalorder %s34, %s37
      %p43 = scmp.eq.s32.totalorder %s24, 0
      %p44 = por %p42, %p43
      %p45 = scmp.ne.s32.totalorder %s34, %s37
      %p46 = scmp.eq.s32.totalorder %s29, 1
      %p47 = por %p45, %p46
      %p48 = scmp.ne.s32.totalorder %s37, %s38
      %p49 = scmp.eq.s32.totalorder %s29, 0
      %p50 = por %p48, %p49
      %p51 = scmp.ne.s32.totalorder %s37, %s38
      %p52 = scmp.eq.s32.totalorder %s30, 1
      %p53 = por %p51, %p52
      %p55 = scmp.ne.s32.totalorder %s38, %s54
      %p56 = scmp.eq.s32.totalorder %s30, 0
      %p57 = por %p55, %p56
      %s59 = sadd.s32 %s58, 1
      %p62 = scmp.eq.s32.totalorder %s24, 1
      %p63 = scmp.ne.s32.totalorder %s58, %s60
      %p64 = scmp.eq.s32.totalorder %s24, 0
      %p65 = por %p63, %p64
      %p66 = scmp.ne.s32.totalorder %s58, %s60
      %p67 = scmp.eq.s32.totalorder %s29, 1
      %p68 = por %p66, %p67
      %p69 = scmp.ne.s32.totalorder %s60, %s61
      %p70 = scmp.eq.s32.totalorder %s29, 0
      %p71 = por %p69, %p70
      %p72 = scmp.ne.s32.totalorder %s60, %s61
      %p73 = scmp.eq.s32.totalorder %s30, 1
      %p74 = por %p72, %p73
      %p76 = scmp.ne.s32.totalorder %s61, %s75
      %p77 = scmp.eq.s32.totalorder %s30, 0
      %p78 = por %p76, %p77
      %s80 = sadd.s32 %s79, 1
      %p83 = scmp.eq.s32.totalorder %s24, 1
      %p84 = scmp.ne.s32.totalorder %s79, %s81
      %p85 = scmp.eq.s32.totalorder %s24, 0
      %p86 = por %p84, %p85
      %p87 = scmp.ne.s32.totalorder %s79, %s81
      %p88 = scmp.eq.s32.totalorder %s29, 1
      %p89 = por %p87, %p88
      %p90 = scmp.ne.s32.totalorder %s81, %s82
      %p91 = scmp.eq.s32.totalorder %s29, 0
      %p92 = por %p90, %p91
      %p93 = scmp.ne.s32.totalorder %s81, %s82
      %p94 = scmp.eq.s32.totalorder %s30, 1
      %p95 = por %p93, %p94
      %p97 = scmp.ne.s32.totalorder %s82, %s96
      %p98 = scmp.eq.s32.totalorder %s30, 0
      %p99 = por %p97, %p98
      %s101 = sadd.s32 %s100, 1
      %p104 = scmp.eq.s32.totalorder %s24, 1
      %p105 = scmp.ne.s32.totalorder %s100, %s102
      %p106 = scmp.eq.s32.totalorder %s24, 0
      %p107 = por %p105, %p106
      %p108 = scmp.ne.s32.totalorder %s100, %s102
      %p109 = scmp.eq.s32.totalorder %s29, 1
      %p110 = por %p108, %p109
      %p111 = scmp.ne.s32.totalorder %s102, %s103
      %p112 = scmp.eq.s32.totalorder %s29, 0
      %p113 = por %p111, %p112
      %p114 = scmp.ne.s32.totalorder %s102, %s103
      %p115 = scmp.eq.s32.totalorder %s30, 1
      %p116 = por %p114, %p115
      %p118 = scmp.ne.s32.totalorder %s103, %s117
      %p119 = scmp.eq.s32.totalorder %s30, 0
      %p120 = por %p118, %p119
      %s122 = sadd.s32 %s121, 1
      %p125 = scmp.eq.s32.totalorder %s24, 1
      %p126 = scmp.ne.s32.totalorder %s121, %s123
      %p127 = scmp.eq.s32.totalorder %s24, 0
      %p128 = por %p126, %p127
      %p129 = scmp.ne.s32.totalorder %s121, %s123
      %p130 = scmp.eq.s32.totalorder %s29, 1
      %p131 = por %p129, %p130
      %p132 = scmp.ne.s32.totalorder %s123, %s124
      %p133 = scmp.eq.s32.totalorder %s29, 0
      %p134 = por %p132, %p133
      %p135 = scmp.ne.s32.totalorder %s123, %s124
      %p136 = scmp.eq.s32.totalorder %s30, 1
      %p137 = por %p135, %p136
      %p139 = scmp.ne.s32.totalorder %s124, %s138
      %p140 = scmp.eq.s32.totalorder %s30, 0
      %p141 = por %p139, %p140
      %s143 = sadd.s32 %s142, 1
      %p146 = scmp.eq.s32.totalorder %s24, 1
      %p147 = scmp.ne.s32.totalorder %s142, %s144
      %p148 = scmp.eq.s32.totalorder %s24, 0
      %p149 = por %p147, %p148
      %p150 = scmp.ne.s32.totalorder %s142, %s144
      %p151 = scmp.eq.s32.totalorder %s29, 1
      %p152 = por %p150, %p151
      %p153 = scmp.ne.s32.totalorder %s144, %s145
      %p154 = scmp.eq.s32.totalorder %s29, 0
      %p155 = por %p153, %p154
      %p156 = scmp.ne.s32.totalorder %s144, %s145
      %p157 = scmp.eq.s32.totalorder %s30, 1
      %p158 = por %p156, %p157
      %p160 = scmp.ne.s32.totalorder %s145, %s159
      %p161 = scmp.eq.s32.totalorder %s30, 0
      %p162 = por %p160, %p161
      %s164 = sadd.s32 %s163, 1
      %p167 = scmp.eq.s32.totalorder %s24, 1
      %p168 = scmp.ne.s32.totalorder %s163, %s165
      %p169 = scmp.eq.s32.totalorder %s24, 0
      %p170 = por %p168, %p169
      %p171 = scmp.ne.s32.totalorder %s163, %s165
      %p172 = scmp.eq.s32.totalorder %s29, 1
      %p173 = por %p171, %p172
      %p174 = scmp.ne.s32.totalorder %s165, %s166
      %p175 = scmp.eq.s32.totalorder %s29, 0
      %p176 = por %p174, %p175
      %p177 = scmp.ne.s32.totalorder %s165, %s166
      %p178 = scmp.eq.s32.totalorder %s30, 1
      %p179 = por %p177, %p178
      %p181 = scmp.ne.s32.totalorder %s166, %s180
      %p182 = scmp.eq.s32.totalorder %s30, 0
      %p183 = por %p181, %p182
      %s185 = sadd.s32 %s184, 1
      %p188 = scmp.eq.s32.totalorder %s24, 1
      %p189 = scmp.ne.s32.totalorder %s184, %s186
      %p190 = scmp.eq.s32.totalorder %s24, 0
      %p191 = por %p189, %p190
      %p192 = scmp.ne.s32.totalorder %s184, %s186
      %p193 = scmp.eq.s32.totalorder %s29, 1
      %p194 = por %p192, %p193
      %p195 = scmp.ne.s32.totalorder %s186, %s187
      %p196 = scmp.eq.s32.totalorder %s29, 0
      %p197 = por %p195, %p196
      %p198 = scmp.ne.s32.totalorder %s186, %s187
      %p199 = scmp.eq.s32.totalorder %s30, 1
      %p200 = por %p198, %p199
      %p202 = scmp.ne.s32.totalorder %s187, %s201
      %p203 = scmp.eq.s32.totalorder %s30, 0
      %p204 = por %p202, %p203
      %s206 = sadd.s32 %s205, 1
      %p209 = scmp.eq.s32.totalorder %s24, 1
      %p210 = scmp.ne.s32.totalorder %s205, %s207
      %p211 = scmp.eq.s32.totalorder %s24, 0
      %p212 = por %p210, %p211
      %p213 = scmp.ne.s32.totalorder %s205, %s207
      %p214 = scmp.eq.s32.totalorder %s29, 1
      %p215 = por %p213, %p214
      %p216 = scmp.ne.s32.totalorder %s207, %s208
      %p217 = scmp.eq.s32.totalorder %s29, 0
      %p218 = por %p216, %p217
      %p219 = scmp.ne.s32.totalorder %s207, %s208
      %p220 = scmp.eq.s32.totalorder %s30, 1
      %p221 = por %p219, %p220
      %p223 = scmp.ne.s32.totalorder %s208, %s222
      %p224 = scmp.eq.s32.totalorder %s30, 0
      %p225 = por %p223, %p224
      %s226 = ssub.s32 %s24, %s31
      %p227 = scmp.eq.s32.totalorder %s226, 0
      %s229 = sadd.s32 %s228, 1
      %s230 = scalar_select %p227, %s228, %s229
      %p233 = pneg %p227
      %p234 = scmp.eq.s32.totalorder %s24, 1
      %p235 = por %p233, %p234
      %p236 = scmp.ne.s32.totalorder %s228, %s231
      %p237 = scmp.eq.s32.totalorder %s24, 0
      %p238 = por %p236, %p237
      %p239 = scmp.ne.s32.totalorder %s228, %s231
      %p240 = scmp.eq.s32.totalorder %s29, 1
      %p241 = por %p239, %p240
      %p242 = scmp.ne.s32.totalorder %s231, %s232
      %p243 = scmp.eq.s32.totalorder %s29, 0
      %p244 = por %p242, %p243
      %p245 = scmp.ne.s32.totalorder %s231, %s232
      %p246 = scmp.eq.s32.totalorder %s30, 1
      %p247 = por %p245, %p246
      %p249 = scmp.ne.s32.totalorder %s232, %s248
      %p250 = scmp.eq.s32.totalorder %s30, 0
      %p251 = por %p249, %p250
      %p252 = scmp.le.s32.totalorder 1, %s24
      %p253 = scmp.lt.s32.totalorder %s24, 3
      %p254 = pnand %p252, %p253
      %p255 = pneg %p254
      // Predicated region
      $region9: #{tpu_custom_call.1} parent=5 // pred_check
        _
      $region10: #{tpu_custom_call.1} parent=5 // pred_check_branch
        %257 = sbr.rel (%p254) target = $region12
      $region11: #{tpu_custom_call.1} parent=5 // pred_region
        %s258 = ssub.s32 %s24, 1
        // Predicated region
        $region13: #{tpu_custom_call.1} parent=11 // pred_check
          %p259 = pneg %p71
        $region14: #{tpu_custom_call.1} parent=11 // pred_check_branch
          %261 = sbr.rel (%p259) target = $region16
        $region15: #{tpu_custom_call.1} parent=11 // pred_region
          %263 = vsyncadd [#allocation6], 0
          %s264 = sshll.u32 %s1, 4
          %s265 = int_to_ptr.hbm [resolvable:$true] %s264
          %s266 = sshll.u32 [#allocation5], 4
          %s267 = int_to_ptr.vmem [resolvable:$true] %s266
          %272 = dma.hbm_to_vmem [thread:$0]  %s265, 20480, %s267, [#allocation6], 320, 320, 20
        $region16: #{tpu_custom_call.1} parent=11 // pred_fallthru
          _
        // Predicated region
        $region17: #{tpu_custom_call.1} parent=11 // pred_check
          %p273 = pneg %p92
        $region18: #{tpu_custom_call.1} parent=11 // pred_check_branch
          %275 = sbr.rel (%p273) target = $region20
        $region19: #{tpu_custom_call.1} parent=11 // pred_region
          _
        $region20: #{tpu_custom_call.1} parent=11 // pred_fallthru
          _
        // Predicated region
        $region21: #{tpu_custom_call.1} parent=11 // pred_check
          %p276 = pneg %p113
        $region22: #{tpu_custom_call.1} parent=11 // pred_check_branch
          %278 = sbr.rel (%p276) target = $region24
        $region23: #{tpu_custom_call.1} parent=11 // pred_region
          %280 = vsyncadd [#allocation6], 0
          %s282 = sshll.u32 %s3, 4
          %s283 = int_to_ptr.hbm [resolvable:$true] %s282
          %s284 = sshll.u32 [#allocation7], 4
          %s285 = int_to_ptr.vmem [resolvable:$true] %s284
          %287 = dma.hbm_to_vmem [thread:$0]  %s283, 64, %s285, [#allocation6]
        $region24: #{tpu_custom_call.1} parent=11 // pred_fallthru
          _
        // Predicated region
        $region25: #{tpu_custom_call.1} parent=11 // pred_check
          %p288 = pneg %p134
        $region26: #{tpu_custom_call.1} parent=11 // pred_check_branch
          %290 = sbr.rel (%p288) target = $region28
        $region27: #{tpu_custom_call.1} parent=11 // pred_region
          %292 = vsyncadd [#allocation9], 0
          %s293 = sshll.u32 %s4, 4
          %s294 = int_to_ptr.hbm [resolvable:$true] %s293
          %s295 = sshll.u32 [#allocation8], 4
          %s296 = int_to_ptr.vmem [resolvable:$true] %s295
          %301 = dma.hbm_to_vmem [thread:$0]  %s294, 2048, %s296, [#allocation9], 64, 64, 4
        $region28: #{tpu_custom_call.1} parent=11 // pred_fallthru
          _
        // Predicated region
        $region29: #{tpu_custom_call.1} parent=11 // pred_check
          %p302 = pneg %p155
        $region30: #{tpu_custom_call.1} parent=11 // pred_check_branch
          %304 = sbr.rel (%p302) target = $region32
        $region31: #{tpu_custom_call.1} parent=11 // pred_region
          %306 = vsyncadd [#allocation9], 0
          %s308 = sshll.u32 %s5, 4
          %s309 = int_to_ptr.hbm [resolvable:$true] %s308
          %s310 = sshll.u32 [#allocation10], 4
          %s311 = int_to_ptr.vmem [resolvable:$true] %s310
          %313 = dma.hbm_to_vmem [thread:$0]  %s309, 64, %s311, [#allocation9]
        $region32: #{tpu_custom_call.1} parent=11 // pred_fallthru
          _
        // Predicated region
        $region33: #{tpu_custom_call.1} parent=11 // pred_check
          %p314 = pneg %p176
        $region34: #{tpu_custom_call.1} parent=11 // pred_check_branch
          %316 = sbr.rel (%p314) target = $region36
        $region35: #{tpu_custom_call.1} parent=11 // pred_region
          %318 = vsyncadd [#allocation12], 0
          %s320 = sshll.u32 %s6, 4
          %s321 = int_to_ptr.hbm [resolvable:$true] %s320
          %s322 = sshll.u32 [#allocation11], 4
          %s323 = int_to_ptr.vmem [resolvable:$true] %s322
          %325 = dma.hbm_to_vmem [thread:$0]  %s321, 16, %s323, [#allocation12]
        $region36: #{tpu_custom_call.1} parent=11 // pred_fallthru
          _
        // Predicated region
        $region37: #{tpu_custom_call.1} parent=11 // pred_check
          %p326 = pneg %p197
        $region38: #{tpu_custom_call.1} parent=11 // pred_check_branch
          %328 = sbr.rel (%p326) target = $region40
        $region39: #{tpu_custom_call.1} parent=11 // pred_region
          _
        $region40: #{tpu_custom_call.1} parent=11 // pred_fallthru
          _
        // Predicated region
        $region41: #{tpu_custom_call.1} parent=11 // pred_check
          %p329 = pneg %p218
        $region42: #{tpu_custom_call.1} parent=11 // pred_check_branch
          %331 = sbr.rel (%p329) target = $region44
        $region43: #{tpu_custom_call.1} parent=11 // pred_region
          _
        $region44: #{tpu_custom_call.1} parent=11 // pred_fallthru
          _
      $region12: #{tpu_custom_call.1} parent=5 // pred_fallthru
        _
      %p332 = scmp.lt.s32.totalorder %s24, 2
      // Predicated region
      $region45: #{tpu_custom_call.1} parent=5 // pred_check
        %p333 = pneg %p332
      $region46: #{tpu_custom_call.1} parent=5 // pred_check_branch
        %335 = sbr.rel (%p333) target = $region48
      $region47: #{tpu_custom_call.1} parent=5 // pred_region
        // Predicated region
        $region49: #{tpu_custom_call.1} parent=47 // pred_check
          %p336 = pneg %p44
        $region50: #{tpu_custom_call.1} parent=47 // pred_check_branch
          %338 = sbr.rel (%p336) target = $region52
        $region51: #{tpu_custom_call.1} parent=47 // pred_region
          %s339 = sand.u32 %s34, 1
          %s340 = scalar_lea.sflag [#allocation3], %s339
          %s341 = sand.u32 %s34, 1
          %s342 = smul.addr %s341, 512
          %s343 = scalar_lea.vmem [#allocation2], %s342
          %s344 = smul.u32 16, %s24
          %s345 = ssub.s32 25, %s344
          %p346 = scmp.lt.s32.totalorder %s345, 16
          %s347 = scalar_select %p346, %s345, 16
          %s348 = smul.u32 8, %s347
          %s349 = smul.u32 %s348, 4
          %s350 = ssub.s32 512, %s349
          %s351 = sshll.u32 %s350, 4
          %352 = vsyncadd %s340, %s351
          %p353 = scmp.ne.s32.totalorder 0, %s349
          %s354 = smul.addr %s344, 4
          %s355 = smul.addr %s354, 8
          %s356 = scalar_lea.hbm %s0, %s355
          %s357 = smul.u32 32, %s347
          %s358 = sshll.u32 %s356, 4
          %s359 = int_to_ptr.hbm [resolvable:$true] %s358
          %s360 = sshll.u32 %s343, 4
          %s361 = int_to_ptr.vmem [resolvable:$true] %s360
          %s362 = sshll.u32 %s357, 4
          %366 = dma.hbm_to_vmem [thread:$0]  (%p353), %s359, %s362, %s361, %s340, 512, 512, 32
        $region52: #{tpu_custom_call.1} parent=47 // pred_fallthru
          _
      $region48: #{tpu_custom_call.1} parent=5 // pred_fallthru
        _
      %p367 = scmp.le.s32.totalorder 1, %s24
      %p368 = scmp.lt.s32.totalorder %s24, 3
      %p369 = pnand %p367, %p368
      %p370 = pneg %p369
      // Predicated region
      $region53: #{tpu_custom_call.1} parent=5 // pred_check
        _
      $region54: #{tpu_custom_call.1} parent=5 // pred_check_branch
        %372 = sbr.rel (%p369) target = $region56
      $region55: #{tpu_custom_call.1} parent=5 // pred_region
        %s373 = ssub.s32 %s24, 1
        %s374 = sand.u32 %s37, 1
        %s375 = scalar_lea.sflag [#allocation3], %s374
        %s376 = sand.u32 %s37, 1
        %s377 = smul.addr %s376, 512
        %s378 = scalar_lea.vmem [#allocation2], %s377
        // Predicated region
        $region57: #{tpu_custom_call.1} parent=55 // pred_check
          %p379 = pneg %p50
        $region58: #{tpu_custom_call.1} parent=55 // pred_check_branch
          %381 = sbr.rel (%p379) target = $region60
        $region59: #{tpu_custom_call.1} parent=55 // pred_region
          %383 = dma.done %s375, 8192
        $region60: #{tpu_custom_call.1} parent=55 // pred_fallthru
          _
        // Predicated region
        $region61: #{tpu_custom_call.1} parent=55 // pred_check
          %p384 = pneg %p71
        $region62: #{tpu_custom_call.1} parent=55 // pred_check_branch
          %386 = sbr.rel (%p384) target = $region64
        $region63: #{tpu_custom_call.1} parent=55 // pred_region
          %388 = dma.done [#allocation6], 20480
        $region64: #{tpu_custom_call.1} parent=55 // pred_fallthru
          _
        // Predicated region
        $region65: #{tpu_custom_call.1} parent=55 // pred_check
          %p389 = pneg %p113
        $region66: #{tpu_custom_call.1} parent=55 // pred_check_branch
          %391 = sbr.rel (%p389) target = $region68
        $region67: #{tpu_custom_call.1} parent=55 // pred_region
          %393 = dma.done [#allocation6], 64
        $region68: #{tpu_custom_call.1} parent=55 // pred_fallthru
          _
        // Predicated region
        $region69: #{tpu_custom_call.1} parent=55 // pred_check
          %p394 = pneg %p134
        $region70: #{tpu_custom_call.1} parent=55 // pred_check_branch
          %396 = sbr.rel (%p394) target = $region72
        $region71: #{tpu_custom_call.1} parent=55 // pred_region
          %398 = dma.done [#allocation9], 2048
        $region72: #{tpu_custom_call.1} parent=55 // pred_fallthru
          _
        // Predicated region
        $region73: #{tpu_custom_call.1} parent=55 // pred_check
          %p399 = pneg %p155
        $region74: #{tpu_custom_call.1} parent=55 // pred_check_branch
          %401 = sbr.rel (%p399) target = $region76
        $region75: #{tpu_custom_call.1} parent=55 // pred_region
          %403 = dma.done [#allocation9], 64
        $region76: #{tpu_custom_call.1} parent=55 // pred_fallthru
          _
        // Predicated region
        $region77: #{tpu_custom_call.1} parent=55 // pred_check
          %p404 = pneg %p176
        $region78: #{tpu_custom_call.1} parent=55 // pred_check_branch
          %406 = sbr.rel (%p404) target = $region80
        $region79: #{tpu_custom_call.1} parent=55 // pred_region
          %408 = dma.done [#allocation12], 16
        $region80: #{tpu_custom_call.1} parent=55 // pred_fallthru
          _
        %s409 = sand.u32 %s37, 1
        %s410 = scalar_lea.sflag [#allocation3], %s409
        %s411 = sand.u32 %s37, 1
        %s412 = smul.addr %s411, 512
        %s413 = scalar_lea.vmem [#allocation2], %s412
        %p414 = pneg %p50
        %p415 = pneg %p47
        %p416 = pneg %p71
        %p417 = pneg %p68
        %p418 = pneg %p92
        %p419 = pneg %p89
        %p420 = pneg %p113
        %p421 = pneg %p110
        %p422 = pneg %p134
        %p423 = pneg %p131
        %p424 = pneg %p155
        %p425 = pneg %p152
        %p426 = pneg %p176
        %p427 = pneg %p173
        %p428 = pneg %p197
        %p429 = pneg %p194
        %p430 = pneg %p218
        %p431 = pneg %p215
        %p432 = pneg %p244
        %p433 = pneg %p241
        %s434 = sand.u32 %s231, 1
        %s435 = scalar_lea.sflag [#allocation4], %s434
        %s436 = sand.u32 %s231, 1
        %s437 = scalar_lea.vmem [#allocation13], %s436
        %s438 = smul.u32 16, %s29
        %s439 = ssub.s32 25, %s438
        %p440 = scmp.lt.s32.totalorder %s439, 16
        %s441 = scalar_select %p440, %s439, 16
        %s442 = smul.u32 8, %s441
        %s443 = smul.u32 %s442, 4
        %v444 = vld [vmem:[%s378] sm:$0xff]
        %v445 = vld [vmem:[%s378 + $0x8] sm:$0xff]
        %v446 = vld [vmem:[%s378 + $0x10] sm:$0xff]
        %v447 = vld [vmem:[%s378 + $0x18] sm:$0xff]
        %v448 = vld [vmem:[%s378 + $0x20] sm:$0xff]
        %v449 = vld [vmem:[%s378 + $0x28] sm:$0xff]
        %v450 = vld [vmem:[%s378 + $0x30] sm:$0xff]
        %v451 = vld [vmem:[%s378 + $0x38] sm:$0xff]
        %v452 = vld [vmem:[%s378 + $0x40] sm:$0xff]
        %v453 = vld [vmem:[%s378 + $0x48] sm:$0xff]
        %v454 = vld [vmem:[%s378 + $0x50] sm:$0xff]
        %v455 = vld [vmem:[%s378 + $0x58] sm:$0xff]
        %v456 = vld [vmem:[%s378 + $0x60] sm:$0xff]
        %v457 = vld [vmem:[%s378 + $0x68] sm:$0xff]
        %v458 = vld [vmem:[%s378 + $0x70] sm:$0xff]
        %v459 = vld [vmem:[%s378 + $0x78] sm:$0xff]
        %v460 = vld [vmem:[%s378 + $0x80] sm:$0xff]
        %v461 = vld [vmem:[%s378 + $0x88] sm:$0xff]
        %v462 = vld [vmem:[%s378 + $0x90] sm:$0xff]
        %v463 = vld [vmem:[%s378 + $0x98] sm:$0xff]
        %v464 = vld [vmem:[%s378 + $0xa0] sm:$0xff]
        %v465 = vld [vmem:[%s378 + $0xa8] sm:$0xff]
        %v466 = vld [vmem:[%s378 + $0xb0] sm:$0xff]
        %v467 = vld [vmem:[%s378 + $0xb8] sm:$0xff]
        %v468 = vld [vmem:[%s378 + $0xc0] sm:$0xff]
        %v469 = vld [vmem:[%s378 + $0xc8] sm:$0xff]
        %v470 = vld [vmem:[%s378 + $0xd0] sm:$0xff]
        %v471 = vld [vmem:[%s378 + $0xd8] sm:$0xff]
        %v472 = vld [vmem:[%s378 + $0xe0] sm:$0xff]
        %v473 = vld [vmem:[%s378 + $0xe8] sm:$0xff]
        %v474 = vld [vmem:[%s378 + $0xf0] sm:$0xff]
        %v475 = vld [vmem:[%s378 + $0xf8] sm:$0xff]
        %v476 = vld [vmem:[%s378 + $0x100] sm:$0xff]
        %v477 = vld [vmem:[%s378 + $0x108] sm:$0xff]
        %v478 = vld [vmem:[%s378 + $0x110] sm:$0xff]
        %v479 = vld [vmem:[%s378 + $0x118] sm:$0xff]
        %v480 = vld [vmem:[%s378 + $0x120] sm:$0xff]
        %v481 = vld [vmem:[%s378 + $0x128] sm:$0xff]
        %v482 = vld [vmem:[%s378 + $0x130] sm:$0xff]
        %v483 = vld [vmem:[%s378 + $0x138] sm:$0xff]
        %v484 = vld [vmem:[%s378 + $0x140] sm:$0xff]
        %v485 = vld [vmem:[%s378 + $0x148] sm:$0xff]
        %v486 = vld [vmem:[%s378 + $0x150] sm:$0xff]
        %v487 = vld [vmem:[%s378 + $0x158] sm:$0xff]
        %v488 = vld [vmem:[%s378 + $0x160] sm:$0xff]
        %v489 = vld [vmem:[%s378 + $0x168] sm:$0xff]
        %v490 = vld [vmem:[%s378 + $0x170] sm:$0xff]
        %v491 = vld [vmem:[%s378 + $0x178] sm:$0xff]
        %v492 = vld [vmem:[%s378 + $0x180] sm:$0xff]
        %v493 = vld [vmem:[%s378 + $0x188] sm:$0xff]
        %v494 = vld [vmem:[%s378 + $0x190] sm:$0xff]
        %v495 = vld [vmem:[%s378 + $0x198] sm:$0xff]
        %v496 = vld [vmem:[%s378 + $0x1a0] sm:$0xff]
        %v497 = vld [vmem:[%s378 + $0x1a8] sm:$0xff]
        %v498 = vld [vmem:[%s378 + $0x1b0] sm:$0xff]
        %v499 = vld [vmem:[%s378 + $0x1b8] sm:$0xff]
        %v500 = vld [vmem:[%s378 + $0x1c0] sm:$0xff]
        %v501 = vld [vmem:[%s378 + $0x1c8] sm:$0xff]
        %v502 = vld [vmem:[%s378 + $0x1d0] sm:$0xff]
        %v503 = vld [vmem:[%s378 + $0x1d8] sm:$0xff]
        %v504 = vld [vmem:[%s378 + $0x1e0] sm:$0xff]
        %v505 = vld [vmem:[%s378 + $0x1e8] sm:$0xff]
        %v506 = vld [vmem:[%s378 + $0x1f0] sm:$0xff]
        %v507 = vld [vmem:[%s378 + $0x1f8] sm:$0xff]
        %v508 = vpack.c.bf16 %v448, %v444
        %v509 = vpack.c.bf16 %v449, %v445
        %v510 = vpack.c.bf16 %v450, %v446
        %v511 = vpack.c.bf16 %v451, %v447
        %v512 = vpack.c.bf16 %v456, %v452
        %v513 = vpack.c.bf16 %v457, %v453
        %v514 = vpack.c.bf16 %v458, %v454
        %v515 = vpack.c.bf16 %v459, %v455
        %v516 = vpack.c.bf16 %v464, %v460
        %v517 = vpack.c.bf16 %v465, %v461
        %v518 = vpack.c.bf16 %v466, %v462
        %v519 = vpack.c.bf16 %v467, %v463
        %v520 = vpack.c.bf16 %v472, %v468
        %v521 = vpack.c.bf16 %v473, %v469
        %v522 = vpack.c.bf16 %v474, %v470
        %v523 = vpack.c.bf16 %v475, %v471
        %v524 = vpack.c.bf16 %v480, %v476
        %v525 = vpack.c.bf16 %v481, %v477
        %v526 = vpack.c.bf16 %v482, %v478
        %v527 = vpack.c.bf16 %v483, %v479
        %v528 = vpack.c.bf16 %v488, %v484
        %v529 = vpack.c.bf16 %v489, %v485
        %v530 = vpack.c.bf16 %v490, %v486
        %v531 = vpack.c.bf16 %v491, %v487
        %v532 = vpack.c.bf16 %v496, %v492
        %v533 = vpack.c.bf16 %v497, %v493
        %v534 = vpack.c.bf16 %v498, %v494
        %v535 = vpack.c.bf16 %v499, %v495
        %v536 = vpack.c.bf16 %v504, %v500
        %v537 = vpack.c.bf16 %v505, %v501
        %v538 = vpack.c.bf16 %v506, %v502
        %v539 = vpack.c.bf16 %v507, %v503
        %v540 = vld [vmem:[#allocation5] sm:$0xff]
        %v541 = vld [vmem:[#allocation5 + $0x8] sm:$0xff]
        %v542 = vld [vmem:[#allocation5 + $0x10] sm:$0xf]
        %v543 = vld [vmem:[#allocation5 + $0x14] sm:$0xff]
        %v544 = vld [vmem:[#allocation5 + $0x1c] sm:$0xff]
        %v545 = vld [vmem:[#allocation5 + $0x24] sm:$0xf]
        %v546 = vld [vmem:[#allocation5 + $0x28] sm:$0xff]
        %v547 = vld [vmem:[#allocation5 + $0x30] sm:$0xff]
        %v548 = vld [vmem:[#allocation5 + $0x38] sm:$0xf]
        %v549 = vld [vmem:[#allocation5 + $0x3c] sm:$0xff]
        %v550 = vld [vmem:[#allocation5 + $0x44] sm:$0xff]
        %v551 = vld [vmem:[#allocation5 + $0x4c] sm:$0xf]
        %v552 = vld [vmem:[#allocation5 + $0x50] sm:$0xff]
        %v553 = vld [vmem:[#allocation5 + $0x58] sm:$0xff]
        %v554 = vld [vmem:[#allocation5 + $0x60] sm:$0xf]
        %v555 = vld [vmem:[#allocation5 + $0x64] sm:$0xff]
        %v556 = vld [vmem:[#allocation5 + $0x6c] sm:$0xff]
        %v557 = vld [vmem:[#allocation5 + $0x74] sm:$0xf]
        %v558 = vld [vmem:[#allocation5 + $0x78] sm:$0xff]
        %v559 = vld [vmem:[#allocation5 + $0x80] sm:$0xff]
        %v560 = vld [vmem:[#allocation5 + $0x88] sm:$0xf]
        %v561 = vld [vmem:[#allocation5 + $0x8c] sm:$0xff]
        %v562 = vld [vmem:[#allocation5 + $0x94] sm:$0xff]
        %v563 = vld [vmem:[#allocation5 + $0x9c] sm:$0xf]
        %v564 = vld [vmem:[#allocation5 + $0xa0] sm:$0xff]
        %v565 = vld [vmem:[#allocation5 + $0xa8] sm:$0xff]
        %v566 = vld [vmem:[#allocation5 + $0xb0] sm:$0xf]
        %v567 = vld [vmem:[#allocation5 + $0xb4] sm:$0xff]
        %v568 = vld [vmem:[#allocation5 + $0xbc] sm:$0xff]
        %v569 = vld [vmem:[#allocation5 + $0xc4] sm:$0xf]
        %v570 = vld [vmem:[#allocation5 + $0xc8] sm:$0xff]
        %v571 = vld [vmem:[#allocation5 + $0xd0] sm:$0xff]
        %v572 = vld [vmem:[#allocation5 + $0xd8] sm:$0xf]
        %v573 = vld [vmem:[#allocation5 + $0xdc] sm:$0xff]
        %v574 = vld [vmem:[#allocation5 + $0xe4] sm:$0xff]
        %v575 = vld [vmem:[#allocation5 + $0xec] sm:$0xf]
        %v576 = vld [vmem:[#allocation5 + $0xf0] sm:$0xff]
        %v577 = vld [vmem:[#allocation5 + $0xf8] sm:$0xff]
        %v578 = vld [vmem:[#allocation5 + $0x100] sm:$0xf]
        %v579 = vld [vmem:[#allocation5 + $0x104] sm:$0xff]
        %v580 = vld [vmem:[#allocation5 + $0x10c] sm:$0xff]
        %v581 = vld [vmem:[#allocation5 + $0x114] sm:$0xf]
        %v582 = vld [vmem:[#allocation5 + $0x118] sm:$0xff]
        %v583 = vld [vmem:[#allocation5 + $0x120] sm:$0xff]
        %v584 = vld [vmem:[#allocation5 + $0x128] sm:$0xf]
        %v585 = vld [vmem:[#allocation5 + $0x12c] sm:$0xff]
        %v586 = vld [vmem:[#allocation5 + $0x134] sm:$0xff]
        %v587 = vld [vmem:[#allocation5 + $0x13c] sm:$0xf]
        %v588 = vld [vmem:[#allocation5 + $0x140] sm:$0xff]
        %v589 = vld [vmem:[#allocation5 + $0x148] sm:$0xff]
        %v590 = vld [vmem:[#allocation5 + $0x150] sm:$0xf]
        %v591 = vld [vmem:[#allocation5 + $0x154] sm:$0xff]
        %v592 = vld [vmem:[#allocation5 + $0x15c] sm:$0xff]
        %v593 = vld [vmem:[#allocation5 + $0x164] sm:$0xf]
        %v594 = vld [vmem:[#allocation5 + $0x168] sm:$0xff]
        %v595 = vld [vmem:[#allocation5 + $0x170] sm:$0xff]
        %v596 = vld [vmem:[#allocation5 + $0x178] sm:$0xf]
        %v597 = vld [vmem:[#allocation5 + $0x17c] sm:$0xff]
        %v598 = vld [vmem:[#allocation5 + $0x184] sm:$0xff]
        %v599 = vld [vmem:[#allocation5 + $0x18c] sm:$0xf]
        %v600 = vld [vmem:[#allocation5 + $0x190] sm:$0xff]
        %v601 = vld [vmem:[#allocation5 + $0x198] sm:$0xff]
        %v602 = vld [vmem:[#allocation5 + $0x1a0] sm:$0xf]
        %v603 = vld [vmem:[#allocation5 + $0x1a4] sm:$0xff]
        %v604 = vld [vmem:[#allocation5 + $0x1ac] sm:$0xff]
        %v605 = vld [vmem:[#allocation5 + $0x1b4] sm:$0xf]
        %v606 = vld [vmem:[#allocation5 + $0x1b8] sm:$0xff]
        %v607 = vld [vmem:[#allocation5 + $0x1c0] sm:$0xff]
        %v608 = vld [vmem:[#allocation5 + $0x1c8] sm:$0xf]
        %v609 = vld [vmem:[#allocation5 + $0x1cc] sm:$0xff]
        %v610 = vld [vmem:[#allocation5 + $0x1d4] sm:$0xff]
        %v611 = vld [vmem:[#allocation5 + $0x1dc] sm:$0xf]
        %v612 = vld [vmem:[#allocation5 + $0x1e0] sm:$0xff]
        %v613 = vld [vmem:[#allocation5 + $0x1e8] sm:$0xff]
        %v614 = vld [vmem:[#allocation5 + $0x1f0] sm:$0xf]
        %v615 = vld [vmem:[#allocation5 + $0x1f4] sm:$0xff]
        %v616 = vld [vmem:[#allocation5 + $0x1fc] sm:$0xff]
        %v617 = vld [vmem:[#allocation5 + $0x204] sm:$0xf]
        %v618 = vld [vmem:[#allocation5 + $0x208] sm:$0xff]
        %v619 = vld [vmem:[#allocation5 + $0x210] sm:$0xff]
        %v620 = vld [vmem:[#allocation5 + $0x218] sm:$0xf]
        %v621 = vld [vmem:[#allocation5 + $0x21c] sm:$0xff]
        %v622 = vld [vmem:[#allocation5 + $0x224] sm:$0xff]
        %v623 = vld [vmem:[#allocation5 + $0x22c] sm:$0xf]
        %v624 = vld [vmem:[#allocation5 + $0x230] sm:$0xff]
        %v625 = vld [vmem:[#allocation5 + $0x238] sm:$0xff]
        %v626 = vld [vmem:[#allocation5 + $0x240] sm:$0xf]
        %v627 = vld [vmem:[#allocation5 + $0x244] sm:$0xff]
        %v628 = vld [vmem:[#allocation5 + $0x24c] sm:$0xff]
        %v629 = vld [vmem:[#allocation5 + $0x254] sm:$0xf]
        %v630 = vld [vmem:[#allocation5 + $0x258] sm:$0xff]
        %v631 = vld [vmem:[#allocation5 + $0x260] sm:$0xff]
        %v632 = vld [vmem:[#allocation5 + $0x268] sm:$0xf]
        %v633 = vld [vmem:[#allocation5 + $0x26c] sm:$0xff]
        %v634 = vld [vmem:[#allocation5 + $0x274] sm:$0xff]
        %v635 = vld [vmem:[#allocation5 + $0x27c] sm:$0xf]
        %v636 = vld [vmem:[#allocation5 + $0x280] sm:$0xff]
        %v637 = vld [vmem:[#allocation5 + $0x288] sm:$0xff]
        %v638 = vld [vmem:[#allocation5 + $0x290] sm:$0xf]
        %v639 = vld [vmem:[#allocation5 + $0x294] sm:$0xff]
        %v640 = vld [vmem:[#allocation5 + $0x29c] sm:$0xff]
        %v641 = vld [vmem:[#allocation5 + $0x2a4] sm:$0xf]
        %v642 = vld [vmem:[#allocation5 + $0x2a8] sm:$0xff]
        %v643 = vld [vmem:[#allocation5 + $0x2b0] sm:$0xff]
        %v644 = vld [vmem:[#allocation5 + $0x2b8] sm:$0xf]
        %v645 = vld [vmem:[#allocation5 + $0x2bc] sm:$0xff]
        %v646 = vld [vmem:[#allocation5 + $0x2c4] sm:$0xff]
        %v647 = vld [vmem:[#allocation5 + $0x2cc] sm:$0xf]
        %v648 = vld [vmem:[#allocation5 + $0x2d0] sm:$0xff]
        %v649 = vld [vmem:[#allocation5 + $0x2d8] sm:$0xff]
        %v650 = vld [vmem:[#allocation5 + $0x2e0] sm:$0xf]
        %v651 = vld [vmem:[#allocation5 + $0x2e4] sm:$0xff]
        %v652 = vld [vmem:[#allocation5 + $0x2ec] sm:$0xff]
        %v653 = vld [vmem:[#allocation5 + $0x2f4] sm:$0xf]
        %v654 = vld [vmem:[#allocation5 + $0x2f8] sm:$0xff]
        %v655 = vld [vmem:[#allocation5 + $0x300] sm:$0xff]
        %v656 = vld [vmem:[#allocation5 + $0x308] sm:$0xf]
        %v657 = vld [vmem:[#allocation5 + $0x30c] sm:$0xff]
        %v658 = vld [vmem:[#allocation5 + $0x314] sm:$0xff]
        %v659 = vld [vmem:[#allocation5 + $0x31c] sm:$0xf]
        %v660 = vld [vmem:[#allocation5 + $0x320] sm:$0xff]
        %v661 = vld [vmem:[#allocation5 + $0x328] sm:$0xff]
        %v662 = vld [vmem:[#allocation5 + $0x330] sm:$0xf]
        %v663 = vld [vmem:[#allocation5 + $0x334] sm:$0xff]
        %v664 = vld [vmem:[#allocation5 + $0x33c] sm:$0xff]
        %v665 = vld [vmem:[#allocation5 + $0x344] sm:$0xf]
        %v666 = vld [vmem:[#allocation5 + $0x348] sm:$0xff]
        %v667 = vld [vmem:[#allocation5 + $0x350] sm:$0xff]
        %v668 = vld [vmem:[#allocation5 + $0x358] sm:$0xf]
        %v669 = vld [vmem:[#allocation5 + $0x35c] sm:$0xff]
        %v670 = vld [vmem:[#allocation5 + $0x364] sm:$0xff]
        %v671 = vld [vmem:[#allocation5 + $0x36c] sm:$0xf]
        %v672 = vld [vmem:[#allocation5 + $0x370] sm:$0xff]
        %v673 = vld [vmem:[#allocation5 + $0x378] sm:$0xff]
        %v674 = vld [vmem:[#allocation5 + $0x380] sm:$0xf]
        %v675 = vld [vmem:[#allocation5 + $0x384] sm:$0xff]
        %v676 = vld [vmem:[#allocation5 + $0x38c] sm:$0xff]
        %v677 = vld [vmem:[#allocation5 + $0x394] sm:$0xf]
        %v678 = vld [vmem:[#allocation5 + $0x398] sm:$0xff]
        %v679 = vld [vmem:[#allocation5 + $0x3a0] sm:$0xff]
        %v680 = vld [vmem:[#allocation5 + $0x3a8] sm:$0xf]
        %v681 = vld [vmem:[#allocation5 + $0x3ac] sm:$0xff]
        %v682 = vld [vmem:[#allocation5 + $0x3b4] sm:$0xff]
        %v683 = vld [vmem:[#allocation5 + $0x3bc] sm:$0xf]
        %v684 = vld [vmem:[#allocation5 + $0x3c0] sm:$0xff]
        %v685 = vld [vmem:[#allocation5 + $0x3c8] sm:$0xff]
        %v686 = vld [vmem:[#allocation5 + $0x3d0] sm:$0xf]
        %v687 = vld [vmem:[#allocation5 + $0x3d4] sm:$0xff]
        %v688 = vld [vmem:[#allocation5 + $0x3dc] sm:$0xff]
        %v689 = vld [vmem:[#allocation5 + $0x3e4] sm:$0xf]
        %v690 = vld [vmem:[#allocation5 + $0x3e8] sm:$0xff]
        %v691 = vld [vmem:[#allocation5 + $0x3f0] sm:$0xff]
        %v692 = vld [vmem:[#allocation5 + $0x3f8] sm:$0xf]
        %v693 = vld [vmem:[#allocation5 + $0x3fc] sm:$0xff]
        %v694 = vld [vmem:[#allocation5 + $0x404] sm:$0xff]
        %v695 = vld [vmem:[#allocation5 + $0x40c] sm:$0xf]
        %v696 = vld [vmem:[#allocation5 + $0x410] sm:$0xff]
        %v697 = vld [vmem:[#allocation5 + $0x418] sm:$0xff]
        %v698 = vld [vmem:[#allocation5 + $0x420] sm:$0xf]
        %v699 = vld [vmem:[#allocation5 + $0x424] sm:$0xff]
        %v700 = vld [vmem:[#allocation5 + $0x42c] sm:$0xff]
        %v701 = vld [vmem:[#allocation5 + $0x434] sm:$0xf]
        %v702 = vld [vmem:[#allocation5 + $0x438] sm:$0xff]
        %v703 = vld [vmem:[#allocation5 + $0x440] sm:$0xff]
        %v704 = vld [vmem:[#allocation5 + $0x448] sm:$0xf]
        %v705 = vld [vmem:[#allocation5 + $0x44c] sm:$0xff]
        %v706 = vld [vmem:[#allocation5 + $0x454] sm:$0xff]
        %v707 = vld [vmem:[#allocation5 + $0x45c] sm:$0xf]
        %v708 = vld [vmem:[#allocation5 + $0x460] sm:$0xff]
        %v709 = vld [vmem:[#allocation5 + $0x468] sm:$0xff]
        %v710 = vld [vmem:[#allocation5 + $0x470] sm:$0xf]
        %v711 = vld [vmem:[#allocation5 + $0x474] sm:$0xff]
        %v712 = vld [vmem:[#allocation5 + $0x47c] sm:$0xff]
        %v713 = vld [vmem:[#allocation5 + $0x484] sm:$0xf]
        %v714 = vld [vmem:[#allocation5 + $0x488] sm:$0xff]
        %v715 = vld [vmem:[#allocation5 + $0x490] sm:$0xff]
        %v716 = vld [vmem:[#allocation5 + $0x498] sm:$0xf]
        %v717 = vld [vmem:[#allocation5 + $0x49c] sm:$0xff]
        %v718 = vld [vmem:[#allocation5 + $0x4a4] sm:$0xff]
        %v719 = vld [vmem:[#allocation5 + $0x4ac] sm:$0xf]
        %v720 = vld [vmem:[#allocation5 + $0x4b0] sm:$0xff]
        %v721 = vld [vmem:[#allocation5 + $0x4b8] sm:$0xff]
        %v722 = vld [vmem:[#allocation5 + $0x4c0] sm:$0xf]
        %v723 = vld [vmem:[#allocation5 + $0x4c4] sm:$0xff]
        %v724 = vld [vmem:[#allocation5 + $0x4cc] sm:$0xff]
        %v725 = vld [vmem:[#allocation5 + $0x4d4] sm:$0xf]
        %v726 = vld [vmem:[#allocation5 + $0x4d8] sm:$0xff]
        %v727 = vld [vmem:[#allocation5 + $0x4e0] sm:$0xff]
        %v728 = vld [vmem:[#allocation5 + $0x4e8] sm:$0xf]
        %v729 = vld [vmem:[#allocation5 + $0x4ec] sm:$0xff]
        %v730 = vld [vmem:[#allocation5 + $0x4f4] sm:$0xff]
        %v731 = vld [vmem:[#allocation5 + $0x4fc] sm:$0xf]
        %v732 = vld [vmem:[%s2] sm:$0x1f]
        %v734 = vperm.slane %v732, 0
        %v735 = vperm.slane %v732, 1
        %v736 = vperm.slane %v732, 2
        %v737 = vperm.slane %v732, 3
        %v738 = vperm.slane %v732, 4
        %v936 = vunpack.c.l.b16 %v540
        %v937 = vunpack.c.h.b16 %v540
        %v938 = vunpack.c.l.b16 %v541
        %v939 = vunpack.c.h.b16 %v541
        %v940 = vunpack.c.l.b16 %v542
        %v941 = vunpack.c.l.b16 %v543
        %v942 = vunpack.c.h.b16 %v543
        %v943 = vunpack.c.l.b16 %v544
        %v944 = vunpack.c.h.b16 %v544
        %v945 = vunpack.c.l.b16 %v545
        %v946 = vunpack.c.l.b16 %v546
        %v947 = vunpack.c.h.b16 %v546
        %v948 = vunpack.c.l.b16 %v547
        %v949 = vunpack.c.h.b16 %v547
        %v950 = vunpack.c.l.b16 %v548
        %v951 = vunpack.c.l.b16 %v549
        %v952 = vunpack.c.h.b16 %v549
        %v953 = vunpack.c.l.b16 %v550
        %v954 = vunpack.c.h.b16 %v550
        %v955 = vunpack.c.l.b16 %v551
        %v956 = vunpack.c.l.b16 %v552
        %v957 = vunpack.c.h.b16 %v552
        %v958 = vunpack.c.l.b16 %v553
        %v959 = vunpack.c.h.b16 %v553
        %v960 = vunpack.c.l.b16 %v554
        %v961 = vunpack.c.l.b16 %v555
        %v962 = vunpack.c.h.b16 %v555
        %v963 = vunpack.c.l.b16 %v556
        %v964 = vunpack.c.h.b16 %v556
        %v965 = vunpack.c.l.b16 %v557
        %v966 = vunpack.c.l.b16 %v558
        %v967 = vunpack.c.h.b16 %v558
        %v968 = vunpack.c.l.b16 %v559
        %v969 = vunpack.c.h.b16 %v559
        %v970 = vunpack.c.l.b16 %v560
        %v971 = vunpack.c.l.b16 %v561
        %v972 = vunpack.c.h.b16 %v561
        %v973 = vunpack.c.l.b16 %v562
        %v974 = vunpack.c.h.b16 %v562
        %v975 = vunpack.c.l.b16 %v563
        %v976 = vunpack.c.l.b16 %v564
        %v977 = vunpack.c.h.b16 %v564
        %v978 = vunpack.c.l.b16 %v565
        %v979 = vunpack.c.h.b16 %v565
        %v980 = vunpack.c.l.b16 %v566
        %v981 = vunpack.c.l.b16 %v567
        %v982 = vunpack.c.h.b16 %v567
        %v983 = vunpack.c.l.b16 %v568
        %v984 = vunpack.c.h.b16 %v568
        %v985 = vunpack.c.l.b16 %v569
        %v986 = vunpack.c.l.b16 %v570
        %v987 = vunpack.c.h.b16 %v570
        %v988 = vunpack.c.l.b16 %v571
        %v989 = vunpack.c.h.b16 %v571
        %v990 = vunpack.c.l.b16 %v572
        %v991 = vunpack.c.l.b16 %v573
        %v992 = vunpack.c.h.b16 %v573
        %v993 = vunpack.c.l.b16 %v574
        %v994 = vunpack.c.h.b16 %v574
        %v995 = vunpack.c.l.b16 %v575
        %v996 = vunpack.c.l.b16 %v576
        %v997 = vunpack.c.h.b16 %v576
        %v998 = vunpack.c.l.b16 %v577
        %v999 = vunpack.c.h.b16 %v577
        %v1000 = vunpack.c.l.b16 %v578
        %v1001 = vunpack.c.l.b16 %v579
        %v1002 = vunpack.c.h.b16 %v579
        %v1003 = vunpack.c.l.b16 %v580
        %v1004 = vunpack.c.h.b16 %v580
        %v1005 = vunpack.c.l.b16 %v581
        %v1006 = vunpack.c.l.b16 %v582
        %v1007 = vunpack.c.h.b16 %v582
        %v1008 = vunpack.c.l.b16 %v583
        %v1009 = vunpack.c.h.b16 %v583
        %v1010 = vunpack.c.l.b16 %v584
        %v1011 = vunpack.c.l.b16 %v585
        %v1012 = vunpack.c.h.b16 %v585
        %v1013 = vunpack.c.l.b16 %v586
        %v1014 = vunpack.c.h.b16 %v586
        %v1015 = vunpack.c.l.b16 %v587
        %v1016 = vunpack.c.l.b16 %v588
        %v1017 = vunpack.c.h.b16 %v588
        %v1018 = vunpack.c.l.b16 %v589
        %v1019 = vunpack.c.h.b16 %v589
        %v1020 = vunpack.c.l.b16 %v590
        %v1021 = vunpack.c.l.b16 %v591
        %v1022 = vunpack.c.h.b16 %v591
        %v1023 = vunpack.c.l.b16 %v592
        %v1024 = vunpack.c.h.b16 %v592
        %v1025 = vunpack.c.l.b16 %v593
        %v1026 = vunpack.c.l.b16 %v594
        %v1027 = vunpack.c.h.b16 %v594
        %v1028 = vunpack.c.l.b16 %v595
        %v1029 = vunpack.c.h.b16 %v595
        %v1030 = vunpack.c.l.b16 %v596
        %v1031 = vunpack.c.l.b16 %v597
        %v1032 = vunpack.c.h.b16 %v597
        %v1033 = vunpack.c.l.b16 %v598
        %v1034 = vunpack.c.h.b16 %v598
        %v1035 = vunpack.c.l.b16 %v599
        %v1036 = vunpack.c.l.b16 %v600
        %v1037 = vunpack.c.h.b16 %v600
        %v1038 = vunpack.c.l.b16 %v601
        %v1039 = vunpack.c.h.b16 %v601
        %v1040 = vunpack.c.l.b16 %v602
        %v1041 = vunpack.c.l.b16 %v603
        %v1042 = vunpack.c.h.b16 %v603
        %v1043 = vunpack.c.l.b16 %v604
        %v1044 = vunpack.c.h.b16 %v604
        %v1045 = vunpack.c.l.b16 %v605
        %v1046 = vunpack.c.l.b16 %v606
        %v1047 = vunpack.c.h.b16 %v606
        %v1048 = vunpack.c.l.b16 %v607
        %v1049 = vunpack.c.h.b16 %v607
        %v1050 = vunpack.c.l.b16 %v608
        %v1051 = vunpack.c.l.b16 %v609
        %v1052 = vunpack.c.h.b16 %v609
        %v1053 = vunpack.c.l.b16 %v610
        %v1054 = vunpack.c.h.b16 %v610
        %v1055 = vunpack.c.l.b16 %v611
        %v1056 = vunpack.c.l.b16 %v612
        %v1057 = vunpack.c.h.b16 %v612
        %v1058 = vunpack.c.l.b16 %v613
        %v1059 = vunpack.c.h.b16 %v613
        %v1060 = vunpack.c.l.b16 %v614
        %v1061 = vunpack.c.l.b16 %v615
        %v1062 = vunpack.c.h.b16 %v615
        %v1063 = vunpack.c.l.b16 %v616
        %v1064 = vunpack.c.h.b16 %v616
        %v1065 = vunpack.c.l.b16 %v617
        %v1066 = vunpack.c.l.b16 %v618
        %v1067 = vunpack.c.h.b16 %v618
        %v1068 = vunpack.c.l.b16 %v619
        %v1069 = vunpack.c.h.b16 %v619
        %v1070 = vunpack.c.l.b16 %v620
        %v1071 = vunpack.c.l.b16 %v621
        %v1072 = vunpack.c.h.b16 %v621
        %v1073 = vunpack.c.l.b16 %v622
        %v1074 = vunpack.c.h.b16 %v622
        %v1075 = vunpack.c.l.b16 %v623
        %v1076 = vunpack.c.l.b16 %v624
        %v1077 = vunpack.c.h.b16 %v624
        %v1078 = vunpack.c.l.b16 %v625
        %v1079 = vunpack.c.h.b16 %v625
        %v1080 = vunpack.c.l.b16 %v626
        %v1081 = vunpack.c.l.b16 %v627
        %v1082 = vunpack.c.h.b16 %v627
        %v1083 = vunpack.c.l.b16 %v628
        %v1084 = vunpack.c.h.b16 %v628
        %v1085 = vunpack.c.l.b16 %v629
        %v1086 = vunpack.c.l.b16 %v630
        %v1087 = vunpack.c.h.b16 %v630
        %v1088 = vunpack.c.l.b16 %v631
        %v1089 = vunpack.c.h.b16 %v631
        %v1090 = vunpack.c.l.b16 %v632
        %v1091 = vunpack.c.l.b16 %v633
        %v1092 = vunpack.c.h.b16 %v633
        %v1093 = vunpack.c.l.b16 %v634
        %v1094 = vunpack.c.h.b16 %v634
        %v1095 = vunpack.c.l.b16 %v635
        %v1096 = vunpack.c.l.b16 %v636
        %v1097 = vunpack.c.h.b16 %v636
        %v1098 = vunpack.c.l.b16 %v637
        %v1099 = vunpack.c.h.b16 %v637
        %v1100 = vunpack.c.l.b16 %v638
        %v1101 = vunpack.c.l.b16 %v639
        %v1102 = vunpack.c.h.b16 %v639
        %v1103 = vunpack.c.l.b16 %v640
        %v1104 = vunpack.c.h.b16 %v640
        %v1105 = vunpack.c.l.b16 %v641
        %v1106 = vunpack.c.l.b16 %v642
        %v1107 = vunpack.c.h.b16 %v642
        %v1108 = vunpack.c.l.b16 %v643
        %v1109 = vunpack.c.h.b16 %v643
        %v1110 = vunpack.c.l.b16 %v644
        %v1111 = vunpack.c.l.b16 %v645
        %v1112 = vunpack.c.h.b16 %v645
        %v1113 = vunpack.c.l.b16 %v646
        %v1114 = vunpack.c.h.b16 %v646
        %v1115 = vunpack.c.l.b16 %v647
        %v1116 = vunpack.c.l.b16 %v648
        %v1117 = vunpack.c.h.b16 %v648
        %v1118 = vunpack.c.l.b16 %v649
        %v1119 = vunpack.c.h.b16 %v649
        %v1120 = vunpack.c.l.b16 %v650
        %v1121 = vunpack.c.l.b16 %v651
        %v1122 = vunpack.c.h.b16 %v651
        %v1123 = vunpack.c.l.b16 %v652
        %v1124 = vunpack.c.h.b16 %v652
        %v1125 = vunpack.c.l.b16 %v653
        %v1126 = vunpack.c.l.b16 %v654
        %v1127 = vunpack.c.h.b16 %v654
        %v1128 = vunpack.c.l.b16 %v655
        %v1129 = vunpack.c.h.b16 %v655
        %v1130 = vunpack.c.l.b16 %v656
        %v1131 = vunpack.c.l.b16 %v657
        %v1132 = vunpack.c.h.b16 %v657
        %v1133 = vunpack.c.l.b16 %v658
        %v1134 = vunpack.c.h.b16 %v658
        %v1135 = vunpack.c.l.b16 %v659
        %v1136 = vunpack.c.l.b16 %v660
        %v1137 = vunpack.c.h.b16 %v660
        %v1138 = vunpack.c.l.b16 %v661
        %v1139 = vunpack.c.h.b16 %v661
        %v1140 = vunpack.c.l.b16 %v662
        %v1141 = vunpack.c.l.b16 %v663
        %v1142 = vunpack.c.h.b16 %v663
        %v1143 = vunpack.c.l.b16 %v664
        %v1144 = vunpack.c.h.b16 %v664
        %v1145 = vunpack.c.l.b16 %v665
        %v1146 = vunpack.c.l.b16 %v666
        %v1147 = vunpack.c.h.b16 %v666
        %v1148 = vunpack.c.l.b16 %v667
        %v1149 = vunpack.c.h.b16 %v667
        %v1150 = vunpack.c.l.b16 %v668
        %v1151 = vunpack.c.l.b16 %v669
        %v1152 = vunpack.c.h.b16 %v669
        %v1153 = vunpack.c.l.b16 %v670
        %v1154 = vunpack.c.h.b16 %v670
        %v1155 = vunpack.c.l.b16 %v671
        %v1156 = vunpack.c.l.b16 %v672
        %v1157 = vunpack.c.h.b16 %v672
        %v1158 = vunpack.c.l.b16 %v673
        %v1159 = vunpack.c.h.b16 %v673
        %v1160 = vunpack.c.l.b16 %v674
        %v1161 = vunpack.c.l.b16 %v675
        %v1162 = vunpack.c.h.b16 %v675
        %v1163 = vunpack.c.l.b16 %v676
        %v1164 = vunpack.c.h.b16 %v676
        %v1165 = vunpack.c.l.b16 %v677
        %v1166 = vunpack.c.l.b16 %v678
        %v1167 = vunpack.c.h.b16 %v678
        %v1168 = vunpack.c.l.b16 %v679
        %v1169 = vunpack.c.h.b16 %v679
        %v1170 = vunpack.c.l.b16 %v680
        %v1171 = vunpack.c.l.b16 %v681
        %v1172 = vunpack.c.h.b16 %v681
        %v1173 = vunpack.c.l.b16 %v682
        %v1174 = vunpack.c.h.b16 %v682
        %v1175 = vunpack.c.l.b16 %v683
        %v1176 = vunpack.c.l.b16 %v684
        %v1177 = vunpack.c.h.b16 %v684
        %v1178 = vunpack.c.l.b16 %v685
        %v1179 = vunpack.c.h.b16 %v685
        %v1180 = vunpack.c.l.b16 %v686
        %v1181 = vunpack.c.l.b16 %v687
        %v1182 = vunpack.c.h.b16 %v687
        %v1183 = vunpack.c.l.b16 %v688
        %v1184 = vunpack.c.h.b16 %v688
        %v1185 = vunpack.c.l.b16 %v689
        %v1186 = vunpack.c.l.b16 %v690
        %v1187 = vunpack.c.h.b16 %v690
        %v1188 = vunpack.c.l.b16 %v691
        %v1189 = vunpack.c.h.b16 %v691
        %v1190 = vunpack.c.l.b16 %v692
        %v1191 = vunpack.c.l.b16 %v693
        %v1192 = vunpack.c.h.b16 %v693
        %v1193 = vunpack.c.l.b16 %v694
        %v1194 = vunpack.c.h.b16 %v694
        %v1195 = vunpack.c.l.b16 %v695
        %v1196 = vunpack.c.l.b16 %v696
        %v1197 = vunpack.c.h.b16 %v696
        %v1198 = vunpack.c.l.b16 %v697
        %v1199 = vunpack.c.h.b16 %v697
        %v1200 = vunpack.c.l.b16 %v698
        %v1201 = vunpack.c.l.b16 %v699
        %v1202 = vunpack.c.h.b16 %v699
        %v1203 = vunpack.c.l.b16 %v700
        %v1204 = vunpack.c.h.b16 %v700
        %v1205 = vunpack.c.l.b16 %v701
        %v1206 = vunpack.c.l.b16 %v702
        %v1207 = vunpack.c.h.b16 %v702
        %v1208 = vunpack.c.l.b16 %v703
        %v1209 = vunpack.c.h.b16 %v703
        %v1210 = vunpack.c.l.b16 %v704
        %v1211 = vunpack.c.l.b16 %v705
        %v1212 = vunpack.c.h.b16 %v705
        %v1213 = vunpack.c.l.b16 %v706
        %v1214 = vunpack.c.h.b16 %v706
        %v1215 = vunpack.c.l.b16 %v707
        %v1216 = vunpack.c.l.b16 %v708
        %v1217 = vunpack.c.h.b16 %v708
        %v1218 = vunpack.c.l.b16 %v709
        %v1219 = vunpack.c.h.b16 %v709
        %v1220 = vunpack.c.l.b16 %v710
        %v1221 = vunpack.c.l.b16 %v711
        %v1222 = vunpack.c.h.b16 %v711
        %v1223 = vunpack.c.l.b16 %v712
        %v1224 = vunpack.c.h.b16 %v712
        %v1225 = vunpack.c.l.b16 %v713
        %v1226 = vunpack.c.l.b16 %v714
        %v1227 = vunpack.c.h.b16 %v714
        %v1228 = vunpack.c.l.b16 %v715
        %v1229 = vunpack.c.h.b16 %v715
        %v1230 = vunpack.c.l.b16 %v716
        %v1231 = vunpack.c.l.b16 %v717
        %v1232 = vunpack.c.h.b16 %v717
        %v1233 = vunpack.c.l.b16 %v718
        %v1234 = vunpack.c.h.b16 %v718
        %v1235 = vunpack.c.l.b16 %v719
        %v1236 = vunpack.c.l.b16 %v720
        %v1237 = vunpack.c.h.b16 %v720
        %v1238 = vunpack.c.l.b16 %v721
        %v1239 = vunpack.c.h.b16 %v721
        %v1240 = vunpack.c.l.b16 %v722
        %v1241 = vunpack.c.l.b16 %v723
        %v1242 = vunpack.c.h.b16 %v723
        %v1243 = vunpack.c.l.b16 %v724
        %v1244 = vunpack.c.h.b16 %v724
        %v1245 = vunpack.c.l.b16 %v725
        %v1246 = vunpack.c.l.b16 %v726
        %v1247 = vunpack.c.h.b16 %v726
        %v1248 = vunpack.c.l.b16 %v727
        %v1249 = vunpack.c.h.b16 %v727
        %v1250 = vunpack.c.l.b16 %v728
        %v1251 = vunpack.c.l.b16 %v729
        %v1252 = vunpack.c.h.b16 %v729
        %v1253 = vunpack.c.l.b16 %v730
        %v1254 = vunpack.c.h.b16 %v730
        %v1255 = vunpack.c.l.b16 %v731
        %v1256 = vpack.c.b16 %v941, %v936
        %v1257 = vpack.c.b16 %v942, %v937
        %v1258 = vpack.c.b16 %v943, %v938
        %v1259 = vpack.c.b16 %v944, %v939
        %v1260 = vpack.c.b16 %v945, %v940
        %v1261 = vpack.c.b16 %v951, %v946
        %v1262 = vpack.c.b16 %v952, %v947
        %v1263 = vpack.c.b16 %v953, %v948
        %v1264 = vpack.c.b16 %v954, %v949
        %v1265 = vpack.c.b16 %v955, %v950
        %v1266 = vpack.c.b16 %v961, %v956
        %v1267 = vpack.c.b16 %v962, %v957
        %v1268 = vpack.c.b16 %v963, %v958
        %v1269 = vpack.c.b16 %v964, %v959
        %v1270 = vpack.c.b16 %v965, %v960
        %v1271 = vpack.c.b16 %v971, %v966
        %v1272 = vpack.c.b16 %v972, %v967
        %v1273 = vpack.c.b16 %v973, %v968
        %v1274 = vpack.c.b16 %v974, %v969
        %v1275 = vpack.c.b16 %v975, %v970
        %v1276 = vpack.c.b16 %v981, %v976
        %v1277 = vpack.c.b16 %v982, %v977
        %v1278 = vpack.c.b16 %v983, %v978
        %v1279 = vpack.c.b16 %v984, %v979
        %v1280 = vpack.c.b16 %v985, %v980
        %v1281 = vpack.c.b16 %v991, %v986
        %v1282 = vpack.c.b16 %v992, %v987
        %v1283 = vpack.c.b16 %v993, %v988
        %v1284 = vpack.c.b16 %v994, %v989
        %v1285 = vpack.c.b16 %v995, %v990
        %v1286 = vpack.c.b16 %v1001, %v996
        %v1287 = vpack.c.b16 %v1002, %v997
        %v1288 = vpack.c.b16 %v1003, %v998
        %v1289 = vpack.c.b16 %v1004, %v999
        %v1290 = vpack.c.b16 %v1005, %v1000
        %v1291 = vpack.c.b16 %v1011, %v1006
        %v1292 = vpack.c.b16 %v1012, %v1007
        %v1293 = vpack.c.b16 %v1013, %v1008
        %v1294 = vpack.c.b16 %v1014, %v1009
        %v1295 = vpack.c.b16 %v1015, %v1010
        %v1296 = vpack.c.b16 %v1021, %v1016
        %v1297 = vpack.c.b16 %v1022, %v1017
        %v1298 = vpack.c.b16 %v1023, %v1018
        %v1299 = vpack.c.b16 %v1024, %v1019
        %v1300 = vpack.c.b16 %v1025, %v1020
        %v1301 = vpack.c.b16 %v1031, %v1026
        %v1302 = vpack.c.b16 %v1032, %v1027
        %v1303 = vpack.c.b16 %v1033, %v1028
        %v1304 = vpack.c.b16 %v1034, %v1029
        %v1305 = vpack.c.b16 %v1035, %v1030
        %v1306 = vpack.c.b16 %v1041, %v1036
        %v1307 = vpack.c.b16 %v1042, %v1037
        %v1308 = vpack.c.b16 %v1043, %v1038
        %v1309 = vpack.c.b16 %v1044, %v1039
        %v1310 = vpack.c.b16 %v1045, %v1040
        %v1311 = vpack.c.b16 %v1051, %v1046
        %v1312 = vpack.c.b16 %v1052, %v1047
        %v1313 = vpack.c.b16 %v1053, %v1048
        %v1314 = vpack.c.b16 %v1054, %v1049
        %v1315 = vpack.c.b16 %v1055, %v1050
        %v1316 = vpack.c.b16 %v1061, %v1056
        %v1317 = vpack.c.b16 %v1062, %v1057
        %v1318 = vpack.c.b16 %v1063, %v1058
        %v1319 = vpack.c.b16 %v1064, %v1059
        %v1320 = vpack.c.b16 %v1065, %v1060
        %v1321 = vpack.c.b16 %v1071, %v1066
        %v1322 = vpack.c.b16 %v1072, %v1067
        %v1323 = vpack.c.b16 %v1073, %v1068
        %v1324 = vpack.c.b16 %v1074, %v1069
        %v1325 = vpack.c.b16 %v1075, %v1070
        %v1326 = vpack.c.b16 %v1081, %v1076
        %v1327 = vpack.c.b16 %v1082, %v1077
        %v1328 = vpack.c.b16 %v1083, %v1078
        %v1329 = vpack.c.b16 %v1084, %v1079
        %v1330 = vpack.c.b16 %v1085, %v1080
        %v1331 = vpack.c.b16 %v1091, %v1086
        %v1332 = vpack.c.b16 %v1092, %v1087
        %v1333 = vpack.c.b16 %v1093, %v1088
        %v1334 = vpack.c.b16 %v1094, %v1089
        %v1335 = vpack.c.b16 %v1095, %v1090
        %v1336 = vpack.c.b16 %v1101, %v1096
        %v1337 = vpack.c.b16 %v1102, %v1097
        %v1338 = vpack.c.b16 %v1103, %v1098
        %v1339 = vpack.c.b16 %v1104, %v1099
        %v1340 = vpack.c.b16 %v1105, %v1100
        %v1341 = vpack.c.b16 %v1111, %v1106
        %v1342 = vpack.c.b16 %v1112, %v1107
        %v1343 = vpack.c.b16 %v1113, %v1108
        %v1344 = vpack.c.b16 %v1114, %v1109
        %v1345 = vpack.c.b16 %v1115, %v1110
        %v1346 = vpack.c.b16 %v1121, %v1116
        %v1347 = vpack.c.b16 %v1122, %v1117
        %v1348 = vpack.c.b16 %v1123, %v1118
        %v1349 = vpack.c.b16 %v1124, %v1119
        %v1350 = vpack.c.b16 %v1125, %v1120
        %v1351 = vpack.c.b16 %v1131, %v1126
        %v1352 = vpack.c.b16 %v1132, %v1127
        %v1353 = vpack.c.b16 %v1133, %v1128
        %v1354 = vpack.c.b16 %v1134, %v1129
        %v1355 = vpack.c.b16 %v1135, %v1130
        %v1356 = vpack.c.b16 %v1141, %v1136
        %v1357 = vpack.c.b16 %v1142, %v1137
        %v1358 = vpack.c.b16 %v1143, %v1138
        %v1359 = vpack.c.b16 %v1144, %v1139
        %v1360 = vpack.c.b16 %v1145, %v1140
        %v1361 = vpack.c.b16 %v1151, %v1146
        %v1362 = vpack.c.b16 %v1152, %v1147
        %v1363 = vpack.c.b16 %v1153, %v1148
        %v1364 = vpack.c.b16 %v1154, %v1149
        %v1365 = vpack.c.b16 %v1155, %v1150
        %v1366 = vpack.c.b16 %v1161, %v1156
        %v1367 = vpack.c.b16 %v1162, %v1157
        %v1368 = vpack.c.b16 %v1163, %v1158
        %v1369 = vpack.c.b16 %v1164, %v1159
        %v1370 = vpack.c.b16 %v1165, %v1160
        %v1371 = vpack.c.b16 %v1171, %v1166
        %v1372 = vpack.c.b16 %v1172, %v1167
        %v1373 = vpack.c.b16 %v1173, %v1168
        %v1374 = vpack.c.b16 %v1174, %v1169
        %v1375 = vpack.c.b16 %v1175, %v1170
        %v1376 = vpack.c.b16 %v1181, %v1176
        %v1377 = vpack.c.b16 %v1182, %v1177
        %v1378 = vpack.c.b16 %v1183, %v1178
        %v1379 = vpack.c.b16 %v1184, %v1179
        %v1380 = vpack.c.b16 %v1185, %v1180
        %v1381 = vpack.c.b16 %v1191, %v1186
        %v1382 = vpack.c.b16 %v1192, %v1187
        %v1383 = vpack.c.b16 %v1193, %v1188
        %v1384 = vpack.c.b16 %v1194, %v1189
        %v1385 = vpack.c.b16 %v1195, %v1190
        %v1386 = vpack.c.b16 %v1201, %v1196
        %v1387 = vpack.c.b16 %v1202, %v1197
        %v1388 = vpack.c.b16 %v1203, %v1198
        %v1389 = vpack.c.b16 %v1204, %v1199
        %v1390 = vpack.c.b16 %v1205, %v1200
        %v1391 = vpack.c.b16 %v1211, %v1206
        %v1392 = vpack.c.b16 %v1212, %v1207
        %v1393 = vpack.c.b16 %v1213, %v1208
        %v1394 = vpack.c.b16 %v1214, %v1209
        %v1395 = vpack.c.b16 %v1215, %v1210
        %v1396 = vpack.c.b16 %v1221, %v1216
        %v1397 = vpack.c.b16 %v1222, %v1217
        %v1398 = vpack.c.b16 %v1223, %v1218
        %v1399 = vpack.c.b16 %v1224, %v1219
        %v1400 = vpack.c.b16 %v1225, %v1220
        %v1401 = vpack.c.b16 %v1231, %v1226
        %v1402 = vpack.c.b16 %v1232, %v1227
        %v1403 = vpack.c.b16 %v1233, %v1228
        %v1404 = vpack.c.b16 %v1234, %v1229
        %v1405 = vpack.c.b16 %v1235, %v1230
        %v1406 = vpack.c.b16 %v1241, %v1236
        %v1407 = vpack.c.b16 %v1242, %v1237
        %v1408 = vpack.c.b16 %v1243, %v1238
        %v1409 = vpack.c.b16 %v1244, %v1239
        %v1410 = vpack.c.b16 %v1245, %v1240
        %v1411 = vpack.c.b16 %v1251, %v1246
        %v1412 = vpack.c.b16 %v1252, %v1247
        %v1413 = vpack.c.b16 %v1253, %v1248
        %v1414 = vpack.c.b16 %v1254, %v1249
        %v1415 = vpack.c.b16 %v1255, %v1250
        %1576 = vmatpush.bf16.msra.mxu0 %v1291
        %1577 = vmatpush.bf16.msra.mxu0 %v1286
        %1578 = vmatpush.bf16.msra.mxu0 %v1281
        %1579 = vmatpush.bf16.msra.mxu0 %v1276
        %1580 = vmatpush.bf16.msra.mxu0 %v1271
        %1581 = vmatpush.bf16.msra.mxu0 %v1266
        %1582 = vmatpush.bf16.msra.mxu0 %v1261
        %1583 = vmatpush.bf16.msra.mxu0 %v1256
        %1584 = vmatmul.bf16.gmra.mxu0 %v508
        %v1585 = vpop.f32.mrf.mxu0
        %v1586 = vadd.f32 %v734, %v1585
        %v1587 = vpop.f32.mrf.mxu0
        %v1588 = vadd.f32 %v734, %v1587
        %1589 = vmatmul.bf16.gmra.mxu0 %v512
        %v1590 = vpop.f32.mrf.mxu0
        %v1591 = vadd.f32 %v734, %v1590
        %v1592 = vpop.f32.mrf.mxu0
        %v1593 = vadd.f32 %v734, %v1592
        %1594 = vmatmul.bf16.gmra.mxu0 %v516
        %v1595 = vpop.f32.mrf.mxu0
        %v1596 = vadd.f32 %v734, %v1595
        %v1597 = vpop.f32.mrf.mxu0
        %v1598 = vadd.f32 %v734, %v1597
        %1599 = vmatmul.bf16.gmra.mxu0 %v520
        %v1600 = vpop.f32.mrf.mxu0
        %v1601 = vadd.f32 %v734, %v1600
        %v1602 = vpop.f32.mrf.mxu0
        %v1603 = vadd.f32 %v734, %v1602
        %1604 = vmatmul.bf16.gmra.mxu0 %v524
        %v1605 = vpop.f32.mrf.mxu0
        %v1606 = vadd.f32 %v734, %v1605
        %v1607 = vpop.f32.mrf.mxu0
        %v1608 = vadd.f32 %v734, %v1607
        %1609 = vmatmul.bf16.gmra.mxu0 %v528
        %v1610 = vpop.f32.mrf.mxu0
        %v1611 = vadd.f32 %v734, %v1610
        %v1612 = vpop.f32.mrf.mxu0
        %v1613 = vadd.f32 %v734, %v1612
        %1614 = vmatmul.bf16.gmra.mxu0 %v532
        %v1615 = vpop.f32.mrf.mxu0
        %v1616 = vadd.f32 %v734, %v1615
        %v1617 = vpop.f32.mrf.mxu0
        %v1618 = vadd.f32 %v734, %v1617
        %1619 = vmatmul.bf16.gmra.mxu0 %v536
        %v1620 = vpop.f32.mrf.mxu0
        %v1621 = vadd.f32 %v734, %v1620
        %v1622 = vpop.f32.mrf.mxu0
        %v1623 = vadd.f32 %v734, %v1622
        %1624 = vdwg.mxu0
        %1625 = vmatpush.bf16.msra.mxu0 %v1331
        %1626 = vmatpush.bf16.msra.mxu0 %v1326
        %1627 = vmatpush.bf16.msra.mxu0 %v1321
        %1628 = vmatpush.bf16.msra.mxu0 %v1316
        %1629 = vmatpush.bf16.msra.mxu0 %v1311
        %1630 = vmatpush.bf16.msra.mxu0 %v1306
        %1631 = vmatpush.bf16.msra.mxu0 %v1301
        %1632 = vmatpush.bf16.msra.mxu0 %v1296
        %1633 = vmatmul.bf16.gmra.mxu0 %v509
        %v1634 = vpop.f32.mrf.mxu0
        %v1635 = vadd.f32 %v1586, %v1634
        %v1636 = vpop.f32.mrf.mxu0
        %v1637 = vadd.f32 %v1588, %v1636
        %1638 = vmatmul.bf16.gmra.mxu0 %v513
        %v1639 = vpop.f32.mrf.mxu0
        %v1640 = vadd.f32 %v1591, %v1639
        %v1641 = vpop.f32.mrf.mxu0
        %v1642 = vadd.f32 %v1593, %v1641
        %1643 = vmatmul.bf16.gmra.mxu0 %v517
        %v1644 = vpop.f32.mrf.mxu0
        %v1645 = vadd.f32 %v1596, %v1644
        %v1646 = vpop.f32.mrf.mxu0
        %v1647 = vadd.f32 %v1598, %v1646
        %1648 = vmatmul.bf16.gmra.mxu0 %v521
        %v1649 = vpop.f32.mrf.mxu0
        %v1650 = vadd.f32 %v1601, %v1649
        %v1651 = vpop.f32.mrf.mxu0
        %v1652 = vadd.f32 %v1603, %v1651
        %1653 = vmatmul.bf16.gmra.mxu0 %v525
        %v1654 = vpop.f32.mrf.mxu0
        %v1655 = vadd.f32 %v1606, %v1654
        %v1656 = vpop.f32.mrf.mxu0
        %v1657 = vadd.f32 %v1608, %v1656
        %1658 = vmatmul.bf16.gmra.mxu0 %v529
        %v1659 = vpop.f32.mrf.mxu0
        %v1660 = vadd.f32 %v1611, %v1659
        %v1661 = vpop.f32.mrf.mxu0
        %v1662 = vadd.f32 %v1613, %v1661
        %1663 = vmatmul.bf16.gmra.mxu0 %v533
        %v1664 = vpop.f32.mrf.mxu0
        %v1665 = vadd.f32 %v1616, %v1664
        %v1666 = vpop.f32.mrf.mxu0
        %v1667 = vadd.f32 %v1618, %v1666
        %1668 = vmatmul.bf16.gmra.mxu0 %v537
        %v1669 = vpop.f32.mrf.mxu0
        %v1670 = vadd.f32 %v1621, %v1669
        %v1671 = vpop.f32.mrf.mxu0
        %v1672 = vadd.f32 %v1623, %v1671
        %1673 = vdwg.mxu0
        %1674 = vmatpush.bf16.msra.mxu0 %v1371
        %1675 = vmatpush.bf16.msra.mxu0 %v1366
        %1676 = vmatpush.bf16.msra.mxu0 %v1361
        %1677 = vmatpush.bf16.msra.mxu0 %v1356
        %1678 = vmatpush.bf16.msra.mxu0 %v1351
        %1679 = vmatpush.bf16.msra.mxu0 %v1346
        %1680 = vmatpush.bf16.msra.mxu0 %v1341
        %1681 = vmatpush.bf16.msra.mxu0 %v1336
        %1682 = vmatmul.bf16.gmra.mxu0 %v510
        %v1683 = vpop.f32.mrf.mxu0
        %v1684 = vadd.f32 %v1635, %v1683
        %v1685 = vpop.f32.mrf.mxu0
        %v1686 = vadd.f32 %v1637, %v1685
        %1687 = vmatmul.bf16.gmra.mxu0 %v514
        %v1688 = vpop.f32.mrf.mxu0
        %v1689 = vadd.f32 %v1640, %v1688
        %v1690 = vpop.f32.mrf.mxu0
        %v1691 = vadd.f32 %v1642, %v1690
        %1692 = vmatmul.bf16.gmra.mxu0 %v518
        %v1693 = vpop.f32.mrf.mxu0
        %v1694 = vadd.f32 %v1645, %v1693
        %v1695 = vpop.f32.mrf.mxu0
        %v1696 = vadd.f32 %v1647, %v1695
        %1697 = vmatmul.bf16.gmra.mxu0 %v522
        %v1698 = vpop.f32.mrf.mxu0
        %v1699 = vadd.f32 %v1650, %v1698
        %v1700 = vpop.f32.mrf.mxu0
        %v1701 = vadd.f32 %v1652, %v1700
        %1702 = vmatmul.bf16.gmra.mxu0 %v526
        %v1703 = vpop.f32.mrf.mxu0
        %v1704 = vadd.f32 %v1655, %v1703
        %v1705 = vpop.f32.mrf.mxu0
        %v1706 = vadd.f32 %v1657, %v1705
        %1707 = vmatmul.bf16.gmra.mxu0 %v530
        %v1708 = vpop.f32.mrf.mxu0
        %v1709 = vadd.f32 %v1660, %v1708
        %v1710 = vpop.f32.mrf.mxu0
        %v1711 = vadd.f32 %v1662, %v1710
        %1712 = vmatmul.bf16.gmra.mxu0 %v534
        %v1713 = vpop.f32.mrf.mxu0
        %v1714 = vadd.f32 %v1665, %v1713
        %v1715 = vpop.f32.mrf.mxu0
        %v1716 = vadd.f32 %v1667, %v1715
        %1717 = vmatmul.bf16.gmra.mxu0 %v538
        %v1718 = vpop.f32.mrf.mxu0
        %v1719 = vadd.f32 %v1670, %v1718
        %v1720 = vpop.f32.mrf.mxu0
        %v1721 = vadd.f32 %v1672, %v1720
        %1722 = vdwg.mxu0
        %1723 = vmatpush.bf16.msra.mxu0 %v1411
        %1724 = vmatpush.bf16.msra.mxu0 %v1406
        %1725 = vmatpush.bf16.msra.mxu0 %v1401
        %1726 = vmatpush.bf16.msra.mxu0 %v1396
        %1727 = vmatpush.bf16.msra.mxu0 %v1391
        %1728 = vmatpush.bf16.msra.mxu0 %v1386
        %1729 = vmatpush.bf16.msra.mxu0 %v1381
        %1730 = vmatpush.bf16.msra.mxu0 %v1376
        %1731 = vmatmul.bf16.gmra.mxu0 %v511
        %v1732 = vpop.f32.mrf.mxu0
        %v1733 = vadd.f32 %v1684, %v1732
        %v1734 = vpop.f32.mrf.mxu0
        %v1735 = vadd.f32 %v1686, %v1734
        %1736 = vmatmul.bf16.gmra.mxu0 %v515
        %v1737 = vpop.f32.mrf.mxu0
        %v1738 = vadd.f32 %v1689, %v1737
        %v1739 = vpop.f32.mrf.mxu0
        %v1740 = vadd.f32 %v1691, %v1739
        %1741 = vmatmul.bf16.gmra.mxu0 %v519
        %v1742 = vpop.f32.mrf.mxu0
        %v1743 = vadd.f32 %v1694, %v1742
        %v1744 = vpop.f32.mrf.mxu0
        %v1745 = vadd.f32 %v1696, %v1744
        %1746 = vmatmul.bf16.gmra.mxu0 %v523
        %v1747 = vpop.f32.mrf.mxu0
        %v1748 = vadd.f32 %v1699, %v1747
        %v1749 = vpop.f32.mrf.mxu0
        %v1750 = vadd.f32 %v1701, %v1749
        %1751 = vmatmul.bf16.gmra.mxu0 %v527
        %v1752 = vpop.f32.mrf.mxu0
        %v1753 = vadd.f32 %v1704, %v1752
        %v1754 = vpop.f32.mrf.mxu0
        %v1755 = vadd.f32 %v1706, %v1754
        %1756 = vmatmul.bf16.gmra.mxu0 %v531
        %v1757 = vpop.f32.mrf.mxu0
        %v1758 = vadd.f32 %v1709, %v1757
        %v1759 = vpop.f32.mrf.mxu0
        %v1760 = vadd.f32 %v1711, %v1759
        %1761 = vmatmul.bf16.gmra.mxu0 %v535
        %v1762 = vpop.f32.mrf.mxu0
        %v1763 = vadd.f32 %v1714, %v1762
        %v1764 = vpop.f32.mrf.mxu0
        %v1765 = vadd.f32 %v1716, %v1764
        %1766 = vmatmul.bf16.gmra.mxu0 %v539
        %v1767 = vpop.f32.mrf.mxu0
        %v1768 = vadd.f32 %v1719, %v1767
        %v1769 = vpop.f32.mrf.mxu0
        %v1770 = vadd.f32 %v1721, %v1769
        %1771 = vdwg.mxu0
        %1772 = vmatpush.bf16.msra.mxu0 %v1292
        %1773 = vmatpush.bf16.msra.mxu0 %v1287
        %1774 = vmatpush.bf16.msra.mxu0 %v1282
        %1775 = vmatpush.bf16.msra.mxu0 %v1277
        %1776 = vmatpush.bf16.msra.mxu0 %v1272
        %1777 = vmatpush.bf16.msra.mxu0 %v1267
        %1778 = vmatpush.bf16.msra.mxu0 %v1262
        %1779 = vmatpush.bf16.msra.mxu0 %v1257
        %1780 = vmatmul.bf16.gmra.mxu0 %v508
        %v1781 = vpop.f32.mrf.mxu0
        %v1782 = vadd.f32 %v735, %v1781
        %v1783 = vpop.f32.mrf.mxu0
        %v1784 = vadd.f32 %v735, %v1783
        %1785 = vmatmul.bf16.gmra.mxu0 %v512
        %v1786 = vpop.f32.mrf.mxu0
        %v1787 = vadd.f32 %v735, %v1786
        %v1788 = vpop.f32.mrf.mxu0
        %v1789 = vadd.f32 %v735, %v1788
        %1790 = vmatmul.bf16.gmra.mxu0 %v516
        %v1791 = vpop.f32.mrf.mxu0
        %v1792 = vadd.f32 %v735, %v1791
        %v1793 = vpop.f32.mrf.mxu0
        %v1794 = vadd.f32 %v735, %v1793
        %1795 = vmatmul.bf16.gmra.mxu0 %v520
        %v1796 = vpop.f32.mrf.mxu0
        %v1797 = vadd.f32 %v735, %v1796
        %v1798 = vpop.f32.mrf.mxu0
        %v1799 = vadd.f32 %v735, %v1798
        %1800 = vmatmul.bf16.gmra.mxu0 %v524
        %v1801 = vpop.f32.mrf.mxu0
        %v1802 = vadd.f32 %v735, %v1801
        %v1803 = vpop.f32.mrf.mxu0
        %v1804 = vadd.f32 %v735, %v1803
        %1805 = vmatmul.bf16.gmra.mxu0 %v528
        %v1806 = vpop.f32.mrf.mxu0
        %v1807 = vadd.f32 %v735, %v1806
        %v1808 = vpop.f32.mrf.mxu0
        %v1809 = vadd.f32 %v735, %v1808
        %1810 = vmatmul.bf16.gmra.mxu0 %v532
        %v1811 = vpop.f32.mrf.mxu0
        %v1812 = vadd.f32 %v735, %v1811
        %v1813 = vpop.f32.mrf.mxu0
        %v1814 = vadd.f32 %v735, %v1813
        %1815 = vmatmul.bf16.gmra.mxu0 %v536
        %v1816 = vpop.f32.mrf.mxu0
        %v1817 = vadd.f32 %v735, %v1816
        %v1818 = vpop.f32.mrf.mxu0
        %v1819 = vadd.f32 %v735, %v1818
        %1820 = vdwg.mxu0
        %1821 = vmatpush.bf16.msra.mxu0 %v1332
        %1822 = vmatpush.bf16.msra.mxu0 %v1327
        %1823 = vmatpush.bf16.msra.mxu0 %v1322
        %1824 = vmatpush.bf16.msra.mxu0 %v1317
        %1825 = vmatpush.bf16.msra.mxu0 %v1312
        %1826 = vmatpush.bf16.msra.mxu0 %v1307
        %1827 = vmatpush.bf16.msra.mxu0 %v1302
        %1828 = vmatpush.bf16.msra.mxu0 %v1297
        %1829 = vmatmul.bf16.gmra.mxu0 %v509
        %v1830 = vpop.f32.mrf.mxu0
        %v1831 = vadd.f32 %v1782, %v1830
        %v1832 = vpop.f32.mrf.mxu0
        %v1833 = vadd.f32 %v1784, %v1832
        %1834 = vmatmul.bf16.gmra.mxu0 %v513
        %v1835 = vpop.f32.mrf.mxu0
        %v1836 = vadd.f32 %v1787, %v1835
        %v1837 = vpop.f32.mrf.mxu0
        %v1838 = vadd.f32 %v1789, %v1837
        %1839 = vmatmul.bf16.gmra.mxu0 %v517
        %v1840 = vpop.f32.mrf.mxu0
        %v1841 = vadd.f32 %v1792, %v1840
        %v1842 = vpop.f32.mrf.mxu0
        %v1843 = vadd.f32 %v1794, %v1842
        %1844 = vmatmul.bf16.gmra.mxu0 %v521
        %v1845 = vpop.f32.mrf.mxu0
        %v1846 = vadd.f32 %v1797, %v1845
        %v1847 = vpop.f32.mrf.mxu0
        %v1848 = vadd.f32 %v1799, %v1847
        %1849 = vmatmul.bf16.gmra.mxu0 %v525
        %v1850 = vpop.f32.mrf.mxu0
        %v1851 = vadd.f32 %v1802, %v1850
        %v1852 = vpop.f32.mrf.mxu0
        %v1853 = vadd.f32 %v1804, %v1852
        %1854 = vmatmul.bf16.gmra.mxu0 %v529
        %v1855 = vpop.f32.mrf.mxu0
        %v1856 = vadd.f32 %v1807, %v1855
        %v1857 = vpop.f32.mrf.mxu0
        %v1858 = vadd.f32 %v1809, %v1857
        %1859 = vmatmul.bf16.gmra.mxu0 %v533
        %v1860 = vpop.f32.mrf.mxu0
        %v1861 = vadd.f32 %v1812, %v1860
        %v1862 = vpop.f32.mrf.mxu0
        %v1863 = vadd.f32 %v1814, %v1862
        %1864 = vmatmul.bf16.gmra.mxu0 %v537
        %v1865 = vpop.f32.mrf.mxu0
        %v1866 = vadd.f32 %v1817, %v1865
        %v1867 = vpop.f32.mrf.mxu0
        %v1868 = vadd.f32 %v1819, %v1867
        %1869 = vdwg.mxu0
        %1870 = vmatpush.bf16.msra.mxu0 %v1372
        %1871 = vmatpush.bf16.msra.mxu0 %v1367
        %1872 = vmatpush.bf16.msra.mxu0 %v1362
        %1873 = vmatpush.bf16.msra.mxu0 %v1357
        %1874 = vmatpush.bf16.msra.mxu0 %v1352
        %1875 = vmatpush.bf16.msra.mxu0 %v1347
        %1876 = vmatpush.bf16.msra.mxu0 %v1342
        %1877 = vmatpush.bf16.msra.mxu0 %v1337
        %1878 = vmatmul.bf16.gmra.mxu0 %v510
        %v1879 = vpop.f32.mrf.mxu0
        %v1880 = vadd.f32 %v1831, %v1879
        %v1881 = vpop.f32.mrf.mxu0
        %v1882 = vadd.f32 %v1833, %v1881
        %1883 = vmatmul.bf16.gmra.mxu0 %v514
        %v1884 = vpop.f32.mrf.mxu0
        %v1885 = vadd.f32 %v1836, %v1884
        %v1886 = vpop.f32.mrf.mxu0
        %v1887 = vadd.f32 %v1838, %v1886
        %1888 = vmatmul.bf16.gmra.mxu0 %v518
        %v1889 = vpop.f32.mrf.mxu0
        %v1890 = vadd.f32 %v1841, %v1889
        %v1891 = vpop.f32.mrf.mxu0
        %v1892 = vadd.f32 %v1843, %v1891
        %1893 = vmatmul.bf16.gmra.mxu0 %v522
        %v1894 = vpop.f32.mrf.mxu0
        %v1895 = vadd.f32 %v1846, %v1894
        %v1896 = vpop.f32.mrf.mxu0
        %v1897 = vadd.f32 %v1848, %v1896
        %1898 = vmatmul.bf16.gmra.mxu0 %v526
        %v1899 = vpop.f32.mrf.mxu0
        %v1900 = vadd.f32 %v1851, %v1899
        %v1901 = vpop.f32.mrf.mxu0
        %v1902 = vadd.f32 %v1853, %v1901
        %1903 = vmatmul.bf16.gmra.mxu0 %v530
        %v1904 = vpop.f32.mrf.mxu0
        %v1905 = vadd.f32 %v1856, %v1904
        %v1906 = vpop.f32.mrf.mxu0
        %v1907 = vadd.f32 %v1858, %v1906
        %1908 = vmatmul.bf16.gmra.mxu0 %v534
        %v1909 = vpop.f32.mrf.mxu0
        %v1910 = vadd.f32 %v1861, %v1909
        %v1911 = vpop.f32.mrf.mxu0
        %v1912 = vadd.f32 %v1863, %v1911
        %1913 = vmatmul.bf16.gmra.mxu0 %v538
        %v1914 = vpop.f32.mrf.mxu0
        %v1915 = vadd.f32 %v1866, %v1914
        %v1916 = vpop.f32.mrf.mxu0
        %v1917 = vadd.f32 %v1868, %v1916
        %1918 = vdwg.mxu0
        %1919 = vmatpush.bf16.msra.mxu0 %v1412
        %1920 = vmatpush.bf16.msra.mxu0 %v1407
        %1921 = vmatpush.bf16.msra.mxu0 %v1402
        %1922 = vmatpush.bf16.msra.mxu0 %v1397
        %1923 = vmatpush.bf16.msra.mxu0 %v1392
        %1924 = vmatpush.bf16.msra.mxu0 %v1387
        %1925 = vmatpush.bf16.msra.mxu0 %v1382
        %1926 = vmatpush.bf16.msra.mxu0 %v1377
        %1927 = vmatmul.bf16.gmra.mxu0 %v511
        %v1928 = vpop.f32.mrf.mxu0
        %v1929 = vadd.f32 %v1880, %v1928
        %v1930 = vpop.f32.mrf.mxu0
        %v1931 = vadd.f32 %v1882, %v1930
        %1932 = vmatmul.bf16.gmra.mxu0 %v515
        %v1933 = vpop.f32.mrf.mxu0
        %v1934 = vadd.f32 %v1885, %v1933
        %v1935 = vpop.f32.mrf.mxu0
        %v1936 = vadd.f32 %v1887, %v1935
        %1937 = vmatmul.bf16.gmra.mxu0 %v519
        %v1938 = vpop.f32.mrf.mxu0
        %v1939 = vadd.f32 %v1890, %v1938
        %v1940 = vpop.f32.mrf.mxu0
        %v1941 = vadd.f32 %v1892, %v1940
        %1942 = vmatmul.bf16.gmra.mxu0 %v523
        %v1943 = vpop.f32.mrf.mxu0
        %v1944 = vadd.f32 %v1895, %v1943
        %v1945 = vpop.f32.mrf.mxu0
        %v1946 = vadd.f32 %v1897, %v1945
        %1947 = vmatmul.bf16.gmra.mxu0 %v527
        %v1948 = vpop.f32.mrf.mxu0
        %v1949 = vadd.f32 %v1900, %v1948
        %v1950 = vpop.f32.mrf.mxu0
        %v1951 = vadd.f32 %v1902, %v1950
        %1952 = vmatmul.bf16.gmra.mxu0 %v531
        %v1953 = vpop.f32.mrf.mxu0
        %v1954 = vadd.f32 %v1905, %v1953
        %v1955 = vpop.f32.mrf.mxu0
        %v1956 = vadd.f32 %v1907, %v1955
        %1957 = vmatmul.bf16.gmra.mxu0 %v535
        %v1958 = vpop.f32.mrf.mxu0
        %v1959 = vadd.f32 %v1910, %v1958
        %v1960 = vpop.f32.mrf.mxu0
        %v1961 = vadd.f32 %v1912, %v1960
        %1962 = vmatmul.bf16.gmra.mxu0 %v539
        %v1963 = vpop.f32.mrf.mxu0
        %v1964 = vadd.f32 %v1915, %v1963
        %v1965 = vpop.f32.mrf.mxu0
        %v1966 = vadd.f32 %v1917, %v1965
        %1967 = vdwg.mxu0
        %1968 = vmatpush.bf16.msra.mxu0 %v1293
        %1969 = vmatpush.bf16.msra.mxu0 %v1288
        %1970 = vmatpush.bf16.msra.mxu0 %v1283
        %1971 = vmatpush.bf16.msra.mxu0 %v1278
        %1972 = vmatpush.bf16.msra.mxu0 %v1273
        %1973 = vmatpush.bf16.msra.mxu0 %v1268
        %1974 = vmatpush.bf16.msra.mxu0 %v1263
        %1975 = vmatpush.bf16.msra.mxu0 %v1258
        %1976 = vmatmul.bf16.gmra.mxu0 %v508
        %v1977 = vpop.f32.mrf.mxu0
        %v1978 = vadd.f32 %v736, %v1977
        %v1979 = vpop.f32.mrf.mxu0
        %v1980 = vadd.f32 %v736, %v1979
        %1981 = vmatmul.bf16.gmra.mxu0 %v512
        %v1982 = vpop.f32.mrf.mxu0
        %v1983 = vadd.f32 %v736, %v1982
        %v1984 = vpop.f32.mrf.mxu0
        %v1985 = vadd.f32 %v736, %v1984
        %1986 = vmatmul.bf16.gmra.mxu0 %v516
        %v1987 = vpop.f32.mrf.mxu0
        %v1988 = vadd.f32 %v736, %v1987
        %v1989 = vpop.f32.mrf.mxu0
        %v1990 = vadd.f32 %v736, %v1989
        %1991 = vmatmul.bf16.gmra.mxu0 %v520
        %v1992 = vpop.f32.mrf.mxu0
        %v1993 = vadd.f32 %v736, %v1992
        %v1994 = vpop.f32.mrf.mxu0
        %v1995 = vadd.f32 %v736, %v1994
        %1996 = vmatmul.bf16.gmra.mxu0 %v524
        %v1997 = vpop.f32.mrf.mxu0
        %v1998 = vadd.f32 %v736, %v1997
        %v1999 = vpop.f32.mrf.mxu0
        %v2000 = vadd.f32 %v736, %v1999
        %2001 = vmatmul.bf16.gmra.mxu0 %v528
        %v2002 = vpop.f32.mrf.mxu0
        %v2003 = vadd.f32 %v736, %v2002
        %v2004 = vpop.f32.mrf.mxu0
        %v2005 = vadd.f32 %v736, %v2004
        %2006 = vmatmul.bf16.gmra.mxu0 %v532
        %v2007 = vpop.f32.mrf.mxu0
        %v2008 = vadd.f32 %v736, %v2007
        %v2009 = vpop.f32.mrf.mxu0
        %v2010 = vadd.f32 %v736, %v2009
        %2011 = vmatmul.bf16.gmra.mxu0 %v536
        %v2012 = vpop.f32.mrf.mxu0
        %v2013 = vadd.f32 %v736, %v2012
        %v2014 = vpop.f32.mrf.mxu0
        %v2015 = vadd.f32 %v736, %v2014
        %2016 = vdwg.mxu0
        %2017 = vmatpush.bf16.msra.mxu0 %v1333
        %2018 = vmatpush.bf16.msra.mxu0 %v1328
        %2019 = vmatpush.bf16.msra.mxu0 %v1323
        %2020 = vmatpush.bf16.msra.mxu0 %v1318
        %2021 = vmatpush.bf16.msra.mxu0 %v1313
        %2022 = vmatpush.bf16.msra.mxu0 %v1308
        %2023 = vmatpush.bf16.msra.mxu0 %v1303
        %2024 = vmatpush.bf16.msra.mxu0 %v1298
        %2025 = vmatmul.bf16.gmra.mxu0 %v509
        %v2026 = vpop.f32.mrf.mxu0
        %v2027 = vadd.f32 %v1978, %v2026
        %v2028 = vpop.f32.mrf.mxu0
        %v2029 = vadd.f32 %v1980, %v2028
        %2030 = vmatmul.bf16.gmra.mxu0 %v513
        %v2031 = vpop.f32.mrf.mxu0
        %v2032 = vadd.f32 %v1983, %v2031
        %v2033 = vpop.f32.mrf.mxu0
        %v2034 = vadd.f32 %v1985, %v2033
        %2035 = vmatmul.bf16.gmra.mxu0 %v517
        %v2036 = vpop.f32.mrf.mxu0
        %v2037 = vadd.f32 %v1988, %v2036
        %v2038 = vpop.f32.mrf.mxu0
        %v2039 = vadd.f32 %v1990, %v2038
        %2040 = vmatmul.bf16.gmra.mxu0 %v521
        %v2041 = vpop.f32.mrf.mxu0
        %v2042 = vadd.f32 %v1993, %v2041
        %v2043 = vpop.f32.mrf.mxu0
        %v2044 = vadd.f32 %v1995, %v2043
        %2045 = vmatmul.bf16.gmra.mxu0 %v525
        %v2046 = vpop.f32.mrf.mxu0
        %v2047 = vadd.f32 %v1998, %v2046
        %v2048 = vpop.f32.mrf.mxu0
        %v2049 = vadd.f32 %v2000, %v2048
        %2050 = vmatmul.bf16.gmra.mxu0 %v529
        %v2051 = vpop.f32.mrf.mxu0
        %v2052 = vadd.f32 %v2003, %v2051
        %v2053 = vpop.f32.mrf.mxu0
        %v2054 = vadd.f32 %v2005, %v2053
        %2055 = vmatmul.bf16.gmra.mxu0 %v533
        %v2056 = vpop.f32.mrf.mxu0
        %v2057 = vadd.f32 %v2008, %v2056
        %v2058 = vpop.f32.mrf.mxu0
        %v2059 = vadd.f32 %v2010, %v2058
        %2060 = vmatmul.bf16.gmra.mxu0 %v537
        %v2061 = vpop.f32.mrf.mxu0
        %v2062 = vadd.f32 %v2013, %v2061
        %v2063 = vpop.f32.mrf.mxu0
        %v2064 = vadd.f32 %v2015, %v2063
        %2065 = vdwg.mxu0
        %2066 = vmatpush.bf16.msra.mxu0 %v1373
        %2067 = vmatpush.bf16.msra.mxu0 %v1368
        %2068 = vmatpush.bf16.msra.mxu0 %v1363
        %2069 = vmatpush.bf16.msra.mxu0 %v1358
        %2070 = vmatpush.bf16.msra.mxu0 %v1353
        %2071 = vmatpush.bf16.msra.mxu0 %v1348
        %2072 = vmatpush.bf16.msra.mxu0 %v1343
        %2073 = vmatpush.bf16.msra.mxu0 %v1338
        %2074 = vmatmul.bf16.gmra.mxu0 %v510
        %v2075 = vpop.f32.mrf.mxu0
        %v2076 = vadd.f32 %v2027, %v2075
        %v2077 = vpop.f32.mrf.mxu0
        %v2078 = vadd.f32 %v2029, %v2077
        %2079 = vmatmul.bf16.gmra.mxu0 %v514
        %v2080 = vpop.f32.mrf.mxu0
        %v2081 = vadd.f32 %v2032, %v2080
        %v2082 = vpop.f32.mrf.mxu0
        %v2083 = vadd.f32 %v2034, %v2082
        %2084 = vmatmul.bf16.gmra.mxu0 %v518
        %v2085 = vpop.f32.mrf.mxu0
        %v2086 = vadd.f32 %v2037, %v2085
        %v2087 = vpop.f32.mrf.mxu0
        %v2088 = vadd.f32 %v2039, %v2087
        %2089 = vmatmul.bf16.gmra.mxu0 %v522
        %v2090 = vpop.f32.mrf.mxu0
        %v2091 = vadd.f32 %v2042, %v2090
        %v2092 = vpop.f32.mrf.mxu0
        %v2093 = vadd.f32 %v2044, %v2092
        %2094 = vmatmul.bf16.gmra.mxu0 %v526
        %v2095 = vpop.f32.mrf.mxu0
        %v2096 = vadd.f32 %v2047, %v2095
        %v2097 = vpop.f32.mrf.mxu0
        %v2098 = vadd.f32 %v2049, %v2097
        %2099 = vmatmul.bf16.gmra.mxu0 %v530
        %v2100 = vpop.f32.mrf.mxu0
        %v2101 = vadd.f32 %v2052, %v2100
        %v2102 = vpop.f32.mrf.mxu0
        %v2103 = vadd.f32 %v2054, %v2102
        %2104 = vmatmul.bf16.gmra.mxu0 %v534
        %v2105 = vpop.f32.mrf.mxu0
        %v2106 = vadd.f32 %v2057, %v2105
        %v2107 = vpop.f32.mrf.mxu0
        %v2108 = vadd.f32 %v2059, %v2107
        %2109 = vmatmul.bf16.gmra.mxu0 %v538
        %v2110 = vpop.f32.mrf.mxu0
        %v2111 = vadd.f32 %v2062, %v2110
        %v2112 = vpop.f32.mrf.mxu0
        %v2113 = vadd.f32 %v2064, %v2112
        %2114 = vdwg.mxu0
        %2115 = vmatpush.bf16.msra.mxu0 %v1413
        %2116 = vmatpush.bf16.msra.mxu0 %v1408
        %2117 = vmatpush.bf16.msra.mxu0 %v1403
        %2118 = vmatpush.bf16.msra.mxu0 %v1398
        %2119 = vmatpush.bf16.msra.mxu0 %v1393
        %2120 = vmatpush.bf16.msra.mxu0 %v1388
        %2121 = vmatpush.bf16.msra.mxu0 %v1383
        %2122 = vmatpush.bf16.msra.mxu0 %v1378
        %2123 = vmatmul.bf16.gmra.mxu0 %v511
        %v2124 = vpop.f32.mrf.mxu0
        %v2125 = vadd.f32 %v2076, %v2124
        %v2126 = vpop.f32.mrf.mxu0
        %v2127 = vadd.f32 %v2078, %v2126
        %2128 = vmatmul.bf16.gmra.mxu0 %v515
        %v2129 = vpop.f32.mrf.mxu0
        %v2130 = vadd.f32 %v2081, %v2129
        %v2131 = vpop.f32.mrf.mxu0
        %v2132 = vadd.f32 %v2083, %v2131
        %2133 = vmatmul.bf16.gmra.mxu0 %v519
        %v2134 = vpop.f32.mrf.mxu0
        %v2135 = vadd.f32 %v2086, %v2134
        %v2136 = vpop.f32.mrf.mxu0
        %v2137 = vadd.f32 %v2088, %v2136
        %2138 = vmatmul.bf16.gmra.mxu0 %v523
        %v2139 = vpop.f32.mrf.mxu0
        %v2140 = vadd.f32 %v2091, %v2139
        %v2141 = vpop.f32.mrf.mxu0
        %v2142 = vadd.f32 %v2093, %v2141
        %2143 = vmatmul.bf16.gmra.mxu0 %v527
        %v2144 = vpop.f32.mrf.mxu0
        %v2145 = vadd.f32 %v2096, %v2144
        %v2146 = vpop.f32.mrf.mxu0
        %v2147 = vadd.f32 %v2098, %v2146
        %2148 = vmatmul.bf16.gmra.mxu0 %v531
        %v2149 = vpop.f32.mrf.mxu0
        %v2150 = vadd.f32 %v2101, %v2149
        %v2151 = vpop.f32.mrf.mxu0
        %v2152 = vadd.f32 %v2103, %v2151
        %2153 = vmatmul.bf16.gmra.mxu0 %v535
        %v2154 = vpop.f32.mrf.mxu0
        %v2155 = vadd.f32 %v2106, %v2154
        %v2156 = vpop.f32.mrf.mxu0
        %v2157 = vadd.f32 %v2108, %v2156
        %2158 = vmatmul.bf16.gmra.mxu0 %v539
        %v2159 = vpop.f32.mrf.mxu0
        %v2160 = vadd.f32 %v2111, %v2159
        %v2161 = vpop.f32.mrf.mxu0
        %v2162 = vadd.f32 %v2113, %v2161
        %2163 = vdwg.mxu0
        %2164 = vmatpush.bf16.msra.mxu0 %v1294
        %2165 = vmatpush.bf16.msra.mxu0 %v1289
        %2166 = vmatpush.bf16.msra.mxu0 %v1284
        %2167 = vmatpush.bf16.msra.mxu0 %v1279
        %2168 = vmatpush.bf16.msra.mxu0 %v1274
        %2169 = vmatpush.bf16.msra.mxu0 %v1269
        %2170 = vmatpush.bf16.msra.mxu0 %v1264
        %2171 = vmatpush.bf16.msra.mxu0 %v1259
        %2172 = vmatmul.bf16.gmra.mxu0 %v508
        %v2173 = vpop.f32.mrf.mxu0
        %v2174 = vadd.f32 %v737, %v2173
        %v2175 = vpop.f32.mrf.mxu0
        %v2176 = vadd.f32 %v737, %v2175
        %2177 = vmatmul.bf16.gmra.mxu0 %v512
        %v2178 = vpop.f32.mrf.mxu0
        %v2179 = vadd.f32 %v737, %v2178
        %v2180 = vpop.f32.mrf.mxu0
        %v2181 = vadd.f32 %v737, %v2180
        %2182 = vmatmul.bf16.gmra.mxu0 %v516
        %v2183 = vpop.f32.mrf.mxu0
        %v2184 = vadd.f32 %v737, %v2183
        %v2185 = vpop.f32.mrf.mxu0
        %v2186 = vadd.f32 %v737, %v2185
        %2187 = vmatmul.bf16.gmra.mxu0 %v520
        %v2188 = vpop.f32.mrf.mxu0
        %v2189 = vadd.f32 %v737, %v2188
        %v2190 = vpop.f32.mrf.mxu0
        %v2191 = vadd.f32 %v737, %v2190
        %2192 = vmatmul.bf16.gmra.mxu0 %v524
        %v2193 = vpop.f32.mrf.mxu0
        %v2194 = vadd.f32 %v737, %v2193
        %v2195 = vpop.f32.mrf.mxu0
        %v2196 = vadd.f32 %v737, %v2195
        %2197 = vmatmul.bf16.gmra.mxu0 %v528
        %v2198 = vpop.f32.mrf.mxu0
        %v2199 = vadd.f32 %v737, %v2198
        %v2200 = vpop.f32.mrf.mxu0
        %v2201 = vadd.f32 %v737, %v2200
        %2202 = vmatmul.bf16.gmra.mxu0 %v532
        %v2203 = vpop.f32.mrf.mxu0
        %v2204 = vadd.f32 %v737, %v2203
        %v2205 = vpop.f32.mrf.mxu0
        %v2206 = vadd.f32 %v737, %v2205
        %2207 = vmatmul.bf16.gmra.mxu0 %v536
        %v2208 = vpop.f32.mrf.mxu0
        %v2209 = vadd.f32 %v737, %v2208
        %v2210 = vpop.f32.mrf.mxu0
        %v2211 = vadd.f32 %v737, %v2210
        %2212 = vdwg.mxu0
        %2213 = vmatpush.bf16.msra.mxu0 %v1334
        %2214 = vmatpush.bf16.msra.mxu0 %v1329
        %2215 = vmatpush.bf16.msra.mxu0 %v1324
        %2216 = vmatpush.bf16.msra.mxu0 %v1319
        %2217 = vmatpush.bf16.msra.mxu0 %v1314
        %2218 = vmatpush.bf16.msra.mxu0 %v1309
        %2219 = vmatpush.bf16.msra.mxu0 %v1304
        %2220 = vmatpush.bf16.msra.mxu0 %v1299
        %2221 = vmatmul.bf16.gmra.mxu0 %v509
        %v2222 = vpop.f32.mrf.mxu0
        %v2223 = vadd.f32 %v2174, %v2222
        %v2224 = vpop.f32.mrf.mxu0
        %v2225 = vadd.f32 %v2176, %v2224
        %2226 = vmatmul.bf16.gmra.mxu0 %v513
        %v2227 = vpop.f32.mrf.mxu0
        %v2228 = vadd.f32 %v2179, %v2227
        %v2229 = vpop.f32.mrf.mxu0
        %v2230 = vadd.f32 %v2181, %v2229
        %2231 = vmatmul.bf16.gmra.mxu0 %v517
        %v2232 = vpop.f32.mrf.mxu0
        %v2233 = vadd.f32 %v2184, %v2232
        %v2234 = vpop.f32.mrf.mxu0
        %v2235 = vadd.f32 %v2186, %v2234
        %2236 = vmatmul.bf16.gmra.mxu0 %v521
        %v2237 = vpop.f32.mrf.mxu0
        %v2238 = vadd.f32 %v2189, %v2237
        %v2239 = vpop.f32.mrf.mxu0
        %v2240 = vadd.f32 %v2191, %v2239
        %2241 = vmatmul.bf16.gmra.mxu0 %v525
        %v2242 = vpop.f32.mrf.mxu0
        %v2243 = vadd.f32 %v2194, %v2242
        %v2244 = vpop.f32.mrf.mxu0
        %v2245 = vadd.f32 %v2196, %v2244
        %2246 = vmatmul.bf16.gmra.mxu0 %v529
        %v2247 = vpop.f32.mrf.mxu0
        %v2248 = vadd.f32 %v2199, %v2247
        %v2249 = vpop.f32.mrf.mxu0
        %v2250 = vadd.f32 %v2201, %v2249
        %2251 = vmatmul.bf16.gmra.mxu0 %v533
        %v2252 = vpop.f32.mrf.mxu0
        %v2253 = vadd.f32 %v2204, %v2252
        %v2254 = vpop.f32.mrf.mxu0
        %v2255 = vadd.f32 %v2206, %v2254
        %2256 = vmatmul.bf16.gmra.mxu0 %v537
        %v2257 = vpop.f32.mrf.mxu0
        %v2258 = vadd.f32 %v2209, %v2257
        %v2259 = vpop.f32.mrf.mxu0
        %v2260 = vadd.f32 %v2211, %v2259
        %2261 = vdwg.mxu0
        %2262 = vmatpush.bf16.msra.mxu0 %v1374
        %2263 = vmatpush.bf16.msra.mxu0 %v1369
        %2264 = vmatpush.bf16.msra.mxu0 %v1364
        %2265 = vmatpush.bf16.msra.mxu0 %v1359
        %2266 = vmatpush.bf16.msra.mxu0 %v1354
        %2267 = vmatpush.bf16.msra.mxu0 %v1349
        %2268 = vmatpush.bf16.msra.mxu0 %v1344
        %2269 = vmatpush.bf16.msra.mxu0 %v1339
        %2270 = vmatmul.bf16.gmra.mxu0 %v510
        %v2271 = vpop.f32.mrf.mxu0
        %v2272 = vadd.f32 %v2223, %v2271
        %v2273 = vpop.f32.mrf.mxu0
        %v2274 = vadd.f32 %v2225, %v2273
        %2275 = vmatmul.bf16.gmra.mxu0 %v514
        %v2276 = vpop.f32.mrf.mxu0
        %v2277 = vadd.f32 %v2228, %v2276
        %v2278 = vpop.f32.mrf.mxu0
        %v2279 = vadd.f32 %v2230, %v2278
        %2280 = vmatmul.bf16.gmra.mxu0 %v518
        %v2281 = vpop.f32.mrf.mxu0
        %v2282 = vadd.f32 %v2233, %v2281
        %v2283 = vpop.f32.mrf.mxu0
        %v2284 = vadd.f32 %v2235, %v2283
        %2285 = vmatmul.bf16.gmra.mxu0 %v522
        %v2286 = vpop.f32.mrf.mxu0
        %v2287 = vadd.f32 %v2238, %v2286
        %v2288 = vpop.f32.mrf.mxu0
        %v2289 = vadd.f32 %v2240, %v2288
        %2290 = vmatmul.bf16.gmra.mxu0 %v526
        %v2291 = vpop.f32.mrf.mxu0
        %v2292 = vadd.f32 %v2243, %v2291
        %v2293 = vpop.f32.mrf.mxu0
        %v2294 = vadd.f32 %v2245, %v2293
        %2295 = vmatmul.bf16.gmra.mxu0 %v530
        %v2296 = vpop.f32.mrf.mxu0
        %v2297 = vadd.f32 %v2248, %v2296
        %v2298 = vpop.f32.mrf.mxu0
        %v2299 = vadd.f32 %v2250, %v2298
        %2300 = vmatmul.bf16.gmra.mxu0 %v534
        %v2301 = vpop.f32.mrf.mxu0
        %v2302 = vadd.f32 %v2253, %v2301
        %v2303 = vpop.f32.mrf.mxu0
        %v2304 = vadd.f32 %v2255, %v2303
        %2305 = vmatmul.bf16.gmra.mxu0 %v538
        %v2306 = vpop.f32.mrf.mxu0
        %v2307 = vadd.f32 %v2258, %v2306
        %v2308 = vpop.f32.mrf.mxu0
        %v2309 = vadd.f32 %v2260, %v2308
        %2310 = vdwg.mxu0
        %2311 = vmatpush.bf16.msra.mxu0 %v1414
        %2312 = vmatpush.bf16.msra.mxu0 %v1409
        %2313 = vmatpush.bf16.msra.mxu0 %v1404
        %2314 = vmatpush.bf16.msra.mxu0 %v1399
        %2315 = vmatpush.bf16.msra.mxu0 %v1394
        %2316 = vmatpush.bf16.msra.mxu0 %v1389
        %2317 = vmatpush.bf16.msra.mxu0 %v1384
        %2318 = vmatpush.bf16.msra.mxu0 %v1379
        %2319 = vmatmul.bf16.gmra.mxu0 %v511
        %v2320 = vpop.f32.mrf.mxu0
        %v2321 = vadd.f32 %v2272, %v2320
        %v2322 = vpop.f32.mrf.mxu0
        %v2323 = vadd.f32 %v2274, %v2322
        %2324 = vmatmul.bf16.gmra.mxu0 %v515
        %v2325 = vpop.f32.mrf.mxu0
        %v2326 = vadd.f32 %v2277, %v2325
        %v2327 = vpop.f32.mrf.mxu0
        %v2328 = vadd.f32 %v2279, %v2327
        %2329 = vmatmul.bf16.gmra.mxu0 %v519
        %v2330 = vpop.f32.mrf.mxu0
        %v2331 = vadd.f32 %v2282, %v2330
        %v2332 = vpop.f32.mrf.mxu0
        %v2333 = vadd.f32 %v2284, %v2332
        %2334 = vmatmul.bf16.gmra.mxu0 %v523
        %v2335 = vpop.f32.mrf.mxu0
        %v2336 = vadd.f32 %v2287, %v2335
        %v2337 = vpop.f32.mrf.mxu0
        %v2338 = vadd.f32 %v2289, %v2337
        %2339 = vmatmul.bf16.gmra.mxu0 %v527
        %v2340 = vpop.f32.mrf.mxu0
        %v2341 = vadd.f32 %v2292, %v2340
        %v2342 = vpop.f32.mrf.mxu0
        %v2343 = vadd.f32 %v2294, %v2342
        %2344 = vmatmul.bf16.gmra.mxu0 %v531
        %v2345 = vpop.f32.mrf.mxu0
        %v2346 = vadd.f32 %v2297, %v2345
        %v2347 = vpop.f32.mrf.mxu0
        %v2348 = vadd.f32 %v2299, %v2347
        %2349 = vmatmul.bf16.gmra.mxu0 %v535
        %v2350 = vpop.f32.mrf.mxu0
        %v2351 = vadd.f32 %v2302, %v2350
        %v2352 = vpop.f32.mrf.mxu0
        %v2353 = vadd.f32 %v2304, %v2352
        %2354 = vmatmul.bf16.gmra.mxu0 %v539
        %v2355 = vpop.f32.mrf.mxu0
        %v2356 = vadd.f32 %v2307, %v2355
        %v2357 = vpop.f32.mrf.mxu0
        %v2358 = vadd.f32 %v2309, %v2357
        %2359 = vdwg.mxu0
        %2360 = vmatpush.bf16.msra.mxu0 %v1295
        %2361 = vmatpush.bf16.msra.mxu0 %v1290
        %2362 = vmatpush.bf16.msra.mxu0 %v1285
        %2363 = vmatpush.bf16.msra.mxu0 %v1280
        %2364 = vmatpush.bf16.msra.mxu0 %v1275
        %2365 = vmatpush.bf16.msra.mxu0 %v1270
        %2366 = vmatpush.bf16.msra.mxu0 %v1265
        %2367 = vmatpush.bf16.msra.mxu0 %v1260
        %2368 = vmatmul.bf16.gmra.mxu0 %v508
        %v2369 = vpop.f32.mrf.mxu0
        %v2370 = vadd.f32 %v738, %v2369
        %v2371 = vpop.f32.mrf.mxu0
        %v2372 = vadd.f32 %v738, %v2371
        %2373 = vmatmul.bf16.gmra.mxu0 %v512
        %v2374 = vpop.f32.mrf.mxu0
        %v2375 = vadd.f32 %v738, %v2374
        %v2376 = vpop.f32.mrf.mxu0
        %v2377 = vadd.f32 %v738, %v2376
        %2378 = vmatmul.bf16.gmra.mxu0 %v516
        %v2379 = vpop.f32.mrf.mxu0
        %v2380 = vadd.f32 %v738, %v2379
        %v2381 = vpop.f32.mrf.mxu0
        %v2382 = vadd.f32 %v738, %v2381
        %2383 = vmatmul.bf16.gmra.mxu0 %v520
        %v2384 = vpop.f32.mrf.mxu0
        %v2385 = vadd.f32 %v738, %v2384
        %v2386 = vpop.f32.mrf.mxu0
        %v2387 = vadd.f32 %v738, %v2386
        %2388 = vmatmul.bf16.gmra.mxu0 %v524
        %v2389 = vpop.f32.mrf.mxu0
        %v2390 = vadd.f32 %v738, %v2389
        %v2391 = vpop.f32.mrf.mxu0
        %v2392 = vadd.f32 %v738, %v2391
        %2393 = vmatmul.bf16.gmra.mxu0 %v528
        %v2394 = vpop.f32.mrf.mxu0
        %v2395 = vadd.f32 %v738, %v2394
        %v2396 = vpop.f32.mrf.mxu0
        %v2397 = vadd.f32 %v738, %v2396
        %2398 = vmatmul.bf16.gmra.mxu0 %v532
        %v2399 = vpop.f32.mrf.mxu0
        %v2400 = vadd.f32 %v738, %v2399
        %v2401 = vpop.f32.mrf.mxu0
        %v2402 = vadd.f32 %v738, %v2401
        %2403 = vmatmul.bf16.gmra.mxu0 %v536
        %v2404 = vpop.f32.mrf.mxu0
        %v2405 = vadd.f32 %v738, %v2404
        %v2406 = vpop.f32.mrf.mxu0
        %v2407 = vadd.f32 %v738, %v2406
        %2408 = vdwg.mxu0
        %2409 = vmatpush.bf16.msra.mxu0 %v1335
        %2410 = vmatpush.bf16.msra.mxu0 %v1330
        %2411 = vmatpush.bf16.msra.mxu0 %v1325
        %2412 = vmatpush.bf16.msra.mxu0 %v1320
        %2413 = vmatpush.bf16.msra.mxu0 %v1315
        %2414 = vmatpush.bf16.msra.mxu0 %v1310
        %2415 = vmatpush.bf16.msra.mxu0 %v1305
        %2416 = vmatpush.bf16.msra.mxu0 %v1300
        %2417 = vmatmul.bf16.gmra.mxu0 %v509
        %v2418 = vpop.f32.mrf.mxu0
        %v2419 = vadd.f32 %v2370, %v2418
        %v2420 = vpop.f32.mrf.mxu0
        %v2421 = vadd.f32 %v2372, %v2420
        %2422 = vmatmul.bf16.gmra.mxu0 %v513
        %v2423 = vpop.f32.mrf.mxu0
        %v2424 = vadd.f32 %v2375, %v2423
        %v2425 = vpop.f32.mrf.mxu0
        %v2426 = vadd.f32 %v2377, %v2425
        %2427 = vmatmul.bf16.gmra.mxu0 %v517
        %v2428 = vpop.f32.mrf.mxu0
        %v2429 = vadd.f32 %v2380, %v2428
        %v2430 = vpop.f32.mrf.mxu0
        %v2431 = vadd.f32 %v2382, %v2430
        %2432 = vmatmul.bf16.gmra.mxu0 %v521
        %v2433 = vpop.f32.mrf.mxu0
        %v2434 = vadd.f32 %v2385, %v2433
        %v2435 = vpop.f32.mrf.mxu0
        %v2436 = vadd.f32 %v2387, %v2435
        %2437 = vmatmul.bf16.gmra.mxu0 %v525
        %v2438 = vpop.f32.mrf.mxu0
        %v2439 = vadd.f32 %v2390, %v2438
        %v2440 = vpop.f32.mrf.mxu0
        %v2441 = vadd.f32 %v2392, %v2440
        %2442 = vmatmul.bf16.gmra.mxu0 %v529
        %v2443 = vpop.f32.mrf.mxu0
        %v2444 = vadd.f32 %v2395, %v2443
        %v2445 = vpop.f32.mrf.mxu0
        %v2446 = vadd.f32 %v2397, %v2445
        %2447 = vmatmul.bf16.gmra.mxu0 %v533
        %v2448 = vpop.f32.mrf.mxu0
        %v2449 = vadd.f32 %v2400, %v2448
        %v2450 = vpop.f32.mrf.mxu0
        %v2451 = vadd.f32 %v2402, %v2450
        %2452 = vmatmul.bf16.gmra.mxu0 %v537
        %v2453 = vpop.f32.mrf.mxu0
        %v2454 = vadd.f32 %v2405, %v2453
        %v2455 = vpop.f32.mrf.mxu0
        %v2456 = vadd.f32 %v2407, %v2455
        %2457 = vdwg.mxu0
        %2458 = vmatpush.bf16.msra.mxu0 %v1375
        %2459 = vmatpush.bf16.msra.mxu0 %v1370
        %2460 = vmatpush.bf16.msra.mxu0 %v1365
        %2461 = vmatpush.bf16.msra.mxu0 %v1360
        %2462 = vmatpush.bf16.msra.mxu0 %v1355
        %2463 = vmatpush.bf16.msra.mxu0 %v1350
        %2464 = vmatpush.bf16.msra.mxu0 %v1345
        %2465 = vmatpush.bf16.msra.mxu0 %v1340
        %2466 = vmatmul.bf16.gmra.mxu0 %v510
        %v2467 = vpop.f32.mrf.mxu0
        %v2468 = vadd.f32 %v2419, %v2467
        %v2469 = vpop.f32.mrf.mxu0
        %v2470 = vadd.f32 %v2421, %v2469
        %2471 = vmatmul.bf16.gmra.mxu0 %v514
        %v2472 = vpop.f32.mrf.mxu0
        %v2473 = vadd.f32 %v2424, %v2472
        %v2474 = vpop.f32.mrf.mxu0
        %v2475 = vadd.f32 %v2426, %v2474
        %2476 = vmatmul.bf16.gmra.mxu0 %v518
        %v2477 = vpop.f32.mrf.mxu0
        %v2478 = vadd.f32 %v2429, %v2477
        %v2479 = vpop.f32.mrf.mxu0
        %v2480 = vadd.f32 %v2431, %v2479
        %2481 = vmatmul.bf16.gmra.mxu0 %v522
        %v2482 = vpop.f32.mrf.mxu0
        %v2483 = vadd.f32 %v2434, %v2482
        %v2484 = vpop.f32.mrf.mxu0
        %v2485 = vadd.f32 %v2436, %v2484
        %2486 = vmatmul.bf16.gmra.mxu0 %v526
        %v2487 = vpop.f32.mrf.mxu0
        %v2488 = vadd.f32 %v2439, %v2487
        %v2489 = vpop.f32.mrf.mxu0
        %v2490 = vadd.f32 %v2441, %v2489
        %2491 = vmatmul.bf16.gmra.mxu0 %v530
        %v2492 = vpop.f32.mrf.mxu0
        %v2493 = vadd.f32 %v2444, %v2492
        %v2494 = vpop.f32.mrf.mxu0
        %v2495 = vadd.f32 %v2446, %v2494
        %2496 = vmatmul.bf16.gmra.mxu0 %v534
        %v2497 = vpop.f32.mrf.mxu0
        %v2498 = vadd.f32 %v2449, %v2497
        %v2499 = vpop.f32.mrf.mxu0
        %v2500 = vadd.f32 %v2451, %v2499
        %2501 = vmatmul.bf16.gmra.mxu0 %v538
        %v2502 = vpop.f32.mrf.mxu0
        %v2503 = vadd.f32 %v2454, %v2502
        %v2504 = vpop.f32.mrf.mxu0
        %v2505 = vadd.f32 %v2456, %v2504
        %2506 = vdwg.mxu0
        %2507 = vmatpush.bf16.msra.mxu0 %v1415
        %2508 = vmatpush.bf16.msra.mxu0 %v1410
        %2509 = vmatpush.bf16.msra.mxu0 %v1405
        %2510 = vmatpush.bf16.msra.mxu0 %v1400
        %2511 = vmatpush.bf16.msra.mxu0 %v1395
        %2512 = vmatpush.bf16.msra.mxu0 %v1390
        %2513 = vmatpush.bf16.msra.mxu0 %v1385
        %2514 = vmatpush.bf16.msra.mxu0 %v1380
        %2515 = vmatmul.bf16.gmra.mxu0 %v511
        %v2516 = vpop.f32.mrf.mxu0
        %v2517 = vadd.f32 %v2468, %v2516
        %v2518 = vpop.f32.mrf.mxu0
        %v2519 = vadd.f32 %v2470, %v2518
        %2520 = vmatmul.bf16.gmra.mxu0 %v515
        %v2521 = vpop.f32.mrf.mxu0
        %v2522 = vadd.f32 %v2473, %v2521
        %v2523 = vpop.f32.mrf.mxu0
        %v2524 = vadd.f32 %v2475, %v2523
        %2525 = vmatmul.bf16.gmra.mxu0 %v519
        %v2526 = vpop.f32.mrf.mxu0
        %v2527 = vadd.f32 %v2478, %v2526
        %v2528 = vpop.f32.mrf.mxu0
        %v2529 = vadd.f32 %v2480, %v2528
        %2530 = vmatmul.bf16.gmra.mxu0 %v523
        %v2531 = vpop.f32.mrf.mxu0
        %v2532 = vadd.f32 %v2483, %v2531
        %v2533 = vpop.f32.mrf.mxu0
        %v2534 = vadd.f32 %v2485, %v2533
        %2535 = vmatmul.bf16.gmra.mxu0 %v527
        %v2536 = vpop.f32.mrf.mxu0
        %v2537 = vadd.f32 %v2488, %v2536
        %v2538 = vpop.f32.mrf.mxu0
        %v2539 = vadd.f32 %v2490, %v2538
        %2540 = vmatmul.bf16.gmra.mxu0 %v531
        %v2541 = vpop.f32.mrf.mxu0
        %v2542 = vadd.f32 %v2493, %v2541
        %v2543 = vpop.f32.mrf.mxu0
        %v2544 = vadd.f32 %v2495, %v2543
        %2545 = vmatmul.bf16.gmra.mxu0 %v535
        %v2546 = vpop.f32.mrf.mxu0
        %v2547 = vadd.f32 %v2498, %v2546
        %v2548 = vpop.f32.mrf.mxu0
        %v2549 = vadd.f32 %v2500, %v2548
        %2550 = vmatmul.bf16.gmra.mxu0 %v539
        %v2551 = vpop.f32.mrf.mxu0
        %v2552 = vadd.f32 %v2503, %v2551
        %v2553 = vpop.f32.mrf.mxu0
        %v2554 = vadd.f32 %v2505, %v2553
        %2555 = vdwg.mxu0
        %v2556 = vmax.f32 %v2125, 0.0
        %v2557 = vmax.f32 %v2321, 0.0
        %v2558 = vmax.f32 %v2517, 0.0
        %v2559 = vmax.f32 %v2127, 0.0
        %v2560 = vmax.f32 %v2323, 0.0
        %v2561 = vmax.f32 %v2519, 0.0
        %v2562 = vmax.f32 %v2130, 0.0
        %v2563 = vmax.f32 %v2326, 0.0
        %v2564 = vmax.f32 %v2522, 0.0
        %v2565 = vmax.f32 %v2132, 0.0
        %v2566 = vmax.f32 %v2328, 0.0
        %v2567 = vmax.f32 %v2524, 0.0
        %v2568 = vmax.f32 %v2135, 0.0
        %v2569 = vmax.f32 %v2331, 0.0
        %v2570 = vmax.f32 %v2527, 0.0
        %v2571 = vmax.f32 %v2137, 0.0
        %v2572 = vmax.f32 %v2333, 0.0
        %v2573 = vmax.f32 %v2529, 0.0
        %v2574 = vmax.f32 %v2140, 0.0
        %v2575 = vmax.f32 %v2336, 0.0
        %v2576 = vmax.f32 %v2532, 0.0
        %v2577 = vmax.f32 %v2142, 0.0
        %v2578 = vmax.f32 %v2338, 0.0
        %v2579 = vmax.f32 %v2534, 0.0
        %v2580 = vmax.f32 %v2145, 0.0
        %v2581 = vmax.f32 %v2341, 0.0
        %v2582 = vmax.f32 %v2537, 0.0
        %v2583 = vmax.f32 %v2147, 0.0
        %v2584 = vmax.f32 %v2343, 0.0
        %v2585 = vmax.f32 %v2539, 0.0
        %v2586 = vmax.f32 %v2150, 0.0
        %v2587 = vmax.f32 %v2346, 0.0
        %v2588 = vmax.f32 %v2542, 0.0
        %v2589 = vmax.f32 %v2152, 0.0
        %v2590 = vmax.f32 %v2348, 0.0
        %v2591 = vmax.f32 %v2544, 0.0
        %v2592 = vmax.f32 %v2155, 0.0
        %v2593 = vmax.f32 %v2351, 0.0
        %v2594 = vmax.f32 %v2547, 0.0
        %v2595 = vmax.f32 %v2157, 0.0
        %v2596 = vmax.f32 %v2353, 0.0
        %v2597 = vmax.f32 %v2549, 0.0
        %v2598 = vmax.f32 %v2160, 0.0
        %v2599 = vmax.f32 %v2356, 0.0
        %v2600 = vmax.f32 %v2552, 0.0
        %v2601 = vmax.f32 %v2162, 0.0
        %v2602 = vmax.f32 %v2358, 0.0
        %v2603 = vmax.f32 %v2554, 0.0
        %v2604 = vpack.c.bf16 %v2559, %v2556
        %v2605 = vpack.c.bf16 %v2560, %v2557
        %v2606 = vpack.c.bf16 %v2561, %v2558
        %v2607 = vpack.c.bf16 %v2565, %v2562
        %v2608 = vpack.c.bf16 %v2566, %v2563
        %v2609 = vpack.c.bf16 %v2567, %v2564
        %v2610 = vpack.c.bf16 %v2571, %v2568
        %v2611 = vpack.c.bf16 %v2572, %v2569
        %v2612 = vpack.c.bf16 %v2573, %v2570
        %v2613 = vpack.c.bf16 %v2577, %v2574
        %v2614 = vpack.c.bf16 %v2578, %v2575
        %v2615 = vpack.c.bf16 %v2579, %v2576
        %v2616 = vpack.c.bf16 %v2583, %v2580
        %v2617 = vpack.c.bf16 %v2584, %v2581
        %v2618 = vpack.c.bf16 %v2585, %v2582
        %v2619 = vpack.c.bf16 %v2589, %v2586
        %v2620 = vpack.c.bf16 %v2590, %v2587
        %v2621 = vpack.c.bf16 %v2591, %v2588
        %v2622 = vpack.c.bf16 %v2595, %v2592
        %v2623 = vpack.c.bf16 %v2596, %v2593
        %v2624 = vpack.c.bf16 %v2597, %v2594
        %v2625 = vpack.c.bf16 %v2601, %v2598
        %v2626 = vpack.c.bf16 %v2602, %v2599
        %v2627 = vpack.c.bf16 %v2603, %v2600
        %v2628 = vld [vmem:[%s7] sm:$0x3f]
        %v2629 = vld [vmem:[%s8 + $0x1] sm:$0x7]
        %2631 = vset.pattern.permute.xlu0 0
        %2632 = vperm.xlu0 %2631, %v2629
        %v2633 = vpop.permute.xlu0 %2632
        %2636 = vst [vmem:[#allocation1] ss:$4 sm:$0xff] %v2628
        %v2637 = vld.sshfl [vmem:[#allocation1] sm:$0xff pattern:$0x73625140]
        %v2638 = vld.sshfl [vmem:[#allocation1 + $0x8] sm:$0xff pattern:$0x73625140]
        %v2639 = vld.sshfl [vmem:[#allocation1 + $0x10] sm:$0xff pattern:$0x73625140]
        %2643 = vmatpush.bf16.xpose.msra.mxu0 %v2625
        %2644 = vmatpush.bf16.xpose.msra.mxu0 %v2622
        %2645 = vmatpush.bf16.xpose.msra.mxu0 %v2619
        %2646 = vmatpush.bf16.xpose.msra.mxu0 %v2616
        %2647 = vmatpush.bf16.xpose.msra.mxu0 %v2613
        %2648 = vmatpush.bf16.xpose.msra.mxu0 %v2610
        %2649 = vmatpush.bf16.xpose.msra.mxu0 %v2607
        %2650 = vmatpush.bf16.xpose.msra.mxu0 %v2604
        %2651 = vmatmul.bf16.gmra.mxu0 %v2637
        %v2652 = vpop.f32.mrf.mxu0
        %v2653 = vadd.f32 %v2633, %v2652
        %v2654 = vpop.f32.mrf.mxu0
        %2655 = vdwg.mxu0
        %2656 = vmatpush.bf16.xpose.msra.mxu0 %v2626
        %2657 = vmatpush.bf16.xpose.msra.mxu0 %v2623
        %2658 = vmatpush.bf16.xpose.msra.mxu0 %v2620
        %2659 = vmatpush.bf16.xpose.msra.mxu0 %v2617
        %2660 = vmatpush.bf16.xpose.msra.mxu0 %v2614
        %2661 = vmatpush.bf16.xpose.msra.mxu0 %v2611
        %2662 = vmatpush.bf16.xpose.msra.mxu0 %v2608
        %2663 = vmatpush.bf16.xpose.msra.mxu0 %v2605
        %2664 = vmatmul.bf16.gmra.mxu0 %v2638
        %v2665 = vpop.f32.mrf.mxu0
        %v2666 = vadd.f32 %v2653, %v2665
        %v2667 = vpop.f32.mrf.mxu0
        %2668 = vdwg.mxu0
        %2669 = vmatpush.bf16.xpose.msra.mxu0 %v2627
        %2670 = vmatpush.bf16.xpose.msra.mxu0 %v2624
        %2671 = vmatpush.bf16.xpose.msra.mxu0 %v2621
        %2672 = vmatpush.bf16.xpose.msra.mxu0 %v2618
        %2673 = vmatpush.bf16.xpose.msra.mxu0 %v2615
        %2674 = vmatpush.bf16.xpose.msra.mxu0 %v2612
        %2675 = vmatpush.bf16.xpose.msra.mxu0 %v2609
        %2676 = vmatpush.bf16.xpose.msra.mxu0 %v2606
        %2677 = vmatmul.bf16.gmra.mxu0 %v2639
        %v2678 = vpop.f32.mrf.mxu0
        %v2679 = vadd.f32 %v2666, %v2678
        %v2680 = vpop.f32.mrf.mxu0
        %2681 = vdwg.mxu0
        %v2682 = vld [vmem:[#allocation7] ss:$2 sm:$0x3]
        %s2683 = scalar_lea.vmem [#allocation7], 1
        %v2684 = vld [vmem:[%s2683] ss:$2 sm:$0x3]
        %v2685 = vadd.f32 %v1733, %v1929
        %2686 = vadd.xlane.f32.xlu0 %v2685
        %v2687 = vpop.xlane.xlu0 %2686
        %v2688 = vadd.f32 %v1735, %v1931
        %2689 = vadd.xlane.f32.xlu0 %v2688
        %v2690 = vpop.xlane.xlu0 %2689
        %v2691 = vadd.f32 %v1738, %v1934
        %2692 = vadd.xlane.f32.xlu0 %v2691
        %v2693 = vpop.xlane.xlu0 %2692
        %v2694 = vadd.f32 %v1740, %v1936
        %2695 = vadd.xlane.f32.xlu0 %v2694
        %v2696 = vpop.xlane.xlu0 %2695
        %v2697 = vadd.f32 %v1743, %v1939
        %2698 = vadd.xlane.f32.xlu0 %v2697
        %v2699 = vpop.xlane.xlu0 %2698
        %v2700 = vadd.f32 %v1745, %v1941
        %2701 = vadd.xlane.f32.xlu0 %v2700
        %v2702 = vpop.xlane.xlu0 %2701
        %v2703 = vadd.f32 %v1748, %v1944
        %2704 = vadd.xlane.f32.xlu0 %v2703
        %v2705 = vpop.xlane.xlu0 %2704
        %v2706 = vadd.f32 %v1750, %v1946
        %2707 = vadd.xlane.f32.xlu0 %v2706
        %v2708 = vpop.xlane.xlu0 %2707
        %v2709 = vadd.f32 %v1753, %v1949
        %2710 = vadd.xlane.f32.xlu0 %v2709
        %v2711 = vpop.xlane.xlu0 %2710
        %v2712 = vadd.f32 %v1755, %v1951
        %2713 = vadd.xlane.f32.xlu0 %v2712
        %v2714 = vpop.xlane.xlu0 %2713
        %v2715 = vadd.f32 %v1758, %v1954
        %2716 = vadd.xlane.f32.xlu0 %v2715
        %v2717 = vpop.xlane.xlu0 %2716
        %v2718 = vadd.f32 %v1760, %v1956
        %2719 = vadd.xlane.f32.xlu0 %v2718
        %v2720 = vpop.xlane.xlu0 %2719
        %v2721 = vadd.f32 %v1763, %v1959
        %2722 = vadd.xlane.f32.xlu0 %v2721
        %v2723 = vpop.xlane.xlu0 %2722
        %v2724 = vadd.f32 %v1765, %v1961
        %2725 = vadd.xlane.f32.xlu0 %v2724
        %v2726 = vpop.xlane.xlu0 %2725
        %v2727 = vadd.f32 %v1768, %v1964
        %2728 = vadd.xlane.f32.xlu0 %v2727
        %v2729 = vpop.xlane.xlu0 %2728
        %v2730 = vadd.f32 %v1770, %v1966
        %2731 = vadd.xlane.f32.xlu0 %v2730
        %v2732 = vpop.xlane.xlu0 %2731
        %v2733 = vrcp.pop 256.0
        %v2734 = vmul.f32 256.0, %v2733
        %v2735 = vsub.f32 1.0, %v2734
        %v2736 = vmul.f32 %v2733, %v2735
        %v2737 = vadd.f32 %v2733, %v2736
        %vm2738 = vweird.f32 %v2733
        %v2739 = vsel %vm2738, %v2733, %v2737
        %v2740 = vmul.f32 %v2687, %v2739
        %v2741 = vmul.f32 %v2690, %v2739
        %v2742 = vmul.f32 %v2693, %v2739
        %v2743 = vmul.f32 %v2696, %v2739
        %v2744 = vmul.f32 %v2699, %v2739
        %v2745 = vmul.f32 %v2702, %v2739
        %v2746 = vmul.f32 %v2705, %v2739
        %v2747 = vmul.f32 %v2708, %v2739
        %v2748 = vmul.f32 %v2711, %v2739
        %v2749 = vmul.f32 %v2714, %v2739
        %v2750 = vmul.f32 %v2717, %v2739
        %v2751 = vmul.f32 %v2720, %v2739
        %v2752 = vmul.f32 %v2723, %v2739
        %v2753 = vmul.f32 %v2726, %v2739
        %v2754 = vmul.f32 %v2729, %v2739
        %v2755 = vmul.f32 %v2732, %v2739
        %v2756 = vsub.f32 %v1733, %v2740
        %v2757 = vsub.f32 %v1929, %v2740
        %v2758 = vsub.f32 %v1735, %v2741
        %v2759 = vsub.f32 %v1931, %v2741
        %v2760 = vsub.f32 %v1738, %v2742
        %v2761 = vsub.f32 %v1934, %v2742
        %v2762 = vsub.f32 %v1740, %v2743
        %v2763 = vsub.f32 %v1936, %v2743
        %v2764 = vsub.f32 %v1743, %v2744
        %v2765 = vsub.f32 %v1939, %v2744
        %v2766 = vsub.f32 %v1745, %v2745
        %v2767 = vsub.f32 %v1941, %v2745
        %v2768 = vsub.f32 %v1748, %v2746
        %v2769 = vsub.f32 %v1944, %v2746
        %v2770 = vsub.f32 %v1750, %v2747
        %v2771 = vsub.f32 %v1946, %v2747
        %v2772 = vsub.f32 %v1753, %v2748
        %v2773 = vsub.f32 %v1949, %v2748
        %v2774 = vsub.f32 %v1755, %v2749
        %v2775 = vsub.f32 %v1951, %v2749
        %v2776 = vsub.f32 %v1758, %v2750
        %v2777 = vsub.f32 %v1954, %v2750
        %v2778 = vsub.f32 %v1760, %v2751
        %v2779 = vsub.f32 %v1956, %v2751
        %v2780 = vsub.f32 %v1763, %v2752
        %v2781 = vsub.f32 %v1959, %v2752
        %v2782 = vsub.f32 %v1765, %v2753
        %v2783 = vsub.f32 %v1961, %v2753
        %v2784 = vsub.f32 %v1768, %v2754
        %v2785 = vsub.f32 %v1964, %v2754
        %v2786 = vsub.f32 %v1770, %v2755
        %v2787 = vsub.f32 %v1966, %v2755
        %v2788 = vmul.f32 %v2756, %v2756
        %v2789 = vmul.f32 %v2757, %v2757
        %v2790 = vmul.f32 %v2758, %v2758
        %v2791 = vmul.f32 %v2759, %v2759
        %v2792 = vmul.f32 %v2760, %v2760
        %v2793 = vmul.f32 %v2761, %v2761
        %v2794 = vmul.f32 %v2762, %v2762
        %v2795 = vmul.f32 %v2763, %v2763
        %v2796 = vmul.f32 %v2764, %v2764
        %v2797 = vmul.f32 %v2765, %v2765
        %v2798 = vmul.f32 %v2766, %v2766
        %v2799 = vmul.f32 %v2767, %v2767
        %v2800 = vmul.f32 %v2768, %v2768
        %v2801 = vmul.f32 %v2769, %v2769
        %v2802 = vmul.f32 %v2770, %v2770
        %v2803 = vmul.f32 %v2771, %v2771
        %v2804 = vmul.f32 %v2772, %v2772
        %v2805 = vmul.f32 %v2773, %v2773
        %v2806 = vmul.f32 %v2774, %v2774
        %v2807 = vmul.f32 %v2775, %v2775
        %v2808 = vmul.f32 %v2776, %v2776
        %v2809 = vmul.f32 %v2777, %v2777
        %v2810 = vmul.f32 %v2778, %v2778
        %v2811 = vmul.f32 %v2779, %v2779
        %v2812 = vmul.f32 %v2780, %v2780
        %v2813 = vmul.f32 %v2781, %v2781
        %v2814 = vmul.f32 %v2782, %v2782
        %v2815 = vmul.f32 %v2783, %v2783
        %v2816 = vmul.f32 %v2784, %v2784
        %v2817 = vmul.f32 %v2785, %v2785
        %v2818 = vmul.f32 %v2786, %v2786
        %v2819 = vmul.f32 %v2787, %v2787
        %v2820 = vadd.f32 %v2788, %v2789
        %2821 = vadd.xlane.f32.xlu0 %v2820
        %v2822 = vpop.xlane.xlu0 %2821
        %v2823 = vadd.f32 %v2790, %v2791
        %2824 = vadd.xlane.f32.xlu0 %v2823
        %v2825 = vpop.xlane.xlu0 %2824
        %v2826 = vadd.f32 %v2792, %v2793
        %2827 = vadd.xlane.f32.xlu0 %v2826
        %v2828 = vpop.xlane.xlu0 %2827
        %v2829 = vadd.f32 %v2794, %v2795
        %2830 = vadd.xlane.f32.xlu0 %v2829
        %v2831 = vpop.xlane.xlu0 %2830
        %v2832 = vadd.f32 %v2796, %v2797
        %2833 = vadd.xlane.f32.xlu0 %v2832
        %v2834 = vpop.xlane.xlu0 %2833
        %v2835 = vadd.f32 %v2798, %v2799
        %2836 = vadd.xlane.f32.xlu0 %v2835
        %v2837 = vpop.xlane.xlu0 %2836
        %v2838 = vadd.f32 %v2800, %v2801
        %2839 = vadd.xlane.f32.xlu0 %v2838
        %v2840 = vpop.xlane.xlu0 %2839
        %v2841 = vadd.f32 %v2802, %v2803
        %2842 = vadd.xlane.f32.xlu0 %v2841
        %v2843 = vpop.xlane.xlu0 %2842
        %v2844 = vadd.f32 %v2804, %v2805
        %2845 = vadd.xlane.f32.xlu0 %v2844
        %v2846 = vpop.xlane.xlu0 %2845
        %v2847 = vadd.f32 %v2806, %v2807
        %2848 = vadd.xlane.f32.xlu0 %v2847
        %v2849 = vpop.xlane.xlu0 %2848
        %v2850 = vadd.f32 %v2808, %v2809
        %2851 = vadd.xlane.f32.xlu0 %v2850
        %v2852 = vpop.xlane.xlu0 %2851
        %v2853 = vadd.f32 %v2810, %v2811
        %2854 = vadd.xlane.f32.xlu0 %v2853
        %v2855 = vpop.xlane.xlu0 %2854
        %v2856 = vadd.f32 %v2812, %v2813
        %2857 = vadd.xlane.f32.xlu0 %v2856
        %v2858 = vpop.xlane.xlu0 %2857
        %v2859 = vadd.f32 %v2814, %v2815
        %2860 = vadd.xlane.f32.xlu0 %v2859
        %v2861 = vpop.xlane.xlu0 %2860
        %v2862 = vadd.f32 %v2816, %v2817
        %2863 = vadd.xlane.f32.xlu0 %v2862
        %v2864 = vpop.xlane.xlu0 %2863
        %v2865 = vadd.f32 %v2818, %v2819
        %2866 = vadd.xlane.f32.xlu0 %v2865
        %v2867 = vpop.xlane.xlu0 %2866
        %v2868 = vmul.f32 %v2822, %v2739
        %v2869 = vmul.f32 %v2825, %v2739
        %v2870 = vmul.f32 %v2828, %v2739
        %v2871 = vmul.f32 %v2831, %v2739
        %v2872 = vmul.f32 %v2834, %v2739
        %v2873 = vmul.f32 %v2837, %v2739
        %v2874 = vmul.f32 %v2840, %v2739
        %v2875 = vmul.f32 %v2843, %v2739
        %v2876 = vmul.f32 %v2846, %v2739
        %v2877 = vmul.f32 %v2849, %v2739
        %v2878 = vmul.f32 %v2852, %v2739
        %v2879 = vmul.f32 %v2855, %v2739
        %v2880 = vmul.f32 %v2858, %v2739
        %v2881 = vmul.f32 %v2861, %v2739
        %v2882 = vmul.f32 %v2864, %v2739
        %v2883 = vmul.f32 %v2867, %v2739
        %v2884 = vadd.f32 %v2868, 1e-05
        %v2885 = vadd.f32 %v2869, 1e-05
        %v2886 = vadd.f32 %v2870, 1e-05
        %v2887 = vadd.f32 %v2871, 1e-05
        %v2888 = vadd.f32 %v2872, 1e-05
        %v2889 = vadd.f32 %v2873, 1e-05
        %v2890 = vadd.f32 %v2874, 1e-05
        %v2891 = vadd.f32 %v2875, 1e-05
        %v2892 = vadd.f32 %v2876, 1e-05
        %v2893 = vadd.f32 %v2877, 1e-05
        %v2894 = vadd.f32 %v2878, 1e-05
        %v2895 = vadd.f32 %v2879, 1e-05
        %v2896 = vadd.f32 %v2880, 1e-05
        %v2897 = vadd.f32 %v2881, 1e-05
        %v2898 = vadd.f32 %v2882, 1e-05
        %v2899 = vadd.f32 %v2883, 1e-05
        %v2900 = vrsqrt.pop %v2884
        %v2901 = vmul.f32 %v2900, %v2884
        %v2902 = vmul.f32 %v2901, %v2900
        %v2903 = vmul.f32 0.5, %v2902
        %v2904 = vsub.f32 1.5, %v2903
        %v2905 = vmul.f32 %v2900, %v2904
        %vm2906 = vweird.f32 %v2884
        %vm2907 = vweird.f32 %v2900
        %vm2908 = vmor %vm2906, %vm2907
        %v2909 = vsel %vm2908, %v2900, %v2905
        %v2910 = vrsqrt.pop %v2885
        %v2911 = vmul.f32 %v2910, %v2885
        %v2912 = vmul.f32 %v2911, %v2910
        %v2913 = vmul.f32 0.5, %v2912
        %v2914 = vsub.f32 1.5, %v2913
        %v2915 = vmul.f32 %v2910, %v2914
        %vm2916 = vweird.f32 %v2885
        %vm2917 = vweird.f32 %v2910
        %vm2918 = vmor %vm2916, %vm2917
        %v2919 = vsel %vm2918, %v2910, %v2915
        %v2920 = vrsqrt.pop %v2886
        %v2921 = vmul.f32 %v2920, %v2886
        %v2922 = vmul.f32 %v2921, %v2920
        %v2923 = vmul.f32 0.5, %v2922
        %v2924 = vsub.f32 1.5, %v2923
        %v2925 = vmul.f32 %v2920, %v2924
        %vm2926 = vweird.f32 %v2886
        %vm2927 = vweird.f32 %v2920
        %vm2928 = vmor %vm2926, %vm2927
        %v2929 = vsel %vm2928, %v2920, %v2925
        %v2930 = vrsqrt.pop %v2887
        %v2931 = vmul.f32 %v2930, %v2887
        %v2932 = vmul.f32 %v2931, %v2930
        %v2933 = vmul.f32 0.5, %v2932
        %v2934 = vsub.f32 1.5, %v2933
        %v2935 = vmul.f32 %v2930, %v2934
        %vm2936 = vweird.f32 %v2887
        %vm2937 = vweird.f32 %v2930
        %vm2938 = vmor %vm2936, %vm2937
        %v2939 = vsel %vm2938, %v2930, %v2935
        %v2940 = vrsqrt.pop %v2888
        %v2941 = vmul.f32 %v2940, %v2888
        %v2942 = vmul.f32 %v2941, %v2940
        %v2943 = vmul.f32 0.5, %v2942
        %v2944 = vsub.f32 1.5, %v2943
        %v2945 = vmul.f32 %v2940, %v2944
        %vm2946 = vweird.f32 %v2888
        %vm2947 = vweird.f32 %v2940
        %vm2948 = vmor %vm2946, %vm2947
        %v2949 = vsel %vm2948, %v2940, %v2945
        %v2950 = vrsqrt.pop %v2889
        %v2951 = vmul.f32 %v2950, %v2889
        %v2952 = vmul.f32 %v2951, %v2950
        %v2953 = vmul.f32 0.5, %v2952
        %v2954 = vsub.f32 1.5, %v2953
        %v2955 = vmul.f32 %v2950, %v2954
        %vm2956 = vweird.f32 %v2889
        %vm2957 = vweird.f32 %v2950
        %vm2958 = vmor %vm2956, %vm2957
        %v2959 = vsel %vm2958, %v2950, %v2955
        %v2960 = vrsqrt.pop %v2890
        %v2961 = vmul.f32 %v2960, %v2890
        %v2962 = vmul.f32 %v2961, %v2960
        %v2963 = vmul.f32 0.5, %v2962
        %v2964 = vsub.f32 1.5, %v2963
        %v2965 = vmul.f32 %v2960, %v2964
        %vm2966 = vweird.f32 %v2890
        %vm2967 = vweird.f32 %v2960
        %vm2968 = vmor %vm2966, %vm2967
        %v2969 = vsel %vm2968, %v2960, %v2965
        %v2970 = vrsqrt.pop %v2891
        %v2971 = vmul.f32 %v2970, %v2891
        %v2972 = vmul.f32 %v2971, %v2970
        %v2973 = vmul.f32 0.5, %v2972
        %v2974 = vsub.f32 1.5, %v2973
        %v2975 = vmul.f32 %v2970, %v2974
        %vm2976 = vweird.f32 %v2891
        %vm2977 = vweird.f32 %v2970
        %vm2978 = vmor %vm2976, %vm2977
        %v2979 = vsel %vm2978, %v2970, %v2975
        %v2980 = vrsqrt.pop %v2892
        %v2981 = vmul.f32 %v2980, %v2892
        %v2982 = vmul.f32 %v2981, %v2980
        %v2983 = vmul.f32 0.5, %v2982
        %v2984 = vsub.f32 1.5, %v2983
        %v2985 = vmul.f32 %v2980, %v2984
        %vm2986 = vweird.f32 %v2892
        %vm2987 = vweird.f32 %v2980
        %vm2988 = vmor %vm2986, %vm2987
        %v2989 = vsel %vm2988, %v2980, %v2985
        %v2990 = vrsqrt.pop %v2893
        %v2991 = vmul.f32 %v2990, %v2893
        %v2992 = vmul.f32 %v2991, %v2990
        %v2993 = vmul.f32 0.5, %v2992
        %v2994 = vsub.f32 1.5, %v2993
        %v2995 = vmul.f32 %v2990, %v2994
        %vm2996 = vweird.f32 %v2893
        %vm2997 = vweird.f32 %v2990
        %vm2998 = vmor %vm2996, %vm2997
        %v2999 = vsel %vm2998, %v2990, %v2995
        %v3000 = vrsqrt.pop %v2894
        %v3001 = vmul.f32 %v3000, %v2894
        %v3002 = vmul.f32 %v3001, %v3000
        %v3003 = vmul.f32 0.5, %v3002
        %v3004 = vsub.f32 1.5, %v3003
        %v3005 = vmul.f32 %v3000, %v3004
        %vm3006 = vweird.f32 %v2894
        %vm3007 = vweird.f32 %v3000
        %vm3008 = vmor %vm3006, %vm3007
        %v3009 = vsel %vm3008, %v3000, %v3005
        %v3010 = vrsqrt.pop %v2895
        %v3011 = vmul.f32 %v3010, %v2895
        %v3012 = vmul.f32 %v3011, %v3010
        %v3013 = vmul.f32 0.5, %v3012
        %v3014 = vsub.f32 1.5, %v3013
        %v3015 = vmul.f32 %v3010, %v3014
        %vm3016 = vweird.f32 %v2895
        %vm3017 = vweird.f32 %v3010
        %vm3018 = vmor %vm3016, %vm3017
        %v3019 = vsel %vm3018, %v3010, %v3015
        %v3020 = vrsqrt.pop %v2896
        %v3021 = vmul.f32 %v3020, %v2896
        %v3022 = vmul.f32 %v3021, %v3020
        %v3023 = vmul.f32 0.5, %v3022
        %v3024 = vsub.f32 1.5, %v3023
        %v3025 = vmul.f32 %v3020, %v3024
        %vm3026 = vweird.f32 %v2896
        %vm3027 = vweird.f32 %v3020
        %vm3028 = vmor %vm3026, %vm3027
        %v3029 = vsel %vm3028, %v3020, %v3025
        %v3030 = vrsqrt.pop %v2897
        %v3031 = vmul.f32 %v3030, %v2897
        %v3032 = vmul.f32 %v3031, %v3030
        %v3033 = vmul.f32 0.5, %v3032
        %v3034 = vsub.f32 1.5, %v3033
        %v3035 = vmul.f32 %v3030, %v3034
        %vm3036 = vweird.f32 %v2897
        %vm3037 = vweird.f32 %v3030
        %vm3038 = vmor %vm3036, %vm3037
        %v3039 = vsel %vm3038, %v3030, %v3035
        %v3040 = vrsqrt.pop %v2898
        %v3041 = vmul.f32 %v3040, %v2898
        %v3042 = vmul.f32 %v3041, %v3040
        %v3043 = vmul.f32 0.5, %v3042
        %v3044 = vsub.f32 1.5, %v3043
        %v3045 = vmul.f32 %v3040, %v3044
        %vm3046 = vweird.f32 %v2898
        %vm3047 = vweird.f32 %v3040
        %vm3048 = vmor %vm3046, %vm3047
        %v3049 = vsel %vm3048, %v3040, %v3045
        %v3050 = vrsqrt.pop %v2899
        %v3051 = vmul.f32 %v3050, %v2899
        %v3052 = vmul.f32 %v3051, %v3050
        %v3053 = vmul.f32 0.5, %v3052
        %v3054 = vsub.f32 1.5, %v3053
        %v3055 = vmul.f32 %v3050, %v3054
        %vm3056 = vweird.f32 %v2899
        %vm3057 = vweird.f32 %v3050
        %vm3058 = vmor %vm3056, %vm3057
        %v3059 = vsel %vm3058, %v3050, %v3055
        %v3060 = vmul.f32 %v2756, %v2909
        %v3061 = vmul.f32 %v2757, %v2909
        %v3062 = vmul.f32 %v2758, %v2919
        %v3063 = vmul.f32 %v2759, %v2919
        %v3064 = vmul.f32 %v2760, %v2929
        %v3065 = vmul.f32 %v2761, %v2929
        %v3066 = vmul.f32 %v2762, %v2939
        %v3067 = vmul.f32 %v2763, %v2939
        %v3068 = vmul.f32 %v2764, %v2949
        %v3069 = vmul.f32 %v2765, %v2949
        %v3070 = vmul.f32 %v2766, %v2959
        %v3071 = vmul.f32 %v2767, %v2959
        %v3072 = vmul.f32 %v2768, %v2969
        %v3073 = vmul.f32 %v2769, %v2969
        %v3074 = vmul.f32 %v2770, %v2979
        %v3075 = vmul.f32 %v2771, %v2979
        %v3076 = vmul.f32 %v2772, %v2989
        %v3077 = vmul.f32 %v2773, %v2989
        %v3078 = vmul.f32 %v2774, %v2999
        %v3079 = vmul.f32 %v2775, %v2999
        %v3080 = vmul.f32 %v2776, %v3009
        %v3081 = vmul.f32 %v2777, %v3009
        %v3082 = vmul.f32 %v2778, %v3019
        %v3083 = vmul.f32 %v2779, %v3019
        %v3084 = vmul.f32 %v2780, %v3029
        %v3085 = vmul.f32 %v2781, %v3029
        %v3086 = vmul.f32 %v2782, %v3039
        %v3087 = vmul.f32 %v2783, %v3039
        %v3088 = vmul.f32 %v2784, %v3049
        %v3089 = vmul.f32 %v2785, %v3049
        %v3090 = vmul.f32 %v2786, %v3059
        %v3091 = vmul.f32 %v2787, %v3059
        %v3093 = vperm.slane %v2682, 0
        %v3094 = vperm.slane %v2682, 1
        %v3097 = vmul.f32 %v3060, %v3093
        %v3098 = vmul.f32 %v3061, %v3094
        %v3099 = vmul.f32 %v3062, %v3093
        %v3100 = vmul.f32 %v3063, %v3094
        %v3101 = vmul.f32 %v3064, %v3093
        %v3102 = vmul.f32 %v3065, %v3094
        %v3103 = vmul.f32 %v3066, %v3093
        %v3104 = vmul.f32 %v3067, %v3094
        %v3105 = vmul.f32 %v3068, %v3093
        %v3106 = vmul.f32 %v3069, %v3094
        %v3107 = vmul.f32 %v3070, %v3093
        %v3108 = vmul.f32 %v3071, %v3094
        %v3109 = vmul.f32 %v3072, %v3093
        %v3110 = vmul.f32 %v3073, %v3094
        %v3111 = vmul.f32 %v3074, %v3093
        %v3112 = vmul.f32 %v3075, %v3094
        %v3113 = vmul.f32 %v3076, %v3093
        %v3114 = vmul.f32 %v3077, %v3094
        %v3115 = vmul.f32 %v3078, %v3093
        %v3116 = vmul.f32 %v3079, %v3094
        %v3117 = vmul.f32 %v3080, %v3093
        %v3118 = vmul.f32 %v3081, %v3094
        %v3119 = vmul.f32 %v3082, %v3093
        %v3120 = vmul.f32 %v3083, %v3094
        %v3121 = vmul.f32 %v3084, %v3093
        %v3122 = vmul.f32 %v3085, %v3094
        %v3123 = vmul.f32 %v3086, %v3093
        %v3124 = vmul.f32 %v3087, %v3094
        %v3125 = vmul.f32 %v3088, %v3093
        %v3126 = vmul.f32 %v3089, %v3094
        %v3127 = vmul.f32 %v3090, %v3093
        %v3128 = vmul.f32 %v3091, %v3094
        %v3130 = vperm.slane %v2684, 0
        %v3131 = vperm.slane %v2684, 1
        %v3134 = vadd.f32 %v3097, %v3130
        %v3135 = vadd.f32 %v3098, %v3131
        %v3136 = vadd.f32 %v3099, %v3130
        %v3137 = vadd.f32 %v3100, %v3131
        %v3138 = vadd.f32 %v3101, %v3130
        %v3139 = vadd.f32 %v3102, %v3131
        %v3140 = vadd.f32 %v3103, %v3130
        %v3141 = vadd.f32 %v3104, %v3131
        %v3142 = vadd.f32 %v3105, %v3130
        %v3143 = vadd.f32 %v3106, %v3131
        %v3144 = vadd.f32 %v3107, %v3130
        %v3145 = vadd.f32 %v3108, %v3131
        %v3146 = vadd.f32 %v3109, %v3130
        %v3147 = vadd.f32 %v3110, %v3131
        %v3148 = vadd.f32 %v3111, %v3130
        %v3149 = vadd.f32 %v3112, %v3131
        %v3150 = vadd.f32 %v3113, %v3130
        %v3151 = vadd.f32 %v3114, %v3131
        %v3152 = vadd.f32 %v3115, %v3130
        %v3153 = vadd.f32 %v3116, %v3131
        %v3154 = vadd.f32 %v3117, %v3130
        %v3155 = vadd.f32 %v3118, %v3131
        %v3156 = vadd.f32 %v3119, %v3130
        %v3157 = vadd.f32 %v3120, %v3131
        %v3158 = vadd.f32 %v3121, %v3130
        %v3159 = vadd.f32 %v3122, %v3131
        %v3160 = vadd.f32 %v3123, %v3130
        %v3161 = vadd.f32 %v3124, %v3131
        %v3162 = vadd.f32 %v3125, %v3130
        %v3163 = vadd.f32 %v3126, %v3131
        %v3164 = vadd.f32 %v3127, %v3130
        %v3165 = vadd.f32 %v3128, %v3131
        %v3166 = vmax.f32 %v3134, 0.0
        %v3167 = vmax.f32 %v3135, 0.0
        %v3168 = vmax.f32 %v3136, 0.0
        %v3169 = vmax.f32 %v3137, 0.0
        %v3170 = vmax.f32 %v3138, 0.0
        %v3171 = vmax.f32 %v3139, 0.0
        %v3172 = vmax.f32 %v3140, 0.0
        %v3173 = vmax.f32 %v3141, 0.0
        %v3174 = vmax.f32 %v3142, 0.0
        %v3175 = vmax.f32 %v3143, 0.0
        %v3176 = vmax.f32 %v3144, 0.0
        %v3177 = vmax.f32 %v3145, 0.0
        %v3178 = vmax.f32 %v3146, 0.0
        %v3179 = vmax.f32 %v3147, 0.0
        %v3180 = vmax.f32 %v3148, 0.0
        %v3181 = vmax.f32 %v3149, 0.0
        %v3182 = vmax.f32 %v3150, 0.0
        %v3183 = vmax.f32 %v3151, 0.0
        %v3184 = vmax.f32 %v3152, 0.0
        %v3185 = vmax.f32 %v3153, 0.0
        %v3186 = vmax.f32 %v3154, 0.0
        %v3187 = vmax.f32 %v3155, 0.0
        %v3188 = vmax.f32 %v3156, 0.0
        %v3189 = vmax.f32 %v3157, 0.0
        %v3190 = vmax.f32 %v3158, 0.0
        %v3191 = vmax.f32 %v3159, 0.0
        %v3192 = vmax.f32 %v3160, 0.0
        %v3193 = vmax.f32 %v3161, 0.0
        %v3194 = vmax.f32 %v3162, 0.0
        %v3195 = vmax.f32 %v3163, 0.0
        %v3196 = vmax.f32 %v3164, 0.0
        %v3197 = vmax.f32 %v3165, 0.0
        %v3198 = vpack.c.bf16 %v3168, %v3166
        %v3199 = vpack.c.bf16 %v3169, %v3167
        %v3200 = vpack.c.bf16 %v3172, %v3170
        %v3201 = vpack.c.bf16 %v3173, %v3171
        %v3202 = vpack.c.bf16 %v3176, %v3174
        %v3203 = vpack.c.bf16 %v3177, %v3175
        %v3204 = vpack.c.bf16 %v3180, %v3178
        %v3205 = vpack.c.bf16 %v3181, %v3179
        %v3206 = vpack.c.bf16 %v3184, %v3182
        %v3207 = vpack.c.bf16 %v3185, %v3183
        %v3208 = vpack.c.bf16 %v3188, %v3186
        %v3209 = vpack.c.bf16 %v3189, %v3187
        %v3210 = vpack.c.bf16 %v3192, %v3190
        %v3211 = vpack.c.bf16 %v3193, %v3191
        %v3212 = vpack.c.bf16 %v3196, %v3194
        %v3213 = vpack.c.bf16 %v3197, %v3195
        %v3214 = vld [vmem:[#allocation8] sm:$0xf]
        %v3215 = vld [vmem:[#allocation8 + $0x4] sm:$0xf]
        %v3216 = vld [vmem:[#allocation8 + $0x8] sm:$0xf]
        %v3217 = vld [vmem:[#allocation8 + $0xc] sm:$0xf]
        %v3218 = vld [vmem:[#allocation8 + $0x10] sm:$0xf]
        %v3219 = vld [vmem:[#allocation8 + $0x14] sm:$0xf]
        %v3220 = vld [vmem:[#allocation8 + $0x18] sm:$0xf]
        %v3221 = vld [vmem:[#allocation8 + $0x1c] sm:$0xf]
        %v3222 = vld [vmem:[#allocation8 + $0x20] sm:$0xf]
        %v3223 = vld [vmem:[#allocation8 + $0x24] sm:$0xf]
        %v3224 = vld [vmem:[#allocation8 + $0x28] sm:$0xf]
        %v3225 = vld [vmem:[#allocation8 + $0x2c] sm:$0xf]
        %v3226 = vld [vmem:[#allocation8 + $0x30] sm:$0xf]
        %v3227 = vld [vmem:[#allocation8 + $0x34] sm:$0xf]
        %v3228 = vld [vmem:[#allocation8 + $0x38] sm:$0xf]
        %v3229 = vld [vmem:[#allocation8 + $0x3c] sm:$0xf]
        %v3230 = vld [vmem:[#allocation8 + $0x40] sm:$0xf]
        %v3231 = vld [vmem:[#allocation8 + $0x44] sm:$0xf]
        %v3232 = vld [vmem:[#allocation8 + $0x48] sm:$0xf]
        %v3233 = vld [vmem:[#allocation8 + $0x4c] sm:$0xf]
        %v3234 = vld [vmem:[#allocation8 + $0x50] sm:$0xf]
        %v3235 = vld [vmem:[#allocation8 + $0x54] sm:$0xf]
        %v3236 = vld [vmem:[#allocation8 + $0x58] sm:$0xf]
        %v3237 = vld [vmem:[#allocation8 + $0x5c] sm:$0xf]
        %v3238 = vld [vmem:[#allocation8 + $0x60] sm:$0xf]
        %v3239 = vld [vmem:[#allocation8 + $0x64] sm:$0xf]
        %v3240 = vld [vmem:[#allocation8 + $0x68] sm:$0xf]
        %v3241 = vld [vmem:[#allocation8 + $0x6c] sm:$0xf]
        %v3242 = vld [vmem:[#allocation8 + $0x70] sm:$0xf]
        %v3243 = vld [vmem:[#allocation8 + $0x74] sm:$0xf]
        %v3244 = vld [vmem:[#allocation8 + $0x78] sm:$0xf]
        %v3245 = vld [vmem:[#allocation8 + $0x7c] sm:$0xf]
        %v3246 = vld [vmem:[#allocation10] sm:$0x1]
        %v3247 = vperm.slane %v3246, 0
        %v3280 = vunpack.c.l.b16 %v3214
        %v3281 = vunpack.c.l.b16 %v3215
        %v3282 = vunpack.c.l.b16 %v3216
        %v3283 = vunpack.c.l.b16 %v3217
        %v3284 = vunpack.c.l.b16 %v3218
        %v3285 = vunpack.c.l.b16 %v3219
        %v3286 = vunpack.c.l.b16 %v3220
        %v3287 = vunpack.c.l.b16 %v3221
        %v3288 = vunpack.c.l.b16 %v3222
        %v3289 = vunpack.c.l.b16 %v3223
        %v3290 = vunpack.c.l.b16 %v3224
        %v3291 = vunpack.c.l.b16 %v3225
        %v3292 = vunpack.c.l.b16 %v3226
        %v3293 = vunpack.c.l.b16 %v3227
        %v3294 = vunpack.c.l.b16 %v3228
        %v3295 = vunpack.c.l.b16 %v3229
        %v3296 = vunpack.c.l.b16 %v3230
        %v3297 = vunpack.c.l.b16 %v3231
        %v3298 = vunpack.c.l.b16 %v3232
        %v3299 = vunpack.c.l.b16 %v3233
        %v3300 = vunpack.c.l.b16 %v3234
        %v3301 = vunpack.c.l.b16 %v3235
        %v3302 = vunpack.c.l.b16 %v3236
        %v3303 = vunpack.c.l.b16 %v3237
        %v3304 = vunpack.c.l.b16 %v3238
        %v3305 = vunpack.c.l.b16 %v3239
        %v3306 = vunpack.c.l.b16 %v3240
        %v3307 = vunpack.c.l.b16 %v3241
        %v3308 = vunpack.c.l.b16 %v3242
        %v3309 = vunpack.c.l.b16 %v3243
        %v3310 = vunpack.c.l.b16 %v3244
        %v3311 = vunpack.c.l.b16 %v3245
        %v3312 = vpack.c.b16 %v3281, %v3280
        %v3313 = vpack.c.b16 %v3283, %v3282
        %v3314 = vpack.c.b16 %v3285, %v3284
        %v3315 = vpack.c.b16 %v3287, %v3286
        %v3316 = vpack.c.b16 %v3289, %v3288
        %v3317 = vpack.c.b16 %v3291, %v3290
        %v3318 = vpack.c.b16 %v3293, %v3292
        %v3319 = vpack.c.b16 %v3295, %v3294
        %v3320 = vpack.c.b16 %v3297, %v3296
        %v3321 = vpack.c.b16 %v3299, %v3298
        %v3322 = vpack.c.b16 %v3301, %v3300
        %v3323 = vpack.c.b16 %v3303, %v3302
        %v3324 = vpack.c.b16 %v3305, %v3304
        %v3325 = vpack.c.b16 %v3307, %v3306
        %v3326 = vpack.c.b16 %v3309, %v3308
        %v3327 = vpack.c.b16 %v3311, %v3310
        %3344 = vmatpush.bf16.msra.mxu0 %v3319
        %3345 = vmatpush.bf16.msra.mxu0 %v3318
        %3346 = vmatpush.bf16.msra.mxu0 %v3317
        %3347 = vmatpush.bf16.msra.mxu0 %v3316
        %3348 = vmatpush.bf16.msra.mxu0 %v3315
        %3349 = vmatpush.bf16.msra.mxu0 %v3314
        %3350 = vmatpush.bf16.msra.mxu0 %v3313
        %3351 = vmatpush.bf16.msra.mxu0 %v3312
        %3352 = vmatmul.bf16.gmra.mxu0 %v3198
        %v3353 = vpop.f32.mrf.mxu0
        %v3354 = vadd.f32 %v3247, %v3353
        %v3355 = vpop.f32.mrf.mxu0
        %v3356 = vadd.f32 %v3247, %v3355
        %3357 = vmatmul.bf16.gmra.mxu0 %v3200
        %v3358 = vpop.f32.mrf.mxu0
        %v3359 = vadd.f32 %v3247, %v3358
        %v3360 = vpop.f32.mrf.mxu0
        %v3361 = vadd.f32 %v3247, %v3360
        %3362 = vmatmul.bf16.gmra.mxu0 %v3202
        %v3363 = vpop.f32.mrf.mxu0
        %v3364 = vadd.f32 %v3247, %v3363
        %v3365 = vpop.f32.mrf.mxu0
        %v3366 = vadd.f32 %v3247, %v3365
        %3367 = vmatmul.bf16.gmra.mxu0 %v3204
        %v3368 = vpop.f32.mrf.mxu0
        %v3369 = vadd.f32 %v3247, %v3368
        %v3370 = vpop.f32.mrf.mxu0
        %v3371 = vadd.f32 %v3247, %v3370
        %3372 = vmatmul.bf16.gmra.mxu0 %v3206
        %v3373 = vpop.f32.mrf.mxu0
        %v3374 = vadd.f32 %v3247, %v3373
        %v3375 = vpop.f32.mrf.mxu0
        %v3376 = vadd.f32 %v3247, %v3375
        %3377 = vmatmul.bf16.gmra.mxu0 %v3208
        %v3378 = vpop.f32.mrf.mxu0
        %v3379 = vadd.f32 %v3247, %v3378
        %v3380 = vpop.f32.mrf.mxu0
        %v3381 = vadd.f32 %v3247, %v3380
        %3382 = vmatmul.bf16.gmra.mxu0 %v3210
        %v3383 = vpop.f32.mrf.mxu0
        %v3384 = vadd.f32 %v3247, %v3383
        %v3385 = vpop.f32.mrf.mxu0
        %v3386 = vadd.f32 %v3247, %v3385
        %3387 = vmatmul.bf16.gmra.mxu0 %v3212
        %v3388 = vpop.f32.mrf.mxu0
        %v3389 = vadd.f32 %v3247, %v3388
        %v3390 = vpop.f32.mrf.mxu0
        %v3391 = vadd.f32 %v3247, %v3390
        %3392 = vdwg.mxu0
        %3393 = vmatpush.bf16.msra.mxu0 %v3327
        %3394 = vmatpush.bf16.msra.mxu0 %v3326
        %3395 = vmatpush.bf16.msra.mxu0 %v3325
        %3396 = vmatpush.bf16.msra.mxu0 %v3324
        %3397 = vmatpush.bf16.msra.mxu0 %v3323
        %3398 = vmatpush.bf16.msra.mxu0 %v3322
        %3399 = vmatpush.bf16.msra.mxu0 %v3321
        %3400 = vmatpush.bf16.msra.mxu0 %v3320
        %3401 = vmatmul.bf16.gmra.mxu0 %v3199
        %v3402 = vpop.f32.mrf.mxu0
        %v3403 = vadd.f32 %v3354, %v3402
        %v3404 = vpop.f32.mrf.mxu0
        %v3405 = vadd.f32 %v3356, %v3404
        %3406 = vmatmul.bf16.gmra.mxu0 %v3201
        %v3407 = vpop.f32.mrf.mxu0
        %v3408 = vadd.f32 %v3359, %v3407
        %v3409 = vpop.f32.mrf.mxu0
        %v3410 = vadd.f32 %v3361, %v3409
        %3411 = vmatmul.bf16.gmra.mxu0 %v3203
        %v3412 = vpop.f32.mrf.mxu0
        %v3413 = vadd.f32 %v3364, %v3412
        %v3414 = vpop.f32.mrf.mxu0
        %v3415 = vadd.f32 %v3366, %v3414
        %3416 = vmatmul.bf16.gmra.mxu0 %v3205
        %v3417 = vpop.f32.mrf.mxu0
        %v3418 = vadd.f32 %v3369, %v3417
        %v3419 = vpop.f32.mrf.mxu0
        %v3420 = vadd.f32 %v3371, %v3419
        %3421 = vmatmul.bf16.gmra.mxu0 %v3207
        %v3422 = vpop.f32.mrf.mxu0
        %v3423 = vadd.f32 %v3374, %v3422
        %v3424 = vpop.f32.mrf.mxu0
        %v3425 = vadd.f32 %v3376, %v3424
        %3426 = vmatmul.bf16.gmra.mxu0 %v3209
        %v3427 = vpop.f32.mrf.mxu0
        %v3428 = vadd.f32 %v3379, %v3427
        %v3429 = vpop.f32.mrf.mxu0
        %v3430 = vadd.f32 %v3381, %v3429
        %3431 = vmatmul.bf16.gmra.mxu0 %v3211
        %v3432 = vpop.f32.mrf.mxu0
        %v3433 = vadd.f32 %v3384, %v3432
        %v3434 = vpop.f32.mrf.mxu0
        %v3435 = vadd.f32 %v3386, %v3434
        %3436 = vmatmul.bf16.gmra.mxu0 %v3213
        %v3437 = vpop.f32.mrf.mxu0
        %v3438 = vadd.f32 %v3389, %v3437
        %v3439 = vpop.f32.mrf.mxu0
        %v3440 = vadd.f32 %v3391, %v3439
        %3441 = vdwg.mxu0
        %v3442 = vld [vmem:[#allocation10 + $0x1] sm:$0x1]
        %v3443 = vld [vmem:[#allocation10 + $0x2] sm:$0x1]
        %3444 = vadd.xlane.f32.xlu0 %v3403
        %v3445 = vpop.xlane.xlu0 %3444
        %3446 = vadd.xlane.f32.xlu0 %v3405
        %v3447 = vpop.xlane.xlu0 %3446
        %3448 = vadd.xlane.f32.xlu0 %v3408
        %v3449 = vpop.xlane.xlu0 %3448
        %3450 = vadd.xlane.f32.xlu0 %v3410
        %v3451 = vpop.xlane.xlu0 %3450
        %3452 = vadd.xlane.f32.xlu0 %v3413
        %v3453 = vpop.xlane.xlu0 %3452
        %3454 = vadd.xlane.f32.xlu0 %v3415
        %v3455 = vpop.xlane.xlu0 %3454
        %3456 = vadd.xlane.f32.xlu0 %v3418
        %v3457 = vpop.xlane.xlu0 %3456
        %3458 = vadd.xlane.f32.xlu0 %v3420
        %v3459 = vpop.xlane.xlu0 %3458
        %3460 = vadd.xlane.f32.xlu0 %v3423
        %v3461 = vpop.xlane.xlu0 %3460
        %3462 = vadd.xlane.f32.xlu0 %v3425
        %v3463 = vpop.xlane.xlu0 %3462
        %3464 = vadd.xlane.f32.xlu0 %v3428
        %v3465 = vpop.xlane.xlu0 %3464
        %3466 = vadd.xlane.f32.xlu0 %v3430
        %v3467 = vpop.xlane.xlu0 %3466
        %3468 = vadd.xlane.f32.xlu0 %v3433
        %v3469 = vpop.xlane.xlu0 %3468
        %3470 = vadd.xlane.f32.xlu0 %v3435
        %v3471 = vpop.xlane.xlu0 %3470
        %3472 = vadd.xlane.f32.xlu0 %v3438
        %v3473 = vpop.xlane.xlu0 %3472
        %3474 = vadd.xlane.f32.xlu0 %v3440
        %v3475 = vpop.xlane.xlu0 %3474
        %v3476 = vrcp.pop 128.0
        %v3477 = vmul.f32 128.0, %v3476
        %v3478 = vsub.f32 1.0, %v3477
        %v3479 = vmul.f32 %v3476, %v3478
        %v3480 = vadd.f32 %v3476, %v3479
        %vm3481 = vweird.f32 %v3476
        %v3482 = vsel %vm3481, %v3476, %v3480
        %v3483 = vmul.f32 %v3445, %v3482
        %v3484 = vmul.f32 %v3447, %v3482
        %v3485 = vmul.f32 %v3449, %v3482
        %v3486 = vmul.f32 %v3451, %v3482
        %v3487 = vmul.f32 %v3453, %v3482
        %v3488 = vmul.f32 %v3455, %v3482
        %v3489 = vmul.f32 %v3457, %v3482
        %v3490 = vmul.f32 %v3459, %v3482
        %v3491 = vmul.f32 %v3461, %v3482
        %v3492 = vmul.f32 %v3463, %v3482
        %v3493 = vmul.f32 %v3465, %v3482
        %v3494 = vmul.f32 %v3467, %v3482
        %v3495 = vmul.f32 %v3469, %v3482
        %v3496 = vmul.f32 %v3471, %v3482
        %v3497 = vmul.f32 %v3473, %v3482
        %v3498 = vmul.f32 %v3475, %v3482
        %v3499 = vsub.f32 %v3403, %v3483
        %v3500 = vsub.f32 %v3405, %v3484
        %v3501 = vsub.f32 %v3408, %v3485
        %v3502 = vsub.f32 %v3410, %v3486
        %v3503 = vsub.f32 %v3413, %v3487
        %v3504 = vsub.f32 %v3415, %v3488
        %v3505 = vsub.f32 %v3418, %v3489
        %v3506 = vsub.f32 %v3420, %v3490
        %v3507 = vsub.f32 %v3423, %v3491
        %v3508 = vsub.f32 %v3425, %v3492
        %v3509 = vsub.f32 %v3428, %v3493
        %v3510 = vsub.f32 %v3430, %v3494
        %v3511 = vsub.f32 %v3433, %v3495
        %v3512 = vsub.f32 %v3435, %v3496
        %v3513 = vsub.f32 %v3438, %v3497
        %v3514 = vsub.f32 %v3440, %v3498
        %v3515 = vmul.f32 %v3499, %v3499
        %v3516 = vmul.f32 %v3500, %v3500
        %v3517 = vmul.f32 %v3501, %v3501
        %v3518 = vmul.f32 %v3502, %v3502
        %v3519 = vmul.f32 %v3503, %v3503
        %v3520 = vmul.f32 %v3504, %v3504
        %v3521 = vmul.f32 %v3505, %v3505
        %v3522 = vmul.f32 %v3506, %v3506
        %v3523 = vmul.f32 %v3507, %v3507
        %v3524 = vmul.f32 %v3508, %v3508
        %v3525 = vmul.f32 %v3509, %v3509
        %v3526 = vmul.f32 %v3510, %v3510
        %v3527 = vmul.f32 %v3511, %v3511
        %v3528 = vmul.f32 %v3512, %v3512
        %v3529 = vmul.f32 %v3513, %v3513
        %v3530 = vmul.f32 %v3514, %v3514
        %3531 = vadd.xlane.f32.xlu0 %v3515
        %v3532 = vpop.xlane.xlu0 %3531
        %3533 = vadd.xlane.f32.xlu0 %v3516
        %v3534 = vpop.xlane.xlu0 %3533
        %3535 = vadd.xlane.f32.xlu0 %v3517
        %v3536 = vpop.xlane.xlu0 %3535
        %3537 = vadd.xlane.f32.xlu0 %v3518
        %v3538 = vpop.xlane.xlu0 %3537
        %3539 = vadd.xlane.f32.xlu0 %v3519
        %v3540 = vpop.xlane.xlu0 %3539
        %3541 = vadd.xlane.f32.xlu0 %v3520
        %v3542 = vpop.xlane.xlu0 %3541
        %3543 = vadd.xlane.f32.xlu0 %v3521
        %v3544 = vpop.xlane.xlu0 %3543
        %3545 = vadd.xlane.f32.xlu0 %v3522
        %v3546 = vpop.xlane.xlu0 %3545
        %3547 = vadd.xlane.f32.xlu0 %v3523
        %v3548 = vpop.xlane.xlu0 %3547
        %3549 = vadd.xlane.f32.xlu0 %v3524
        %v3550 = vpop.xlane.xlu0 %3549
        %3551 = vadd.xlane.f32.xlu0 %v3525
        %v3552 = vpop.xlane.xlu0 %3551
        %3553 = vadd.xlane.f32.xlu0 %v3526
        %v3554 = vpop.xlane.xlu0 %3553
        %3555 = vadd.xlane.f32.xlu0 %v3527
        %v3556 = vpop.xlane.xlu0 %3555
        %3557 = vadd.xlane.f32.xlu0 %v3528
        %v3558 = vpop.xlane.xlu0 %3557
        %3559 = vadd.xlane.f32.xlu0 %v3529
        %v3560 = vpop.xlane.xlu0 %3559
        %3561 = vadd.xlane.f32.xlu0 %v3530
        %v3562 = vpop.xlane.xlu0 %3561
        %v3563 = vmul.f32 %v3532, %v3482
        %v3564 = vmul.f32 %v3534, %v3482
        %v3565 = vmul.f32 %v3536, %v3482
        %v3566 = vmul.f32 %v3538, %v3482
        %v3567 = vmul.f32 %v3540, %v3482
        %v3568 = vmul.f32 %v3542, %v3482
        %v3569 = vmul.f32 %v3544, %v3482
        %v3570 = vmul.f32 %v3546, %v3482
        %v3571 = vmul.f32 %v3548, %v3482
        %v3572 = vmul.f32 %v3550, %v3482
        %v3573 = vmul.f32 %v3552, %v3482
        %v3574 = vmul.f32 %v3554, %v3482
        %v3575 = vmul.f32 %v3556, %v3482
        %v3576 = vmul.f32 %v3558, %v3482
        %v3577 = vmul.f32 %v3560, %v3482
        %v3578 = vmul.f32 %v3562, %v3482
        %v3579 = vadd.f32 %v3563, 1e-05
        %v3580 = vadd.f32 %v3564, 1e-05
        %v3581 = vadd.f32 %v3565, 1e-05
        %v3582 = vadd.f32 %v3566, 1e-05
        %v3583 = vadd.f32 %v3567, 1e-05
        %v3584 = vadd.f32 %v3568, 1e-05
        %v3585 = vadd.f32 %v3569, 1e-05
        %v3586 = vadd.f32 %v3570, 1e-05
        %v3587 = vadd.f32 %v3571, 1e-05
        %v3588 = vadd.f32 %v3572, 1e-05
        %v3589 = vadd.f32 %v3573, 1e-05
        %v3590 = vadd.f32 %v3574, 1e-05
        %v3591 = vadd.f32 %v3575, 1e-05
        %v3592 = vadd.f32 %v3576, 1e-05
        %v3593 = vadd.f32 %v3577, 1e-05
        %v3594 = vadd.f32 %v3578, 1e-05
        %v3595 = vrsqrt.pop %v3579
        %v3596 = vmul.f32 %v3595, %v3579
        %v3597 = vmul.f32 %v3596, %v3595
        %v3598 = vmul.f32 0.5, %v3597
        %v3599 = vsub.f32 1.5, %v3598
        %v3600 = vmul.f32 %v3595, %v3599
        %vm3601 = vweird.f32 %v3579
        %vm3602 = vweird.f32 %v3595
        %vm3603 = vmor %vm3601, %vm3602
        %v3604 = vsel %vm3603, %v3595, %v3600
        %v3605 = vrsqrt.pop %v3580
        %v3606 = vmul.f32 %v3605, %v3580
        %v3607 = vmul.f32 %v3606, %v3605
        %v3608 = vmul.f32 0.5, %v3607
        %v3609 = vsub.f32 1.5, %v3608
        %v3610 = vmul.f32 %v3605, %v3609
        %vm3611 = vweird.f32 %v3580
        %vm3612 = vweird.f32 %v3605
        %vm3613 = vmor %vm3611, %vm3612
        %v3614 = vsel %vm3613, %v3605, %v3610
        %v3615 = vrsqrt.pop %v3581
        %v3616 = vmul.f32 %v3615, %v3581
        %v3617 = vmul.f32 %v3616, %v3615
        %v3618 = vmul.f32 0.5, %v3617
        %v3619 = vsub.f32 1.5, %v3618
        %v3620 = vmul.f32 %v3615, %v3619
        %vm3621 = vweird.f32 %v3581
        %vm3622 = vweird.f32 %v3615
        %vm3623 = vmor %vm3621, %vm3622
        %v3624 = vsel %vm3623, %v3615, %v3620
        %v3625 = vrsqrt.pop %v3582
        %v3626 = vmul.f32 %v3625, %v3582
        %v3627 = vmul.f32 %v3626, %v3625
        %v3628 = vmul.f32 0.5, %v3627
        %v3629 = vsub.f32 1.5, %v3628
        %v3630 = vmul.f32 %v3625, %v3629
        %vm3631 = vweird.f32 %v3582
        %vm3632 = vweird.f32 %v3625
        %vm3633 = vmor %vm3631, %vm3632
        %v3634 = vsel %vm3633, %v3625, %v3630
        %v3635 = vrsqrt.pop %v3583
        %v3636 = vmul.f32 %v3635, %v3583
        %v3637 = vmul.f32 %v3636, %v3635
        %v3638 = vmul.f32 0.5, %v3637
        %v3639 = vsub.f32 1.5, %v3638
        %v3640 = vmul.f32 %v3635, %v3639
        %vm3641 = vweird.f32 %v3583
        %vm3642 = vweird.f32 %v3635
        %vm3643 = vmor %vm3641, %vm3642
        %v3644 = vsel %vm3643, %v3635, %v3640
        %v3645 = vrsqrt.pop %v3584
        %v3646 = vmul.f32 %v3645, %v3584
        %v3647 = vmul.f32 %v3646, %v3645
        %v3648 = vmul.f32 0.5, %v3647
        %v3649 = vsub.f32 1.5, %v3648
        %v3650 = vmul.f32 %v3645, %v3649
        %vm3651 = vweird.f32 %v3584
        %vm3652 = vweird.f32 %v3645
        %vm3653 = vmor %vm3651, %vm3652
        %v3654 = vsel %vm3653, %v3645, %v3650
        %v3655 = vrsqrt.pop %v3585
        %v3656 = vmul.f32 %v3655, %v3585
        %v3657 = vmul.f32 %v3656, %v3655
        %v3658 = vmul.f32 0.5, %v3657
        %v3659 = vsub.f32 1.5, %v3658
        %v3660 = vmul.f32 %v3655, %v3659
        %vm3661 = vweird.f32 %v3585
        %vm3662 = vweird.f32 %v3655
        %vm3663 = vmor %vm3661, %vm3662
        %v3664 = vsel %vm3663, %v3655, %v3660
        %v3665 = vrsqrt.pop %v3586
        %v3666 = vmul.f32 %v3665, %v3586
        %v3667 = vmul.f32 %v3666, %v3665
        %v3668 = vmul.f32 0.5, %v3667
        %v3669 = vsub.f32 1.5, %v3668
        %v3670 = vmul.f32 %v3665, %v3669
        %vm3671 = vweird.f32 %v3586
        %vm3672 = vweird.f32 %v3665
        %vm3673 = vmor %vm3671, %vm3672
        %v3674 = vsel %vm3673, %v3665, %v3670
        %v3675 = vrsqrt.pop %v3587
        %v3676 = vmul.f32 %v3675, %v3587
        %v3677 = vmul.f32 %v3676, %v3675
        %v3678 = vmul.f32 0.5, %v3677
        %v3679 = vsub.f32 1.5, %v3678
        %v3680 = vmul.f32 %v3675, %v3679
        %vm3681 = vweird.f32 %v3587
        %vm3682 = vweird.f32 %v3675
        %vm3683 = vmor %vm3681, %vm3682
        %v3684 = vsel %vm3683, %v3675, %v3680
        %v3685 = vrsqrt.pop %v3588
        %v3686 = vmul.f32 %v3685, %v3588
        %v3687 = vmul.f32 %v3686, %v3685
        %v3688 = vmul.f32 0.5, %v3687
        %v3689 = vsub.f32 1.5, %v3688
        %v3690 = vmul.f32 %v3685, %v3689
        %vm3691 = vweird.f32 %v3588
        %vm3692 = vweird.f32 %v3685
        %vm3693 = vmor %vm3691, %vm3692
        %v3694 = vsel %vm3693, %v3685, %v3690
        %v3695 = vrsqrt.pop %v3589
        %v3696 = vmul.f32 %v3695, %v3589
        %v3697 = vmul.f32 %v3696, %v3695
        %v3698 = vmul.f32 0.5, %v3697
        %v3699 = vsub.f32 1.5, %v3698
        %v3700 = vmul.f32 %v3695, %v3699
        %vm3701 = vweird.f32 %v3589
        %vm3702 = vweird.f32 %v3695
        %vm3703 = vmor %vm3701, %vm3702
        %v3704 = vsel %vm3703, %v3695, %v3700
        %v3705 = vrsqrt.pop %v3590
        %v3706 = vmul.f32 %v3705, %v3590
        %v3707 = vmul.f32 %v3706, %v3705
        %v3708 = vmul.f32 0.5, %v3707
        %v3709 = vsub.f32 1.5, %v3708
        %v3710 = vmul.f32 %v3705, %v3709
        %vm3711 = vweird.f32 %v3590
        %vm3712 = vweird.f32 %v3705
        %vm3713 = vmor %vm3711, %vm3712
        %v3714 = vsel %vm3713, %v3705, %v3710
        %v3715 = vrsqrt.pop %v3591
        %v3716 = vmul.f32 %v3715, %v3591
        %v3717 = vmul.f32 %v3716, %v3715
        %v3718 = vmul.f32 0.5, %v3717
        %v3719 = vsub.f32 1.5, %v3718
        %v3720 = vmul.f32 %v3715, %v3719
        %vm3721 = vweird.f32 %v3591
        %vm3722 = vweird.f32 %v3715
        %vm3723 = vmor %vm3721, %vm3722
        %v3724 = vsel %vm3723, %v3715, %v3720
        %v3725 = vrsqrt.pop %v3592
        %v3726 = vmul.f32 %v3725, %v3592
        %v3727 = vmul.f32 %v3726, %v3725
        %v3728 = vmul.f32 0.5, %v3727
        %v3729 = vsub.f32 1.5, %v3728
        %v3730 = vmul.f32 %v3725, %v3729
        %vm3731 = vweird.f32 %v3592
        %vm3732 = vweird.f32 %v3725
        %vm3733 = vmor %vm3731, %vm3732
        %v3734 = vsel %vm3733, %v3725, %v3730
        %v3735 = vrsqrt.pop %v3593
        %v3736 = vmul.f32 %v3735, %v3593
        %v3737 = vmul.f32 %v3736, %v3735
        %v3738 = vmul.f32 0.5, %v3737
        %v3739 = vsub.f32 1.5, %v3738
        %v3740 = vmul.f32 %v3735, %v3739
        %vm3741 = vweird.f32 %v3593
        %vm3742 = vweird.f32 %v3735
        %vm3743 = vmor %vm3741, %vm3742
        %v3744 = vsel %vm3743, %v3735, %v3740
        %v3745 = vrsqrt.pop %v3594
        %v3746 = vmul.f32 %v3745, %v3594
        %v3747 = vmul.f32 %v3746, %v3745
        %v3748 = vmul.f32 0.5, %v3747
        %v3749 = vsub.f32 1.5, %v3748
        %v3750 = vmul.f32 %v3745, %v3749
        %vm3751 = vweird.f32 %v3594
        %vm3752 = vweird.f32 %v3745
        %vm3753 = vmor %vm3751, %vm3752
        %v3754 = vsel %vm3753, %v3745, %v3750
        %v3755 = vmul.f32 %v3499, %v3604
        %v3756 = vmul.f32 %v3500, %v3614
        %v3757 = vmul.f32 %v3501, %v3624
        %v3758 = vmul.f32 %v3502, %v3634
        %v3759 = vmul.f32 %v3503, %v3644
        %v3760 = vmul.f32 %v3504, %v3654
        %v3761 = vmul.f32 %v3505, %v3664
        %v3762 = vmul.f32 %v3506, %v3674
        %v3763 = vmul.f32 %v3507, %v3684
        %v3764 = vmul.f32 %v3508, %v3694
        %v3765 = vmul.f32 %v3509, %v3704
        %v3766 = vmul.f32 %v3510, %v3714
        %v3767 = vmul.f32 %v3511, %v3724
        %v3768 = vmul.f32 %v3512, %v3734
        %v3769 = vmul.f32 %v3513, %v3744
        %v3770 = vmul.f32 %v3514, %v3754
        %v3771 = vperm.slane %v3442, 0
        %v3772 = vmul.f32 %v3755, %v3771
        %v3773 = vmul.f32 %v3756, %v3771
        %v3774 = vmul.f32 %v3757, %v3771
        %v3775 = vmul.f32 %v3758, %v3771
        %v3776 = vmul.f32 %v3759, %v3771
        %v3777 = vmul.f32 %v3760, %v3771
        %v3778 = vmul.f32 %v3761, %v3771
        %v3779 = vmul.f32 %v3762, %v3771
        %v3780 = vmul.f32 %v3763, %v3771
        %v3781 = vmul.f32 %v3764, %v3771
        %v3782 = vmul.f32 %v3765, %v3771
        %v3783 = vmul.f32 %v3766, %v3771
        %v3784 = vmul.f32 %v3767, %v3771
        %v3785 = vmul.f32 %v3768, %v3771
        %v3786 = vmul.f32 %v3769, %v3771
        %v3787 = vmul.f32 %v3770, %v3771
        %v3788 = vperm.slane %v3443, 0
        %v3789 = vadd.f32 %v3772, %v3788
        %v3790 = vadd.f32 %v3773, %v3788
        %v3791 = vadd.f32 %v3774, %v3788
        %v3792 = vadd.f32 %v3775, %v3788
        %v3793 = vadd.f32 %v3776, %v3788
        %v3794 = vadd.f32 %v3777, %v3788
        %v3795 = vadd.f32 %v3778, %v3788
        %v3796 = vadd.f32 %v3779, %v3788
        %v3797 = vadd.f32 %v3780, %v3788
        %v3798 = vadd.f32 %v3781, %v3788
        %v3799 = vadd.f32 %v3782, %v3788
        %v3800 = vadd.f32 %v3783, %v3788
        %v3801 = vadd.f32 %v3784, %v3788
        %v3802 = vadd.f32 %v3785, %v3788
        %v3803 = vadd.f32 %v3786, %v3788
        %v3804 = vadd.f32 %v3787, %v3788
        %v3805 = vmax.f32 %v3789, 0.0
        %v3806 = vmax.f32 %v3790, 0.0
        %v3807 = vmax.f32 %v3791, 0.0
        %v3808 = vmax.f32 %v3792, 0.0
        %v3809 = vmax.f32 %v3793, 0.0
        %v3810 = vmax.f32 %v3794, 0.0
        %v3811 = vmax.f32 %v3795, 0.0
        %v3812 = vmax.f32 %v3796, 0.0
        %v3813 = vmax.f32 %v3797, 0.0
        %v3814 = vmax.f32 %v3798, 0.0
        %v3815 = vmax.f32 %v3799, 0.0
        %v3816 = vmax.f32 %v3800, 0.0
        %v3817 = vmax.f32 %v3801, 0.0
        %v3818 = vmax.f32 %v3802, 0.0
        %v3819 = vmax.f32 %v3803, 0.0
        %v3820 = vmax.f32 %v3804, 0.0
        %v3821 = vld [vmem:[#allocation11] sm:$0x1]
        %v3822 = vpack.c.bf16 %v3806, %v3805
        %v3823 = vpack.c.bf16 %v3808, %v3807
        %v3824 = vpack.c.bf16 %v3810, %v3809
        %v3825 = vpack.c.bf16 %v3812, %v3811
        %v3826 = vpack.c.bf16 %v3814, %v3813
        %v3827 = vpack.c.bf16 %v3816, %v3815
        %v3828 = vpack.c.bf16 %v3818, %v3817
        %v3829 = vpack.c.bf16 %v3820, %v3819
        %v3830 = vld [vmem:[%s8] sm:$0x1]
        %3832 = vset.pattern.permute.xlu0 0
        %3833 = vperm.xlu0 %3832, %v3830
        %v3834 = vpop.permute.xlu0 %3833
        %3836 = vmatpush.bf16.xpose.msra.mxu0 %v3829
        %3837 = vmatpush.bf16.xpose.msra.mxu0 %v3828
        %3838 = vmatpush.bf16.xpose.msra.mxu0 %v3827
        %3839 = vmatpush.bf16.xpose.msra.mxu0 %v3826
        %3840 = vmatpush.bf16.xpose.msra.mxu0 %v3825
        %3841 = vmatpush.bf16.xpose.msra.mxu0 %v3824
        %3842 = vmatpush.bf16.xpose.msra.mxu0 %v3823
        %3843 = vmatpush.bf16.xpose.msra.mxu0 %v3822
        %3844 = vmatmul.bf16.gmra.mxu0 %v3821
        %v3845 = vpop.f32.mrf.mxu0
        %v3846 = vadd.f32 %v3834, %v3845
        %v3847 = vpop.f32.mrf.mxu0
        %3848 = vdwg.mxu0
        %v3849 = vxor.u32 %v3846, 2147483648
        %v3850 = vmul.f32 %v3849, 1.442695
        %v3851 = vpow.pop %v3850
        %v3852 = vadd.f32 %v3851, 1.0
        %v3853 = vrcp.pop %v3852
        %v3854 = vmul.f32 %v3852, %v3853
        %v3855 = vsub.f32 1.0, %v3854
        %v3856 = vmul.f32 %v3853, %v3855
        %v3857 = vadd.f32 %v3853, %v3856
        %vm3858 = vweird.f32 %v3852
        %vm3859 = vweird.f32 %v3853
        %vm3860 = vmor %vm3858, %vm3859
        %v3861 = vsel %vm3860, %v3853, %v3857
        %v3862 = vand.u32 2147483647, %v3852
        %vm3863 = vcmp.eq.f32.partialorder %v3862, 8.507059e+37
        %v3864 = vand.u32 %v3852, 2147483648
        %v3865 = vor.u32 1.1754944e-38, %v3864
        %v3866 = vsel %vm3863, %v3865, %v3861
        %v3867 = vmul.f32 1.0, %v3866
        %v3868 = vmul.f32 %v3867, 0.7
        %v3869 = vxor.u32 %v2679, 2147483648
        %v3870 = vmul.f32 %v3869, 1.442695
        %v3871 = vpow.pop %v3870
        %v3872 = vadd.f32 %v3871, 1.0
        %v3873 = vrcp.pop %v3872
        %v3874 = vmul.f32 %v3872, %v3873
        %v3875 = vsub.f32 1.0, %v3874
        %v3876 = vmul.f32 %v3873, %v3875
        %v3877 = vadd.f32 %v3873, %v3876
        %vm3878 = vweird.f32 %v3872
        %vm3879 = vweird.f32 %v3873
        %vm3880 = vmor %vm3878, %vm3879
        %v3881 = vsel %vm3880, %v3873, %v3877
        %v3882 = vand.u32 2147483647, %v3872
        %vm3883 = vcmp.eq.f32.partialorder %v3882, 8.507059e+37
        %v3884 = vand.u32 %v3872, 2147483648
        %v3885 = vor.u32 1.1754944e-38, %v3884
        %v3886 = vsel %vm3883, %v3885, %v3881
        %v3887 = vmul.f32 1.0, %v3886
        %vm3888 = vcmask 1042432
        %v3889 = vsel %vm3888, %v3887, 0.0
        %v3890 = vrot.slane %v3889, 4
        %v3891 = vadd.f32 %v3889, %v3890
        %v3892 = vrot.slane %v3891, 2
        %v3893 = vadd.f32 %v3891, %v3892
        %v3894 = vrot.slane %v3893, 1
        %v3895 = vadd.f32 %v3893, %v3894
        %v3896 = vmul.f32 %v3895, 0.1
        %v3897 = vadd.f32 %v3868, %v3896
        %3898 = vst [vmem:[%s437] sm:$0x1] %v3897
        %s3899 = sand.u32 %s231, 1
        %s3900 = scalar_lea.sflag [#allocation4], %s3899
        %s3901 = sand.u32 %s231, 1
        %s3902 = scalar_lea.vmem [#allocation13], %s3901
        // Predicated region
        $region81: #{tpu_custom_call.1} parent=55 // pred_check
          %p3903 = pneg %p241
        $region82: #{tpu_custom_call.1} parent=55 // pred_check_branch
          %3905 = sbr.rel (%p3903) target = $region84
        $region83: #{tpu_custom_call.1} parent=55 // pred_region
          %3907 = vsyncadd %s3900, 0
          %s3908 = scalar_lea.hbm %s9, %s29
          %s3910 = sshll.u32 %s3902, 4
          %s3911 = int_to_ptr.vmem [resolvable:$true] %s3910
          %s3912 = sshll.u32 %s3908, 4
          %s3913 = int_to_ptr.hbm [resolvable:$true] %s3912
          %3915 = dma.vmem_to_hbm [thread:$0]  %s3911, 16, %s3913, %s3900
        $region84: #{tpu_custom_call.1} parent=55 // pred_fallthru
          _
      $region56: #{tpu_custom_call.1} parent=5 // pred_fallthru
        _
      %p3916 = scmp.le.s32.totalorder 2, %s24
      // Predicated region
      $region85: #{tpu_custom_call.1} parent=5 // pred_check
        %p3917 = pneg %p3916
      $region86: #{tpu_custom_call.1} parent=5 // pred_check_branch
        %3919 = sbr.rel (%p3917) target = $region88
      $region87: #{tpu_custom_call.1} parent=5 // pred_region
        %s3920 = ssub.s32 %s24, 2
        // Predicated region
        $region89: #{tpu_custom_call.1} parent=87 // pred_check
          %p3921 = pneg %p247
        $region90: #{tpu_custom_call.1} parent=87 // pred_check_branch
          %3923 = sbr.rel (%p3921) target = $region92
        $region91: #{tpu_custom_call.1} parent=87 // pred_region
          %s3924 = sand.u32 %s232, 1
          %s3925 = scalar_lea.sflag [#allocation4], %s3924
          %s3926 = sand.u32 %s232, 1
          %s3927 = scalar_lea.vmem [#allocation13], %s3926
          %3929 = dma.done %s3925, 16
        $region92: #{tpu_custom_call.1} parent=87 // pred_fallthru
          _
      $region88: #{tpu_custom_call.1} parent=5 // pred_fallthru
        _
    $region6: #{tpu_custom_call.1} parent=1 // loop_footer
      %s28 = sadd.s32 1, %s24
    $region7: #{tpu_custom_call.1} parent=1 // loop_footer_branch
      %23 = sbr.rel target = $region3
    $region8: #{tpu_custom_call.1} parent=1 // loop_exit
      _
    %3930 = vsyncpa [#allocation3], 1
    %s3931 = scalar_lea.sflag [#allocation3], 1
    %3932 = vsyncpa %s3931, 1
    %3933 = vsyncpa [#allocation6], 1
    %3934 = vsyncpa [#allocation9], 1
    %3935 = vsyncpa [#allocation12], 1
    %3936 = vsyncpa [#allocation4], 1
    %s3937 = scalar_lea.sflag [#allocation4], 1
    %3938 = vsyncpa %s3937, 1

</llo_original>
